<compile_context>
chip_gen: v6e
topology: v6e:2x2x1
jax: 0.10.0
libtpu: 0.0.40
codegen_flags: <defaults>
</compile_context>

<pallas_src>
import functools
import math

import jax
import jax.numpy as jnp
from jax.experimental import pallas as pl
from jax.experimental.pallas import tpu as pltpu

# ----------------------------------------------------------------------------
# Model hyper-parameters (scaled-down, consistent with the module's forward)
# ----------------------------------------------------------------------------
NUM_SEQS    = 2      # independent forward passes per pallas_call (grid axis)
BATCH       = 8      # rows of one forward == sequence length inside encoder
INPUT_DIM   = 64
MODEL_DIM   = 128
FF_DIM      = 256
NUM_CLASSES = 4
NUM_HEADS   = 4
NUM_LAYERS  = 2
HEAD_DIM    = MODEL_DIM // NUM_HEADS
OUT_PAD     = 128    # lane-dense padded width for the classifier output
LN_EPS      = 1e-5

# --- packed weight-slab layout (bf16) ----------------------------------------
W_COLS   = 3 * MODEL_DIM                                   # 384 slab width
L_WROWS  = 3 * MODEL_DIM + FF_DIM                          # 640 rows / layer
W_ROWS   = INPUT_DIM + NUM_LAYERS * L_WROWS + MODEL_DIM    # 1472 total rows
R_FC     = INPUT_DIM + NUM_LAYERS * L_WROWS                # classifier rows

# --- packed bias / LayerNorm slab layout (f32) --------------------------------
L_BROWS  = 8
B_FC     = 1 + NUM_LAYERS * L_BROWS                        # classifier bias row
B_ROWS   = ((B_FC + 1 + 7) // 8) * 8                       # pad rows to mult 8


# ----------------------------------------------------------------------------
# Math helpers
# ----------------------------------------------------------------------------
def _bdot(a, b):
    """Reference-side MXU matmul: bf16 operands, f32 accumulation."""
    return jnp.dot(a.astype(jnp.bfloat16), b.astype(jnp.bfloat16),
                   preferred_element_type=jnp.float32)


def _gelu_tanh(x):
    # tanh-approx GELU: tanh runs on the (otherwise idle) EUP slot.
    c = math.sqrt(2.0 / math.pi)
    return 0.5 * x * (1.0 + jnp.tanh(c * (x + 0.044715 * x * x * x)))


def _layernorm(x, gamma, beta):
    mu = jnp.mean(x, axis=-1, keepdims=True)
    var = jnp.mean(jnp.square(x - mu), axis=-1, keepdims=True)
    return (x - mu) * jax.lax.rsqrt(var + LN_EPS) * gamma + beta


# ----------------------------------------------------------------------------
# Single fused Pallas kernel: embedding -> N encoder layers -> classifier
# ----------------------------------------------------------------------------
def fused_transformer_kernel(x_ref, w_ref, b_ref, o_ref, *,
                             num_layers, num_heads, head_dim):
    D, F = MODEL_DIM, FF_DIM
    scale = 1.0 / math.sqrt(head_dim)

    def mm(a, b):                       # MXU: bf16 x bf16 -> f32 accumulation
        return jnp.dot(a, b, preferred_element_type=jnp.float32)

    def mm_nt(a, b):                    # a @ b.T without an explicit transpose
        return jax.lax.dot_general(a, b, (((1,), (1,)), ((), ())),
                                   preferred_element_type=jnp.float32)

    def bias(row, width):               # (1, width) f32 slice of the bias slab
        return b_ref[row:row + 1, 0:width]

    # ---- embedding linear: (S,64) @ (64,128) --------------------------------
    h = mm(x_ref[...], w_ref[0:INPUT_DIM, 0:D]) + bias(0, D)      # (S, D) f32

    # ---- encoder layers (statically unrolled) -------------------------------
    for li in range(num_layers):
        wb = INPUT_DIM + li * L_WROWS   # weight-slab row base for this layer
        bb = 1 + li * L_BROWS           # bias-slab   row base for this layer

        h_bf = h.astype(jnp.bfloat16)                      # hoisted cast

        # fused QKV projection: ONE (S,128)@(128,384) matmul
        qkv = mm(h_bf, w_ref[wb:wb + D, :]) + bias(bb, 3 * D)
        q = (qkv[:, 0:D] * scale).astype(jnp.bfloat16)     # scale in f32
        k = qkv[:, D:2 * D].astype(jnp.bfloat16)
        v = qkv[:, 2 * D:3 * D].astype(jnp.bfloat16)

        # per-head attention; the output projection is accumulated head by
        # head so the concatenated context never touches VMEM scratch.
        attn = bias(bb + 1, D)                             # start from bo
        for hh in range(num_heads):
            lo, hi = hh * head_dim, (hh + 1) * head_dim
            s = mm_nt(q[:, lo:hi], k[:, lo:hi])            # (S, S) scores
            s = s - jnp.max(s, axis=-1, keepdims=True)
            p = jnp.exp(s)
            p = p * pl.reciprocal(jnp.sum(p, axis=-1, keepdims=True),
                                  approx=True)
            ctx = mm(p.astype(jnp.bfloat16), v[:, lo:hi])  # (S, Dh)
            wo_h = w_ref[wb + D + lo: wb + D + hi, 0:D]    # Wo rows of head hh
            attn = attn + mm(ctx.astype(jnp.bfloat16), wo_h)

        # residual + LayerNorm1 (post-norm)
        h = _layernorm(h + attn, bias(bb + 2, D), bias(bb + 3, D))

        # feed-forward: Linear -> GELU(tanh) -> Linear
        f = mm(h.astype(jnp.bfloat16),
               w_ref[wb + 2 * D: wb + 3 * D, 0:F]) + bias(bb + 4, F)
        f = _gelu_tanh(f)
        f = mm(f.astype(jnp.bfloat16),
               w_ref[wb + 3 * D: wb + 3 * D + F, 0:D]) + bias(bb + 5, D)

        # residual + LayerNorm2
        h = _layernorm(h + f, bias(bb + 6, D), bias(bb + 7, D))

    # ---- classifier: lane-dense (S, 128) output, sliced in the wrapper ------
    o_ref[...] = (mm(h.astype(jnp.bfloat16), w_ref[R_FC:R_FC + D, 0:OUT_PAD])
                  + bias(B_FC, OUT_PAD)).astype(o_ref.dtype)


# ----------------------------------------------------------------------------
# Wrapper: one pallas_call, grid over independent sequences
# ----------------------------------------------------------------------------
@jax.jit
def transformer_forward(wslab, bslab, x):
    nseq, seq, _ = x.shape
    kern = functools.partial(fused_transformer_kernel,
                             num_layers=NUM_LAYERS, num_heads=NUM_HEADS,
                             head_dim=HEAD_DIM)
    out = pl.pallas_call(
        kern,
        out_shape=jax.ShapeDtypeStruct((nseq, seq, OUT_PAD), jnp.float32),
        grid=(nseq,),
        in_specs=[
            pl.BlockSpec((None, seq, INPUT_DIM), lambda s: (s, 0, 0)),
            pl.BlockSpec((W_ROWS, W_COLS), lambda s: (0, 0)),   # resident weights
            pl.BlockSpec((B_ROWS, W_COLS), lambda s: (0, 0)),   # resident biases/LN
        ],
        out_specs=pl.BlockSpec((None, seq, OUT_PAD), lambda s: (s, 0, 0)),
        compiler_params=pltpu.CompilerParams(
            dimension_semantics=("parallel",)),                 # v7x: 2 TCs
    )(x.astype(jnp.bfloat16), wslab, bslab)
    return out[:, :, :NUM_CLASSES]


# ----------------------------------------------------------------------------
# Parameter construction + packing (one-time weight transforms)
# ----------------------------------------------------------------------------
def init_base_params(key):
    """PyTorch-equivalent parameters in (in, out) layout, f32."""
    def nrm(k, shape, scale=0.02):
        return (scale * jax.random.normal(k, shape)).astype(jnp.float32)

    keys = jax.random.split(key, 4 + NUM_LAYERS)
    params = {
        "emb_w": nrm(keys[0], (INPUT_DIM, MODEL_DIM)),
        "emb_b": nrm(keys[1], (1, MODEL_DIM)),
        "fc_w": nrm(keys[2], (MODEL_DIM, NUM_CLASSES)),
        "fc_b": nrm(keys[3], (1, NUM_CLASSES)),
        "layers": [],
    }
    for li in range(NUM_LAYERS):
        lk = jax.random.split(keys[4 + li], 12)
        params["layers"].append({
            "wqkv": nrm(lk[0], (MODEL_DIM, 3 * MODEL_DIM)),
            "bqkv": nrm(lk[1], (1, 3 * MODEL_DIM)),
            "wo":   nrm(lk[2], (MODEL_DIM, MODEL_DIM)),
            "bo":   nrm(lk[3], (1, MODEL_DIM)),
            "ln1_g": 1.0 + nrm(lk[4], (1, MODEL_DIM)),
            "ln1_b": nrm(lk[5], (1, MODEL_DIM)),
            "w1":   nrm(lk[6], (MODEL_DIM, FF_DIM)),
            "b1":   nrm(lk[7], (1, FF_DIM)),
            "w2":   nrm(lk[8], (FF_DIM, MODEL_DIM)),
            "b2":   nrm(lk[9], (1, MODEL_DIM)),
            "ln2_g": 1.0 + nrm(lk[10], (1, MODEL_DIM)),
            "ln2_b": nrm(lk[11], (1, MODEL_DIM)),
        })
    return params


def pack_params(base):
    """Pack all matmul weights into one bf16 slab (W_ROWS x 384) and all
    biases / LayerNorm params into one f32 slab (B_ROWS x 384)."""
    D = MODEL_DIM
    wslab = jnp.zeros((W_ROWS, W_COLS), jnp.float32)
    bslab = jnp.zeros((B_ROWS, W_COLS), jnp.float32)

    def put_w(slab, row, w):
        r, c = w.shape
        return slab.at[row:row + r, 0:c].set(w)

    def put_b(slab, row, b):
        return slab.at[row:row + 1, 0:b.shape[-1]].set(b.reshape(1, -1))

    wslab = put_w(wslab, 0, base["emb_w"])
    bslab = put_b(bslab, 0, base["emb_b"])
    for li, lp in enumerate(base["layers"]):
        wb = INPUT_DIM + li * L_WROWS
        bb = 1 + li * L_BROWS
        wslab = put_w(wslab, wb,             lp["wqkv"])
        wslab = put_w(wslab, wb + D,         lp["wo"])
        wslab = put_w(wslab, wb + 2 * D,     lp["w1"])
        wslab = put_w(wslab, wb + 3 * D,     lp["w2"])
        bslab = put_b(bslab, bb,     lp["bqkv"])
        bslab = put_b(bslab, bb + 1, lp["bo"])
        bslab = put_b(bslab, bb + 2, lp["ln1_g"])
        bslab = put_b(bslab, bb + 3, lp["ln1_b"])
        bslab = put_b(bslab, bb + 4, lp["b1"])
        bslab = put_b(bslab, bb + 5, lp["b2"])
        bslab = put_b(bslab, bb + 6, lp["ln2_g"])
        bslab = put_b(bslab, bb + 7, lp["ln2_b"])
    wslab = put_w(wslab, R_FC, base["fc_w"])   # cols 4:128 stay zero (padding)
    bslab = put_b(bslab, B_FC, base["fc_b"])
    return wslab.astype(jnp.bfloat16), bslab


# ----------------------------------------------------------------------------
# Pure-JAX reference (bf16-operand / f32-accum matmuls, exact softmax & GELU)
# ----------------------------------------------------------------------------
def reference_forward(base, x):
    D, Dh = MODEL_DIM, HEAD_DIM
    h = _bdot(x, base["emb_w"]) + base["emb_b"]
    for lp in base["layers"]:
        qkv = _bdot(h, lp["wqkv"]) + lp["bqkv"]
        q = qkv[:, :D] * (1.0 / math.sqrt(Dh))
        k, v = qkv[:, D:2 * D], qkv[:, 2 * D:]
        heads = []
        for hh in range(NUM_HEADS):
            lo, hi = hh * Dh, (hh + 1) * Dh
            s = _bdot(q[:, lo:hi], k[:, lo:hi].T)
            p = jax.nn.softmax(s, axis=-1)
            heads.append(_bdot(p, v[:, lo:hi]))
        attn = _bdot(jnp.concatenate(heads, axis=-1), lp["wo"]) + lp["bo"]
        h1 = _layernorm(h + attn, lp["ln1_g"], lp["ln1_b"])
        f = jax.nn.gelu(_bdot(h1, lp["w1"]) + lp["b1"], approximate=False)
        f = _bdot(f, lp["w2"]) + lp["b2"]
        h = _layernorm(h1 + f, lp["ln2_g"], lp["ln2_b"])
    return _bdot(h, base["fc_w"]) + base["fc_b"]


# ----------------------------------------------------------------------------
if __name__ == "__main__":
    root = jax.random.PRNGKey(0)
    k_x, k_p = jax.random.split(root)

    # NUM_SEQS independent (BATCH, INPUT_DIM) forward passes, batched on the
    # kernel's "parallel" grid axis.
    x = jax.random.normal(k_x, (NUM_SEQS, BATCH, INPUT_DIM), dtype=jnp.float32)
    base = init_base_params(k_p)
    wslab, bslab = pack_params(base)

    out = jax.block_until_ready(transformer_forward(wslab, bslab, x))
    assert out.shape == (NUM_SEQS, BATCH, NUM_CLASSES)
    assert bool(jnp.all(jnp.isfinite(out)))

    ref = jnp.stack([reference_forward(base, x[s]) for s in range(NUM_SEQS)])
    err = float(jnp.max(jnp.abs(out - ref)))
    assert bool(jnp.allclose(out, ref, atol=1e-2, rtol=1e-2)), \
        f"max|diff|={err}"

    print("KERNEL_OK")
</pallas_src>

<mosaic_0001>
module attributes {stable_mosaic.version = 11 : i64} {
  func.func @fused_transformer_kernel(%arg0: i32, %arg1: memref<1x8x64xbf16, #tpu.memory_space<vmem>>, %arg2: memref<1472x384xbf16, #tpu.memory_space<vmem>>, %arg3: memref<24x384xf32, #tpu.memory_space<vmem>>, %arg4: memref<1x8x128xf32, #tpu.memory_space<vmem>>) attributes {dimension_semantics = [#tpu.dimension_semantics<parallel>], iteration_bounds = array<i64: 2>, scalar_prefetch = 0 : i64, scratch_operands = 0 : i64, tpu.core_type = #tpu.core_type<tc>, window_params = [{transform_indices = @transform_0, window_bounds = array<i64: 1, 8, 64>}, {pipeline_mode = #tpu.pipeline_mode<synchronous>, transform_indices = @transform_1, window_bounds = array<i64: 1472, 384>}, {pipeline_mode = #tpu.pipeline_mode<synchronous>, transform_indices = @transform_2, window_bounds = array<i64: 24, 384>}, {transform_indices = @transform_3, window_bounds = array<i64: 1, 8, 128>}]} {
    %c0 = arith.constant 0 : index
    %c0_0 = arith.constant 0 : index
    %c0_1 = arith.constant 0 : index
    %0 = vector.load %arg1[%c0, %c0_0, %c0_1] : memref<1x8x64xbf16, #tpu.memory_space<vmem>>, vector<1x8x64xbf16>
    %1 = vector.shape_cast %0 : vector<1x8x64xbf16> to vector<8x64xbf16>
    %c0_2 = arith.constant 0 : index
    %c0_3 = arith.constant 0 : index
    %2 = vector.load %arg2[%c0_2, %c0_3] : memref<1472x384xbf16, #tpu.memory_space<vmem>>, vector<64x128xbf16>
    %cst = arith.constant dense<0.000000e+00> : vector<8x128xf32>
    %3 = tpu.matmul %1, %2, %cst {dimension_numbers = #tpu.dot_dimension_numbers<[1], [0], [0], [1], [0, 0, 1, 1], [], []>} : vector<8x64xbf16>, vector<64x128xbf16>, vector<8x128xf32> -> vector<8x128xf32>
    %c0_4 = arith.constant 0 : index
    %c0_5 = arith.constant 0 : index
    %4 = vector.load %arg3[%c0_4, %c0_5] : memref<24x384xf32, #tpu.memory_space<vmem>>, vector<1x128xf32>
    %5 = vector.broadcast %4 : vector<1x128xf32> to vector<8x128xf32>
    %6 = arith.addf %3, %5 : vector<8x128xf32>
    %7 = arith.truncf %6 : vector<8x128xf32> to vector<8x128xbf16>
    %c64 = arith.constant 64 : index
    %c0_6 = arith.constant 0 : index
    %8 = vector.load %arg2[%c64, %c0_6] : memref<1472x384xbf16, #tpu.memory_space<vmem>>, vector<128x384xbf16>
    %cst_7 = arith.constant dense<0.000000e+00> : vector<8x384xf32>
    %9 = tpu.matmul %7, %8, %cst_7 {dimension_numbers = #tpu.dot_dimension_numbers<[1], [0], [0], [1], [0, 0, 1, 1], [], []>} : vector<8x128xbf16>, vector<128x384xbf16>, vector<8x384xf32> -> vector<8x384xf32>
    %c1 = arith.constant 1 : index
    %c0_8 = arith.constant 0 : index
    %10 = vector.load %arg3[%c1, %c0_8] : memref<24x384xf32, #tpu.memory_space<vmem>>, vector<1x384xf32>
    %11 = vector.broadcast %10 : vector<1x384xf32> to vector<8x384xf32>
    %12 = arith.addf %9, %11 : vector<8x384xf32>
    %13 = vector.extract_strided_slice %12 {offsets = [0, 0], sizes = [8, 128], strides = [1, 1]} : vector<8x384xf32> to vector<8x128xf32>
    %cst_9 = arith.constant 0.176776692 : f32
    %14 = vector.broadcast %cst_9 : f32 to vector<8x128xf32>
    %15 = arith.mulf %13, %14 : vector<8x128xf32>
    %16 = arith.truncf %15 : vector<8x128xf32> to vector<8x128xbf16>
    %17 = vector.extract_strided_slice %12 {offsets = [0, 128], sizes = [8, 128], strides = [1, 1]} : vector<8x384xf32> to vector<8x128xf32>
    %18 = arith.truncf %17 : vector<8x128xf32> to vector<8x128xbf16>
    %19 = vector.extract_strided_slice %12 {offsets = [0, 256], sizes = [8, 128], strides = [1, 1]} : vector<8x384xf32> to vector<8x128xf32>
    %20 = arith.truncf %19 : vector<8x128xf32> to vector<8x128xbf16>
    %c2 = arith.constant 2 : index
    %c0_10 = arith.constant 0 : index
    %21 = vector.load %arg3[%c2, %c0_10] : memref<24x384xf32, #tpu.memory_space<vmem>>, vector<1x128xf32>
    %22 = vector.extract_strided_slice %16 {offsets = [0, 0], sizes = [8, 32], strides = [1, 1]} : vector<8x128xbf16> to vector<8x32xbf16>
    %23 = vector.extract_strided_slice %18 {offsets = [0, 0], sizes = [8, 32], strides = [1, 1]} : vector<8x128xbf16> to vector<8x32xbf16>
    %cst_11 = arith.constant dense<0.000000e+00> : vector<8x8xf32>
    %24 = tpu.matmul %22, %23, %cst_11 {dimension_numbers = #tpu.dot_dimension_numbers<[1], [1], [0], [0], [0, 0, 1, 0], [], []>} : vector<8x32xbf16>, vector<8x32xbf16>, vector<8x8xf32> -> vector<8x8xf32>
    %cst_12 = arith.constant dense<0xFF800000> : vector<8xf32>
    %25 = vector.multi_reduction <maximumf>, %24, %cst_12 [1] : vector<8x8xf32> to vector<8xf32>
    %26 = vector.shape_cast %25 : vector<8xf32> to vector<8x1xf32>
    %27 = vector.broadcast %26 : vector<8x1xf32> to vector<8x8xf32>
    %28 = arith.subf %24, %27 : vector<8x8xf32>
    %29 = math.exp %28 : vector<8x8xf32>
    %cst_13 = arith.constant dense<0.000000e+00> : vector<8xf32>
    %30 = vector.multi_reduction <add>, %29, %cst_13 [1] : vector<8x8xf32> to vector<8xf32>
    %31 = vector.shape_cast %30 : vector<8xf32> to vector<8x1xf32>
    %32 = tpu.reciprocal %31 {approx = true} : vector<8x1xf32> -> vector<8x1xf32>
    %33 = vector.broadcast %32 : vector<8x1xf32> to vector<8x8xf32>
    %34 = arith.mulf %29, %33 : vector<8x8xf32>
    %35 = arith.truncf %34 : vector<8x8xf32> to vector<8x8xbf16>
    %36 = vector.extract_strided_slice %20 {offsets = [0, 0], sizes = [8, 32], strides = [1, 1]} : vector<8x128xbf16> to vector<8x32xbf16>
    %cst_14 = arith.constant dense<0.000000e+00> : vector<8x32xf32>
    %37 = tpu.matmul %35, %36, %cst_14 {dimension_numbers = #tpu.dot_dimension_numbers<[1], [0], [0], [1], [0, 0, 1, 1], [], []>} : vector<8x8xbf16>, vector<8x32xbf16>, vector<8x32xf32> -> vector<8x32xf32>
    %c192 = arith.constant 192 : index
    %c0_15 = arith.constant 0 : index
    %38 = vector.load %arg2[%c192, %c0_15] : memref<1472x384xbf16, #tpu.memory_space<vmem>>, vector<32x128xbf16>
    %39 = arith.truncf %37 : vector<8x32xf32> to vector<8x32xbf16>
    %cst_16 = arith.constant dense<0.000000e+00> : vector<8x128xf32>
    %40 = tpu.matmul %39, %38, %cst_16 {dimension_numbers = #tpu.dot_dimension_numbers<[1], [0], [0], [1], [0, 0, 1, 1], [], []>} : vector<8x32xbf16>, vector<32x128xbf16>, vector<8x128xf32> -> vector<8x128xf32>
    %41 = vector.broadcast %21 : vector<1x128xf32> to vector<8x128xf32>
    %42 = arith.addf %41, %40 : vector<8x128xf32>
    %43 = vector.extract_strided_slice %16 {offsets = [0, 32], sizes = [8, 32], strides = [1, 1]} : vector<8x128xbf16> to vector<8x32xbf16>
    %44 = vector.extract_strided_slice %18 {offsets = [0, 32], sizes = [8, 32], strides = [1, 1]} : vector<8x128xbf16> to vector<8x32xbf16>
    %cst_17 = arith.constant dense<0.000000e+00> : vector<8x8xf32>
    %45 = tpu.matmul %43, %44, %cst_17 {dimension_numbers = #tpu.dot_dimension_numbers<[1], [1], [0], [0], [0, 0, 1, 0], [], []>} : vector<8x32xbf16>, vector<8x32xbf16>, vector<8x8xf32> -> vector<8x8xf32>
    %cst_18 = arith.constant dense<0xFF800000> : vector<8xf32>
    %46 = vector.multi_reduction <maximumf>, %45, %cst_18 [1] : vector<8x8xf32> to vector<8xf32>
    %47 = vector.shape_cast %46 : vector<8xf32> to vector<8x1xf32>
    %48 = vector.broadcast %47 : vector<8x1xf32> to vector<8x8xf32>
    %49 = arith.subf %45, %48 : vector<8x8xf32>
    %50 = math.exp %49 : vector<8x8xf32>
    %cst_19 = arith.constant dense<0.000000e+00> : vector<8xf32>
    %51 = vector.multi_reduction <add>, %50, %cst_19 [1] : vector<8x8xf32> to vector<8xf32>
    %52 = vector.shape_cast %51 : vector<8xf32> to vector<8x1xf32>
    %53 = tpu.reciprocal %52 {approx = true} : vector<8x1xf32> -> vector<8x1xf32>
    %54 = vector.broadcast %53 : vector<8x1xf32> to vector<8x8xf32>
    %55 = arith.mulf %50, %54 : vector<8x8xf32>
    %56 = arith.truncf %55 : vector<8x8xf32> to vector<8x8xbf16>
    %57 = vector.extract_strided_slice %20 {offsets = [0, 32], sizes = [8, 32], strides = [1, 1]} : vector<8x128xbf16> to vector<8x32xbf16>
    %cst_20 = arith.constant dense<0.000000e+00> : vector<8x32xf32>
    %58 = tpu.matmul %56, %57, %cst_20 {dimension_numbers = #tpu.dot_dimension_numbers<[1], [0], [0], [1], [0, 0, 1, 1], [], []>} : vector<8x8xbf16>, vector<8x32xbf16>, vector<8x32xf32> -> vector<8x32xf32>
    %c224 = arith.constant 224 : index
    %c0_21 = arith.constant 0 : index
    %59 = vector.load %arg2[%c224, %c0_21] : memref<1472x384xbf16, #tpu.memory_space<vmem>>, vector<32x128xbf16>
    %60 = arith.truncf %58 : vector<8x32xf32> to vector<8x32xbf16>
    %cst_22 = arith.constant dense<0.000000e+00> : vector<8x128xf32>
    %61 = tpu.matmul %60, %59, %cst_22 {dimension_numbers = #tpu.dot_dimension_numbers<[1], [0], [0], [1], [0, 0, 1, 1], [], []>} : vector<8x32xbf16>, vector<32x128xbf16>, vector<8x128xf32> -> vector<8x128xf32>
    %62 = arith.addf %42, %61 : vector<8x128xf32>
    %63 = vector.extract_strided_slice %16 {offsets = [0, 64], sizes = [8, 32], strides = [1, 1]} : vector<8x128xbf16> to vector<8x32xbf16>
    %64 = vector.extract_strided_slice %18 {offsets = [0, 64], sizes = [8, 32], strides = [1, 1]} : vector<8x128xbf16> to vector<8x32xbf16>
    %cst_23 = arith.constant dense<0.000000e+00> : vector<8x8xf32>
    %65 = tpu.matmul %63, %64, %cst_23 {dimension_numbers = #tpu.dot_dimension_numbers<[1], [1], [0], [0], [0, 0, 1, 0], [], []>} : vector<8x32xbf16>, vector<8x32xbf16>, vector<8x8xf32> -> vector<8x8xf32>
    %cst_24 = arith.constant dense<0xFF800000> : vector<8xf32>
    %66 = vector.multi_reduction <maximumf>, %65, %cst_24 [1] : vector<8x8xf32> to vector<8xf32>
    %67 = vector.shape_cast %66 : vector<8xf32> to vector<8x1xf32>
    %68 = vector.broadcast %67 : vector<8x1xf32> to vector<8x8xf32>
    %69 = arith.subf %65, %68 : vector<8x8xf32>
    %70 = math.exp %69 : vector<8x8xf32>
    %cst_25 = arith.constant dense<0.000000e+00> : vector<8xf32>
    %71 = vector.multi_reduction <add>, %70, %cst_25 [1] : vector<8x8xf32> to vector<8xf32>
    %72 = vector.shape_cast %71 : vector<8xf32> to vector<8x1xf32>
    %73 = tpu.reciprocal %72 {approx = true} : vector<8x1xf32> -> vector<8x1xf32>
    %74 = vector.broadcast %73 : vector<8x1xf32> to vector<8x8xf32>
    %75 = arith.mulf %70, %74 : vector<8x8xf32>
    %76 = arith.truncf %75 : vector<8x8xf32> to vector<8x8xbf16>
    %77 = vector.extract_strided_slice %20 {offsets = [0, 64], sizes = [8, 32], strides = [1, 1]} : vector<8x128xbf16> to vector<8x32xbf16>
    %cst_26 = arith.constant dense<0.000000e+00> : vector<8x32xf32>
    %78 = tpu.matmul %76, %77, %cst_26 {dimension_numbers = #tpu.dot_dimension_numbers<[1], [0], [0], [1], [0, 0, 1, 1], [], []>} : vector<8x8xbf16>, vector<8x32xbf16>, vector<8x32xf32> -> vector<8x32xf32>
    %c256 = arith.constant 256 : index
    %c0_27 = arith.constant 0 : index
    %79 = vector.load %arg2[%c256, %c0_27] : memref<1472x384xbf16, #tpu.memory_space<vmem>>, vector<32x128xbf16>
    %80 = arith.truncf %78 : vector<8x32xf32> to vector<8x32xbf16>
    %cst_28 = arith.constant dense<0.000000e+00> : vector<8x128xf32>
    %81 = tpu.matmul %80, %79, %cst_28 {dimension_numbers = #tpu.dot_dimension_numbers<[1], [0], [0], [1], [0, 0, 1, 1], [], []>} : vector<8x32xbf16>, vector<32x128xbf16>, vector<8x128xf32> -> vector<8x128xf32>
    %82 = arith.addf %62, %81 : vector<8x128xf32>
    %83 = vector.extract_strided_slice %16 {offsets = [0, 96], sizes = [8, 32], strides = [1, 1]} : vector<8x128xbf16> to vector<8x32xbf16>
    %84 = vector.extract_strided_slice %18 {offsets = [0, 96], sizes = [8, 32], strides = [1, 1]} : vector<8x128xbf16> to vector<8x32xbf16>
    %cst_29 = arith.constant dense<0.000000e+00> : vector<8x8xf32>
    %85 = tpu.matmul %83, %84, %cst_29 {dimension_numbers = #tpu.dot_dimension_numbers<[1], [1], [0], [0], [0, 0, 1, 0], [], []>} : vector<8x32xbf16>, vector<8x32xbf16>, vector<8x8xf32> -> vector<8x8xf32>
    %cst_30 = arith.constant dense<0xFF800000> : vector<8xf32>
    %86 = vector.multi_reduction <maximumf>, %85, %cst_30 [1] : vector<8x8xf32> to vector<8xf32>
    %87 = vector.shape_cast %86 : vector<8xf32> to vector<8x1xf32>
    %88 = vector.broadcast %87 : vector<8x1xf32> to vector<8x8xf32>
    %89 = arith.subf %85, %88 : vector<8x8xf32>
    %90 = math.exp %89 : vector<8x8xf32>
    %cst_31 = arith.constant dense<0.000000e+00> : vector<8xf32>
    %91 = vector.multi_reduction <add>, %90, %cst_31 [1] : vector<8x8xf32> to vector<8xf32>
    %92 = vector.shape_cast %91 : vector<8xf32> to vector<8x1xf32>
    %93 = tpu.reciprocal %92 {approx = true} : vector<8x1xf32> -> vector<8x1xf32>
    %94 = vector.broadcast %93 : vector<8x1xf32> to vector<8x8xf32>
    %95 = arith.mulf %90, %94 : vector<8x8xf32>
    %96 = arith.truncf %95 : vector<8x8xf32> to vector<8x8xbf16>
    %97 = vector.extract_strided_slice %20 {offsets = [0, 96], sizes = [8, 32], strides = [1, 1]} : vector<8x128xbf16> to vector<8x32xbf16>
    %cst_32 = arith.constant dense<0.000000e+00> : vector<8x32xf32>
    %98 = tpu.matmul %96, %97, %cst_32 {dimension_numbers = #tpu.dot_dimension_numbers<[1], [0], [0], [1], [0, 0, 1, 1], [], []>} : vector<8x8xbf16>, vector<8x32xbf16>, vector<8x32xf32> -> vector<8x32xf32>
    %c288 = arith.constant 288 : index
    %c0_33 = arith.constant 0 : index
    %99 = vector.load %arg2[%c288, %c0_33] : memref<1472x384xbf16, #tpu.memory_space<vmem>>, vector<32x128xbf16>
    %100 = arith.truncf %98 : vector<8x32xf32> to vector<8x32xbf16>
    %cst_34 = arith.constant dense<0.000000e+00> : vector<8x128xf32>
    %101 = tpu.matmul %100, %99, %cst_34 {dimension_numbers = #tpu.dot_dimension_numbers<[1], [0], [0], [1], [0, 0, 1, 1], [], []>} : vector<8x32xbf16>, vector<32x128xbf16>, vector<8x128xf32> -> vector<8x128xf32>
    %102 = arith.addf %82, %101 : vector<8x128xf32>
    %103 = arith.addf %6, %102 : vector<8x128xf32>
    %c3 = arith.constant 3 : index
    %c0_35 = arith.constant 0 : index
    %104 = vector.load %arg3[%c3, %c0_35] : memref<24x384xf32, #tpu.memory_space<vmem>>, vector<1x128xf32>
    %c4 = arith.constant 4 : index
    %c0_36 = arith.constant 0 : index
    %105 = vector.load %arg3[%c4, %c0_36] : memref<24x384xf32, #tpu.memory_space<vmem>>, vector<1x128xf32>
    %cst_37 = arith.constant dense<0.000000e+00> : vector<8xf32>
    %106 = vector.multi_reduction <add>, %103, %cst_37 [1] : vector<8x128xf32> to vector<8xf32>
    %107 = vector.shape_cast %106 : vector<8xf32> to vector<8x1xf32>
    %cst_38 = arith.constant 1.280000e+02 : f32
    %108 = vector.broadcast %cst_38 : f32 to vector<8x1xf32>
    %109 = arith.divf %107, %108 : vector<8x1xf32>
    %110 = vector.broadcast %109 : vector<8x1xf32> to vector<8x128xf32>
    %111 = arith.subf %103, %110 : vector<8x128xf32>
    %112 = arith.mulf %111, %111 : vector<8x128xf32>
    %cst_39 = arith.constant dense<0.000000e+00> : vector<8xf32>
    %113 = vector.multi_reduction <add>, %112, %cst_39 [1] : vector<8x128xf32> to vector<8xf32>
    %114 = vector.shape_cast %113 : vector<8xf32> to vector<8x1xf32>
    %cst_40 = arith.constant 1.280000e+02 : f32
    %115 = vector.broadcast %cst_40 : f32 to vector<8x1xf32>
    %116 = arith.divf %114, %115 : vector<8x1xf32>
    %117 = vector.broadcast %109 : vector<8x1xf32> to vector<8x128xf32>
    %118 = arith.subf %103, %117 : vector<8x128xf32>
    %cst_41 = arith.constant 9.99999974E-6 : f32
    %119 = vector.broadcast %cst_41 : f32 to vector<8x1xf32>
    %120 = arith.addf %116, %119 : vector<8x1xf32>
    %121 = math.rsqrt %120 : vector<8x1xf32>
    %122 = vector.broadcast %121 : vector<8x1xf32> to vector<8x128xf32>
    %123 = arith.mulf %118, %122 : vector<8x128xf32>
    %124 = vector.broadcast %104 : vector<1x128xf32> to vector<8x128xf32>
    %125 = arith.mulf %123, %124 : vector<8x128xf32>
    %126 = vector.broadcast %105 : vector<1x128xf32> to vector<8x128xf32>
    %127 = arith.addf %125, %126 : vector<8x128xf32>
    %128 = arith.truncf %127 : vector<8x128xf32> to vector<8x128xbf16>
    %c320 = arith.constant 320 : index
    %c0_42 = arith.constant 0 : index
    %129 = vector.load %arg2[%c320, %c0_42] : memref<1472x384xbf16, #tpu.memory_space<vmem>>, vector<128x256xbf16>
    %cst_43 = arith.constant dense<0.000000e+00> : vector<8x256xf32>
    %130 = tpu.matmul %128, %129, %cst_43 {dimension_numbers = #tpu.dot_dimension_numbers<[1], [0], [0], [1], [0, 0, 1, 1], [], []>} : vector<8x128xbf16>, vector<128x256xbf16>, vector<8x256xf32> -> vector<8x256xf32>
    %c5 = arith.constant 5 : index
    %c0_44 = arith.constant 0 : index
    %131 = vector.load %arg3[%c5, %c0_44] : memref<24x384xf32, #tpu.memory_space<vmem>>, vector<1x256xf32>
    %132 = vector.broadcast %131 : vector<1x256xf32> to vector<8x256xf32>
    %133 = arith.addf %130, %132 : vector<8x256xf32>
    %cst_45 = arith.constant 5.000000e-01 : f32
    %134 = vector.broadcast %cst_45 : f32 to vector<8x256xf32>
    %135 = arith.mulf %134, %133 : vector<8x256xf32>
    %cst_46 = arith.constant 4.471500e-02 : f32
    %136 = vector.broadcast %cst_46 : f32 to vector<8x256xf32>
    %137 = arith.mulf %136, %133 : vector<8x256xf32>
    %138 = arith.mulf %137, %133 : vector<8x256xf32>
    %139 = arith.mulf %138, %133 : vector<8x256xf32>
    %140 = arith.addf %133, %139 : vector<8x256xf32>
    %cst_47 = arith.constant 0.797884583 : f32
    %141 = vector.broadcast %cst_47 : f32 to vector<8x256xf32>
    %142 = arith.mulf %141, %140 : vector<8x256xf32>
    %143 = math.tanh %142 : vector<8x256xf32>
    %cst_48 = arith.constant 1.000000e+00 : f32
    %144 = vector.broadcast %cst_48 : f32 to vector<8x256xf32>
    %145 = arith.addf %144, %143 : vector<8x256xf32>
    %146 = arith.mulf %135, %145 : vector<8x256xf32>
    %147 = arith.truncf %146 : vector<8x256xf32> to vector<8x256xbf16>
    %c448 = arith.constant 448 : index
    %c0_49 = arith.constant 0 : index
    %148 = vector.load %arg2[%c448, %c0_49] : memref<1472x384xbf16, #tpu.memory_space<vmem>>, vector<256x128xbf16>
    %cst_50 = arith.constant dense<0.000000e+00> : vector<8x128xf32>
    %149 = tpu.matmul %147, %148, %cst_50 {dimension_numbers = #tpu.dot_dimension_numbers<[1], [0], [0], [1], [0, 0, 1, 1], [], []>} : vector<8x256xbf16>, vector<256x128xbf16>, vector<8x128xf32> -> vector<8x128xf32>
    %c6 = arith.constant 6 : index
    %c0_51 = arith.constant 0 : index
    %150 = vector.load %arg3[%c6, %c0_51] : memref<24x384xf32, #tpu.memory_space<vmem>>, vector<1x128xf32>
    %151 = vector.broadcast %150 : vector<1x128xf32> to vector<8x128xf32>
    %152 = arith.addf %149, %151 : vector<8x128xf32>
    %153 = arith.addf %127, %152 : vector<8x128xf32>
    %c7 = arith.constant 7 : index
    %c0_52 = arith.constant 0 : index
    %154 = vector.load %arg3[%c7, %c0_52] : memref<24x384xf32, #tpu.memory_space<vmem>>, vector<1x128xf32>
    %c8 = arith.constant 8 : index
    %c0_53 = arith.constant 0 : index
    %155 = vector.load %arg3[%c8, %c0_53] : memref<24x384xf32, #tpu.memory_space<vmem>>, vector<1x128xf32>
    %cst_54 = arith.constant dense<0.000000e+00> : vector<8xf32>
    %156 = vector.multi_reduction <add>, %153, %cst_54 [1] : vector<8x128xf32> to vector<8xf32>
    %157 = vector.shape_cast %156 : vector<8xf32> to vector<8x1xf32>
    %cst_55 = arith.constant 1.280000e+02 : f32
    %158 = vector.broadcast %cst_55 : f32 to vector<8x1xf32>
    %159 = arith.divf %157, %158 : vector<8x1xf32>
    %160 = vector.broadcast %159 : vector<8x1xf32> to vector<8x128xf32>
    %161 = arith.subf %153, %160 : vector<8x128xf32>
    %162 = arith.mulf %161, %161 : vector<8x128xf32>
    %cst_56 = arith.constant dense<0.000000e+00> : vector<8xf32>
    %163 = vector.multi_reduction <add>, %162, %cst_56 [1] : vector<8x128xf32> to vector<8xf32>
    %164 = vector.shape_cast %163 : vector<8xf32> to vector<8x1xf32>
    %cst_57 = arith.constant 1.280000e+02 : f32
    %165 = vector.broadcast %cst_57 : f32 to vector<8x1xf32>
    %166 = arith.divf %164, %165 : vector<8x1xf32>
    %167 = vector.broadcast %159 : vector<8x1xf32> to vector<8x128xf32>
    %168 = arith.subf %153, %167 : vector<8x128xf32>
    %cst_58 = arith.constant 9.99999974E-6 : f32
    %169 = vector.broadcast %cst_58 : f32 to vector<8x1xf32>
    %170 = arith.addf %166, %169 : vector<8x1xf32>
    %171 = math.rsqrt %170 : vector<8x1xf32>
    %172 = vector.broadcast %171 : vector<8x1xf32> to vector<8x128xf32>
    %173 = arith.mulf %168, %172 : vector<8x128xf32>
    %174 = vector.broadcast %154 : vector<1x128xf32> to vector<8x128xf32>
    %175 = arith.mulf %173, %174 : vector<8x128xf32>
    %176 = vector.broadcast %155 : vector<1x128xf32> to vector<8x128xf32>
    %177 = arith.addf %175, %176 : vector<8x128xf32>
    %178 = arith.truncf %177 : vector<8x128xf32> to vector<8x128xbf16>
    %c704 = arith.constant 704 : index
    %c0_59 = arith.constant 0 : index
    %179 = vector.load %arg2[%c704, %c0_59] : memref<1472x384xbf16, #tpu.memory_space<vmem>>, vector<128x384xbf16>
    %cst_60 = arith.constant dense<0.000000e+00> : vector<8x384xf32>
    %180 = tpu.matmul %178, %179, %cst_60 {dimension_numbers = #tpu.dot_dimension_numbers<[1], [0], [0], [1], [0, 0, 1, 1], [], []>} : vector<8x128xbf16>, vector<128x384xbf16>, vector<8x384xf32> -> vector<8x384xf32>
    %c9 = arith.constant 9 : index
    %c0_61 = arith.constant 0 : index
    %181 = vector.load %arg3[%c9, %c0_61] : memref<24x384xf32, #tpu.memory_space<vmem>>, vector<1x384xf32>
    %182 = vector.broadcast %181 : vector<1x384xf32> to vector<8x384xf32>
    %183 = arith.addf %180, %182 : vector<8x384xf32>
    %184 = vector.extract_strided_slice %183 {offsets = [0, 0], sizes = [8, 128], strides = [1, 1]} : vector<8x384xf32> to vector<8x128xf32>
    %cst_62 = arith.constant 0.176776692 : f32
    %185 = vector.broadcast %cst_62 : f32 to vector<8x128xf32>
    %186 = arith.mulf %184, %185 : vector<8x128xf32>
    %187 = arith.truncf %186 : vector<8x128xf32> to vector<8x128xbf16>
    %188 = vector.extract_strided_slice %183 {offsets = [0, 128], sizes = [8, 128], strides = [1, 1]} : vector<8x384xf32> to vector<8x128xf32>
    %189 = arith.truncf %188 : vector<8x128xf32> to vector<8x128xbf16>
    %190 = vector.extract_strided_slice %183 {offsets = [0, 256], sizes = [8, 128], strides = [1, 1]} : vector<8x384xf32> to vector<8x128xf32>
    %191 = arith.truncf %190 : vector<8x128xf32> to vector<8x128xbf16>
    %c10 = arith.constant 10 : index
    %c0_63 = arith.constant 0 : index
    %192 = vector.load %arg3[%c10, %c0_63] : memref<24x384xf32, #tpu.memory_space<vmem>>, vector<1x128xf32>
    %193 = vector.extract_strided_slice %187 {offsets = [0, 0], sizes = [8, 32], strides = [1, 1]} : vector<8x128xbf16> to vector<8x32xbf16>
    %194 = vector.extract_strided_slice %189 {offsets = [0, 0], sizes = [8, 32], strides = [1, 1]} : vector<8x128xbf16> to vector<8x32xbf16>
    %cst_64 = arith.constant dense<0.000000e+00> : vector<8x8xf32>
    %195 = tpu.matmul %193, %194, %cst_64 {dimension_numbers = #tpu.dot_dimension_numbers<[1], [1], [0], [0], [0, 0, 1, 0], [], []>} : vector<8x32xbf16>, vector<8x32xbf16>, vector<8x8xf32> -> vector<8x8xf32>
    %cst_65 = arith.constant dense<0xFF800000> : vector<8xf32>
    %196 = vector.multi_reduction <maximumf>, %195, %cst_65 [1] : vector<8x8xf32> to vector<8xf32>
    %197 = vector.shape_cast %196 : vector<8xf32> to vector<8x1xf32>
    %198 = vector.broadcast %197 : vector<8x1xf32> to vector<8x8xf32>
    %199 = arith.subf %195, %198 : vector<8x8xf32>
    %200 = math.exp %199 : vector<8x8xf32>
    %cst_66 = arith.constant dense<0.000000e+00> : vector<8xf32>
    %201 = vector.multi_reduction <add>, %200, %cst_66 [1] : vector<8x8xf32> to vector<8xf32>
    %202 = vector.shape_cast %201 : vector<8xf32> to vector<8x1xf32>
    %203 = tpu.reciprocal %202 {approx = true} : vector<8x1xf32> -> vector<8x1xf32>
    %204 = vector.broadcast %203 : vector<8x1xf32> to vector<8x8xf32>
    %205 = arith.mulf %200, %204 : vector<8x8xf32>
    %206 = arith.truncf %205 : vector<8x8xf32> to vector<8x8xbf16>
    %207 = vector.extract_strided_slice %191 {offsets = [0, 0], sizes = [8, 32], strides = [1, 1]} : vector<8x128xbf16> to vector<8x32xbf16>
    %cst_67 = arith.constant dense<0.000000e+00> : vector<8x32xf32>
    %208 = tpu.matmul %206, %207, %cst_67 {dimension_numbers = #tpu.dot_dimension_numbers<[1], [0], [0], [1], [0, 0, 1, 1], [], []>} : vector<8x8xbf16>, vector<8x32xbf16>, vector<8x32xf32> -> vector<8x32xf32>
    %c832 = arith.constant 832 : index
    %c0_68 = arith.constant 0 : index
    %209 = vector.load %arg2[%c832, %c0_68] : memref<1472x384xbf16, #tpu.memory_space<vmem>>, vector<32x128xbf16>
    %210 = arith.truncf %208 : vector<8x32xf32> to vector<8x32xbf16>
    %cst_69 = arith.constant dense<0.000000e+00> : vector<8x128xf32>
    %211 = tpu.matmul %210, %209, %cst_69 {dimension_numbers = #tpu.dot_dimension_numbers<[1], [0], [0], [1], [0, 0, 1, 1], [], []>} : vector<8x32xbf16>, vector<32x128xbf16>, vector<8x128xf32> -> vector<8x128xf32>
    %212 = vector.broadcast %192 : vector<1x128xf32> to vector<8x128xf32>
    %213 = arith.addf %212, %211 : vector<8x128xf32>
    %214 = vector.extract_strided_slice %187 {offsets = [0, 32], sizes = [8, 32], strides = [1, 1]} : vector<8x128xbf16> to vector<8x32xbf16>
    %215 = vector.extract_strided_slice %189 {offsets = [0, 32], sizes = [8, 32], strides = [1, 1]} : vector<8x128xbf16> to vector<8x32xbf16>
    %cst_70 = arith.constant dense<0.000000e+00> : vector<8x8xf32>
    %216 = tpu.matmul %214, %215, %cst_70 {dimension_numbers = #tpu.dot_dimension_numbers<[1], [1], [0], [0], [0, 0, 1, 0], [], []>} : vector<8x32xbf16>, vector<8x32xbf16>, vector<8x8xf32> -> vector<8x8xf32>
    %cst_71 = arith.constant dense<0xFF800000> : vector<8xf32>
    %217 = vector.multi_reduction <maximumf>, %216, %cst_71 [1] : vector<8x8xf32> to vector<8xf32>
    %218 = vector.shape_cast %217 : vector<8xf32> to vector<8x1xf32>
    %219 = vector.broadcast %218 : vector<8x1xf32> to vector<8x8xf32>
    %220 = arith.subf %216, %219 : vector<8x8xf32>
    %221 = math.exp %220 : vector<8x8xf32>
    %cst_72 = arith.constant dense<0.000000e+00> : vector<8xf32>
    %222 = vector.multi_reduction <add>, %221, %cst_72 [1] : vector<8x8xf32> to vector<8xf32>
    %223 = vector.shape_cast %222 : vector<8xf32> to vector<8x1xf32>
    %224 = tpu.reciprocal %223 {approx = true} : vector<8x1xf32> -> vector<8x1xf32>
    %225 = vector.broadcast %224 : vector<8x1xf32> to vector<8x8xf32>
    %226 = arith.mulf %221, %225 : vector<8x8xf32>
    %227 = arith.truncf %226 : vector<8x8xf32> to vector<8x8xbf16>
    %228 = vector.extract_strided_slice %191 {offsets = [0, 32], sizes = [8, 32], strides = [1, 1]} : vector<8x128xbf16> to vector<8x32xbf16>
    %cst_73 = arith.constant dense<0.000000e+00> : vector<8x32xf32>
    %229 = tpu.matmul %227, %228, %cst_73 {dimension_numbers = #tpu.dot_dimension_numbers<[1], [0], [0], [1], [0, 0, 1, 1], [], []>} : vector<8x8xbf16>, vector<8x32xbf16>, vector<8x32xf32> -> vector<8x32xf32>
    %c864 = arith.constant 864 : index
    %c0_74 = arith.constant 0 : index
    %230 = vector.load %arg2[%c864, %c0_74] : memref<1472x384xbf16, #tpu.memory_space<vmem>>, vector<32x128xbf16>
    %231 = arith.truncf %229 : vector<8x32xf32> to vector<8x32xbf16>
    %cst_75 = arith.constant dense<0.000000e+00> : vector<8x128xf32>
    %232 = tpu.matmul %231, %230, %cst_75 {dimension_numbers = #tpu.dot_dimension_numbers<[1], [0], [0], [1], [0, 0, 1, 1], [], []>} : vector<8x32xbf16>, vector<32x128xbf16>, vector<8x128xf32> -> vector<8x128xf32>
    %233 = arith.addf %213, %232 : vector<8x128xf32>
    %234 = vector.extract_strided_slice %187 {offsets = [0, 64], sizes = [8, 32], strides = [1, 1]} : vector<8x128xbf16> to vector<8x32xbf16>
    %235 = vector.extract_strided_slice %189 {offsets = [0, 64], sizes = [8, 32], strides = [1, 1]} : vector<8x128xbf16> to vector<8x32xbf16>
    %cst_76 = arith.constant dense<0.000000e+00> : vector<8x8xf32>
    %236 = tpu.matmul %234, %235, %cst_76 {dimension_numbers = #tpu.dot_dimension_numbers<[1], [1], [0], [0], [0, 0, 1, 0], [], []>} : vector<8x32xbf16>, vector<8x32xbf16>, vector<8x8xf32> -> vector<8x8xf32>
    %cst_77 = arith.constant dense<0xFF800000> : vector<8xf32>
    %237 = vector.multi_reduction <maximumf>, %236, %cst_77 [1] : vector<8x8xf32> to vector<8xf32>
    %238 = vector.shape_cast %237 : vector<8xf32> to vector<8x1xf32>
    %239 = vector.broadcast %238 : vector<8x1xf32> to vector<8x8xf32>
    %240 = arith.subf %236, %239 : vector<8x8xf32>
    %241 = math.exp %240 : vector<8x8xf32>
    %cst_78 = arith.constant dense<0.000000e+00> : vector<8xf32>
    %242 = vector.multi_reduction <add>, %241, %cst_78 [1] : vector<8x8xf32> to vector<8xf32>
    %243 = vector.shape_cast %242 : vector<8xf32> to vector<8x1xf32>
    %244 = tpu.reciprocal %243 {approx = true} : vector<8x1xf32> -> vector<8x1xf32>
    %245 = vector.broadcast %244 : vector<8x1xf32> to vector<8x8xf32>
    %246 = arith.mulf %241, %245 : vector<8x8xf32>
    %247 = arith.truncf %246 : vector<8x8xf32> to vector<8x8xbf16>
    %248 = vector.extract_strided_slice %191 {offsets = [0, 64], sizes = [8, 32], strides = [1, 1]} : vector<8x128xbf16> to vector<8x32xbf16>
    %cst_79 = arith.constant dense<0.000000e+00> : vector<8x32xf32>
    %249 = tpu.matmul %247, %248, %cst_79 {dimension_numbers = #tpu.dot_dimension_numbers<[1], [0], [0], [1], [0, 0, 1, 1], [], []>} : vector<8x8xbf16>, vector<8x32xbf16>, vector<8x32xf32> -> vector<8x32xf32>
    %c896 = arith.constant 896 : index
    %c0_80 = arith.constant 0 : index
    %250 = vector.load %arg2[%c896, %c0_80] : memref<1472x384xbf16, #tpu.memory_space<vmem>>, vector<32x128xbf16>
    %251 = arith.truncf %249 : vector<8x32xf32> to vector<8x32xbf16>
    %cst_81 = arith.constant dense<0.000000e+00> : vector<8x128xf32>
    %252 = tpu.matmul %251, %250, %cst_81 {dimension_numbers = #tpu.dot_dimension_numbers<[1], [0], [0], [1], [0, 0, 1, 1], [], []>} : vector<8x32xbf16>, vector<32x128xbf16>, vector<8x128xf32> -> vector<8x128xf32>
    %253 = arith.addf %233, %252 : vector<8x128xf32>
    %254 = vector.extract_strided_slice %187 {offsets = [0, 96], sizes = [8, 32], strides = [1, 1]} : vector<8x128xbf16> to vector<8x32xbf16>
    %255 = vector.extract_strided_slice %189 {offsets = [0, 96], sizes = [8, 32], strides = [1, 1]} : vector<8x128xbf16> to vector<8x32xbf16>
    %cst_82 = arith.constant dense<0.000000e+00> : vector<8x8xf32>
    %256 = tpu.matmul %254, %255, %cst_82 {dimension_numbers = #tpu.dot_dimension_numbers<[1], [1], [0], [0], [0, 0, 1, 0], [], []>} : vector<8x32xbf16>, vector<8x32xbf16>, vector<8x8xf32> -> vector<8x8xf32>
    %cst_83 = arith.constant dense<0xFF800000> : vector<8xf32>
    %257 = vector.multi_reduction <maximumf>, %256, %cst_83 [1] : vector<8x8xf32> to vector<8xf32>
    %258 = vector.shape_cast %257 : vector<8xf32> to vector<8x1xf32>
    %259 = vector.broadcast %258 : vector<8x1xf32> to vector<8x8xf32>
    %260 = arith.subf %256, %259 : vector<8x8xf32>
    %261 = math.exp %260 : vector<8x8xf32>
    %cst_84 = arith.constant dense<0.000000e+00> : vector<8xf32>
    %262 = vector.multi_reduction <add>, %261, %cst_84 [1] : vector<8x8xf32> to vector<8xf32>
    %263 = vector.shape_cast %262 : vector<8xf32> to vector<8x1xf32>
    %264 = tpu.reciprocal %263 {approx = true} : vector<8x1xf32> -> vector<8x1xf32>
    %265 = vector.broadcast %264 : vector<8x1xf32> to vector<8x8xf32>
    %266 = arith.mulf %261, %265 : vector<8x8xf32>
    %267 = arith.truncf %266 : vector<8x8xf32> to vector<8x8xbf16>
    %268 = vector.extract_strided_slice %191 {offsets = [0, 96], sizes = [8, 32], strides = [1, 1]} : vector<8x128xbf16> to vector<8x32xbf16>
    %cst_85 = arith.constant dense<0.000000e+00> : vector<8x32xf32>
    %269 = tpu.matmul %267, %268, %cst_85 {dimension_numbers = #tpu.dot_dimension_numbers<[1], [0], [0], [1], [0, 0, 1, 1], [], []>} : vector<8x8xbf16>, vector<8x32xbf16>, vector<8x32xf32> -> vector<8x32xf32>
    %c928 = arith.constant 928 : index
    %c0_86 = arith.constant 0 : index
    %270 = vector.load %arg2[%c928, %c0_86] : memref<1472x384xbf16, #tpu.memory_space<vmem>>, vector<32x128xbf16>
    %271 = arith.truncf %269 : vector<8x32xf32> to vector<8x32xbf16>
    %cst_87 = arith.constant dense<0.000000e+00> : vector<8x128xf32>
    %272 = tpu.matmul %271, %270, %cst_87 {dimension_numbers = #tpu.dot_dimension_numbers<[1], [0], [0], [1], [0, 0, 1, 1], [], []>} : vector<8x32xbf16>, vector<32x128xbf16>, vector<8x128xf32> -> vector<8x128xf32>
    %273 = arith.addf %253, %272 : vector<8x128xf32>
    %274 = arith.addf %177, %273 : vector<8x128xf32>
    %c11 = arith.constant 11 : index
    %c0_88 = arith.constant 0 : index
    %275 = vector.load %arg3[%c11, %c0_88] : memref<24x384xf32, #tpu.memory_space<vmem>>, vector<1x128xf32>
    %c12 = arith.constant 12 : index
    %c0_89 = arith.constant 0 : index
    %276 = vector.load %arg3[%c12, %c0_89] : memref<24x384xf32, #tpu.memory_space<vmem>>, vector<1x128xf32>
    %cst_90 = arith.constant dense<0.000000e+00> : vector<8xf32>
    %277 = vector.multi_reduction <add>, %274, %cst_90 [1] : vector<8x128xf32> to vector<8xf32>
    %278 = vector.shape_cast %277 : vector<8xf32> to vector<8x1xf32>
    %cst_91 = arith.constant 1.280000e+02 : f32
    %279 = vector.broadcast %cst_91 : f32 to vector<8x1xf32>
    %280 = arith.divf %278, %279 : vector<8x1xf32>
    %281 = vector.broadcast %280 : vector<8x1xf32> to vector<8x128xf32>
    %282 = arith.subf %274, %281 : vector<8x128xf32>
    %283 = arith.mulf %282, %282 : vector<8x128xf32>
    %cst_92 = arith.constant dense<0.000000e+00> : vector<8xf32>
    %284 = vector.multi_reduction <add>, %283, %cst_92 [1] : vector<8x128xf32> to vector<8xf32>
    %285 = vector.shape_cast %284 : vector<8xf32> to vector<8x1xf32>
    %cst_93 = arith.constant 1.280000e+02 : f32
    %286 = vector.broadcast %cst_93 : f32 to vector<8x1xf32>
    %287 = arith.divf %285, %286 : vector<8x1xf32>
    %288 = vector.broadcast %280 : vector<8x1xf32> to vector<8x128xf32>
    %289 = arith.subf %274, %288 : vector<8x128xf32>
    %cst_94 = arith.constant 9.99999974E-6 : f32
    %290 = vector.broadcast %cst_94 : f32 to vector<8x1xf32>
    %291 = arith.addf %287, %290 : vector<8x1xf32>
    %292 = math.rsqrt %291 : vector<8x1xf32>
    %293 = vector.broadcast %292 : vector<8x1xf32> to vector<8x128xf32>
    %294 = arith.mulf %289, %293 : vector<8x128xf32>
    %295 = vector.broadcast %275 : vector<1x128xf32> to vector<8x128xf32>
    %296 = arith.mulf %294, %295 : vector<8x128xf32>
    %297 = vector.broadcast %276 : vector<1x128xf32> to vector<8x128xf32>
    %298 = arith.addf %296, %297 : vector<8x128xf32>
    %299 = arith.truncf %298 : vector<8x128xf32> to vector<8x128xbf16>
    %c960 = arith.constant 960 : index
    %c0_95 = arith.constant 0 : index
    %300 = vector.load %arg2[%c960, %c0_95] : memref<1472x384xbf16, #tpu.memory_space<vmem>>, vector<128x256xbf16>
    %cst_96 = arith.constant dense<0.000000e+00> : vector<8x256xf32>
    %301 = tpu.matmul %299, %300, %cst_96 {dimension_numbers = #tpu.dot_dimension_numbers<[1], [0], [0], [1], [0, 0, 1, 1], [], []>} : vector<8x128xbf16>, vector<128x256xbf16>, vector<8x256xf32> -> vector<8x256xf32>
    %c13 = arith.constant 13 : index
    %c0_97 = arith.constant 0 : index
    %302 = vector.load %arg3[%c13, %c0_97] : memref<24x384xf32, #tpu.memory_space<vmem>>, vector<1x256xf32>
    %303 = vector.broadcast %302 : vector<1x256xf32> to vector<8x256xf32>
    %304 = arith.addf %301, %303 : vector<8x256xf32>
    %cst_98 = arith.constant 5.000000e-01 : f32
    %305 = vector.broadcast %cst_98 : f32 to vector<8x256xf32>
    %306 = arith.mulf %305, %304 : vector<8x256xf32>
    %cst_99 = arith.constant 4.471500e-02 : f32
    %307 = vector.broadcast %cst_99 : f32 to vector<8x256xf32>
    %308 = arith.mulf %307, %304 : vector<8x256xf32>
    %309 = arith.mulf %308, %304 : vector<8x256xf32>
    %310 = arith.mulf %309, %304 : vector<8x256xf32>
    %311 = arith.addf %304, %310 : vector<8x256xf32>
    %cst_100 = arith.constant 0.797884583 : f32
    %312 = vector.broadcast %cst_100 : f32 to vector<8x256xf32>
    %313 = arith.mulf %312, %311 : vector<8x256xf32>
    %314 = math.tanh %313 : vector<8x256xf32>
    %cst_101 = arith.constant 1.000000e+00 : f32
    %315 = vector.broadcast %cst_101 : f32 to vector<8x256xf32>
    %316 = arith.addf %315, %314 : vector<8x256xf32>
    %317 = arith.mulf %306, %316 : vector<8x256xf32>
    %318 = arith.truncf %317 : vector<8x256xf32> to vector<8x256xbf16>
    %c1088 = arith.constant 1088 : index
    %c0_102 = arith.constant 0 : index
    %319 = vector.load %arg2[%c1088, %c0_102] : memref<1472x384xbf16, #tpu.memory_space<vmem>>, vector<256x128xbf16>
    %cst_103 = arith.constant dense<0.000000e+00> : vector<8x128xf32>
    %320 = tpu.matmul %318, %319, %cst_103 {dimension_numbers = #tpu.dot_dimension_numbers<[1], [0], [0], [1], [0, 0, 1, 1], [], []>} : vector<8x256xbf16>, vector<256x128xbf16>, vector<8x128xf32> -> vector<8x128xf32>
    %c14 = arith.constant 14 : index
    %c0_104 = arith.constant 0 : index
    %321 = vector.load %arg3[%c14, %c0_104] : memref<24x384xf32, #tpu.memory_space<vmem>>, vector<1x128xf32>
    %322 = vector.broadcast %321 : vector<1x128xf32> to vector<8x128xf32>
    %323 = arith.addf %320, %322 : vector<8x128xf32>
    %324 = arith.addf %298, %323 : vector<8x128xf32>
    %c15 = arith.constant 15 : index
    %c0_105 = arith.constant 0 : index
    %325 = vector.load %arg3[%c15, %c0_105] : memref<24x384xf32, #tpu.memory_space<vmem>>, vector<1x128xf32>
    %c16 = arith.constant 16 : index
    %c0_106 = arith.constant 0 : index
    %326 = vector.load %arg3[%c16, %c0_106] : memref<24x384xf32, #tpu.memory_space<vmem>>, vector<1x128xf32>
    %cst_107 = arith.constant dense<0.000000e+00> : vector<8xf32>
    %327 = vector.multi_reduction <add>, %324, %cst_107 [1] : vector<8x128xf32> to vector<8xf32>
    %328 = vector.shape_cast %327 : vector<8xf32> to vector<8x1xf32>
    %cst_108 = arith.constant 1.280000e+02 : f32
    %329 = vector.broadcast %cst_108 : f32 to vector<8x1xf32>
    %330 = arith.divf %328, %329 : vector<8x1xf32>
    %331 = vector.broadcast %330 : vector<8x1xf32> to vector<8x128xf32>
    %332 = arith.subf %324, %331 : vector<8x128xf32>
    %333 = arith.mulf %332, %332 : vector<8x128xf32>
    %cst_109 = arith.constant dense<0.000000e+00> : vector<8xf32>
    %334 = vector.multi_reduction <add>, %333, %cst_109 [1] : vector<8x128xf32> to vector<8xf32>
    %335 = vector.shape_cast %334 : vector<8xf32> to vector<8x1xf32>
    %cst_110 = arith.constant 1.280000e+02 : f32
    %336 = vector.broadcast %cst_110 : f32 to vector<8x1xf32>
    %337 = arith.divf %335, %336 : vector<8x1xf32>
    %338 = vector.broadcast %330 : vector<8x1xf32> to vector<8x128xf32>
    %339 = arith.subf %324, %338 : vector<8x128xf32>
    %cst_111 = arith.constant 9.99999974E-6 : f32
    %340 = vector.broadcast %cst_111 : f32 to vector<8x1xf32>
    %341 = arith.addf %337, %340 : vector<8x1xf32>
    %342 = math.rsqrt %341 : vector<8x1xf32>
    %343 = vector.broadcast %342 : vector<8x1xf32> to vector<8x128xf32>
    %344 = arith.mulf %339, %343 : vector<8x128xf32>
    %345 = vector.broadcast %325 : vector<1x128xf32> to vector<8x128xf32>
    %346 = arith.mulf %344, %345 : vector<8x128xf32>
    %347 = vector.broadcast %326 : vector<1x128xf32> to vector<8x128xf32>
    %348 = arith.addf %346, %347 : vector<8x128xf32>
    %349 = arith.truncf %348 : vector<8x128xf32> to vector<8x128xbf16>
    %c1344 = arith.constant 1344 : index
    %c0_112 = arith.constant 0 : index
    %350 = vector.load %arg2[%c1344, %c0_112] : memref<1472x384xbf16, #tpu.memory_space<vmem>>, vector<128x128xbf16>
    %cst_113 = arith.constant dense<0.000000e+00> : vector<8x128xf32>
    %351 = tpu.matmul %349, %350, %cst_113 {dimension_numbers = #tpu.dot_dimension_numbers<[1], [0], [0], [1], [0, 0, 1, 1], [], []>} : vector<8x128xbf16>, vector<128x128xbf16>, vector<8x128xf32> -> vector<8x128xf32>
    %c17 = arith.constant 17 : index
    %c0_114 = arith.constant 0 : index
    %352 = vector.load %arg3[%c17, %c0_114] : memref<24x384xf32, #tpu.memory_space<vmem>>, vector<1x128xf32>
    %353 = vector.broadcast %352 : vector<1x128xf32> to vector<8x128xf32>
    %354 = arith.addf %351, %353 : vector<8x128xf32>
    %c0_115 = arith.constant 0 : index
    %c0_116 = arith.constant 0 : index
    %c0_117 = arith.constant 0 : index
    %355 = vector.load %arg4[%c0_115, %c0_116, %c0_117] : memref<1x8x128xf32, #tpu.memory_space<vmem>>, vector<1x8x128xf32>
    %356 = vector.shape_cast %355 : vector<1x8x128xf32> to vector<8x128xf32>
    %357 = vector.shape_cast %354 : vector<8x128xf32> to vector<1x8x128xf32>
    tpu.vector_store %arg4[%c0_115, %c0_116, %c0_117], %357 {strides = array<i32>} : memref<1x8x128xf32, #tpu.memory_space<vmem>>, vector<1x8x128xf32>,
    return
  }
  func.func @transform_0(%arg0: i32) -> (i32, i32, i32) {
    %c0_i32 = arith.constant 0 : i32
    %c0_i32_0 = arith.constant 0 : i32
    %c0_i32_1 = arith.constant 0 : i32
    return %arg0, %c0_i32, %c0_i32_0 : i32, i32, i32
  }
  func.func @transform_1(%arg0: i32) -> (i32, i32) {
    %c0_i32 = arith.constant 0 : i32
    %c0_i32_0 = arith.constant 0 : i32
    %c0_i32_1 = arith.constant 0 : i32
    return %c0_i32, %c0_i32_0 : i32, i32
  }
  func.func @transform_2(%arg0: i32) -> (i32, i32) {
    %c0_i32 = arith.constant 0 : i32
    %c0_i32_0 = arith.constant 0 : i32
    %c0_i32_1 = arith.constant 0 : i32
    return %c0_i32, %c0_i32_0 : i32, i32
  }
  func.func @transform_3(%arg0: i32) -> (i32, i32, i32) {
    %c0_i32 = arith.constant 0 : i32
    %c0_i32_0 = arith.constant 0 : i32
    %c0_i32_1 = arith.constant 0 : i32
    return %arg0, %c0_i32, %c0_i32_0 : i32, i32, i32
  }
}

</mosaic_0001>

<llo_original>
// kernel: transformer_forward.1
$region0: #{transformer_forward.1}
  #allocation0 [shape = 'u32[]', space=smem, size = 0x4, offset = 0x4, fixed_abs, tag = 'smem constant byte address 0x4 - core index']
  #allocation1 [shape = 'u32[144,128]{1,0:T(1,128)}', space=vmem, size = 0x12000, scoped, tag = 'internal scratch']
  %s0 = inlined_call_operand.vmem [shape: bf16[2,8,64], index: 0, kind: input, shape index: {}]
  %s1 = inlined_call_operand.hbm [shape: bf16[1472,384], index: 1, kind: input, shape index: {}]
  %s2 = inlined_call_operand.hbm [shape: f32[24,384], index: 2, kind: input, shape index: {}]
  %s3 = inlined_call_operand.vmem [shape: f32[2,8,128], index: 3, kind: output, shape index: {}]
  %s4 = sld [smem:[#allocation0]]
  $region53: #{transformer_forward.1} parent=0
    _
  %s6 = ssub.s32 1, %s4
  %s7 = scalar_select 0, %s6, %s4
  $region1: #{transformer_forward.1} parent=0
    #allocation2 [shape = 'u8[1130496]{0}', space=vmem, size = 0x114000, scoped, tag = 'input window, operand 1, single buffered']
    #allocation3 [shape = 's32[2]{0}', space=sflag, size = 0x8, scoped, tag = 'scoped memory for transformer_forward.1']
    #allocation4 [shape = 'u8[36864]{0}', space=vmem, size = 0x9000, scoped, tag = 'input window, operand 2, single buffered']
    #allocation5 [shape = 's32[1]{0}', space=sflag, size = 0x4, scoped, tag = 'scoped memory for transformer_forward.1']
    %8 = vsyncpa [#allocation3], 0
    %9 = vsyncpa [#allocation5], 0
    loop: start=0, step=1, limit=4
    $region2: #{transformer_forward.1} parent=1 // loop_pre_header
      _
    $region3: #{transformer_forward.1} parent=1 // loop_header
      %s11 = sphi 0, %s15
      %p12 = scmp.ge.s32.totalorder %s11, 4
      %s21 = sphi 0, %s23
      %s24 = sphi 0, %s21
      %s25 = sphi 0, %s24
      %s41 = sphi 0, %s25
      %s45 = sphi 0, %s45
      %s47 = sphi 0, %s45
      %s48 = sphi 0, %s47
      %s62 = sphi 0, %s48
      %s66 = sphi 0, %s66
      %s68 = sphi 0, %s66
      %s69 = sphi 0, %s68
      %s83 = sphi 0, %s69
      %s89 = sphi 0, %s91
      %s92 = sphi 0, %s89
      %s93 = sphi 0, %s92
      %s109 = sphi 0, %s93
    $region4: #{transformer_forward.1} parent=1 // loop_header_branch
      %14 = sbr.rel (%p12) target = $region8
    $region5: #{transformer_forward.1} parent=1 // loop_body
      %s16 = ssub.s32 %s11, 1
      %s17 = ssub.s32 %s11, 2
      %s18 = sadd.s32 %s11, 1
      %s19 = ssub.s32 %s11, %s18
      %p20 = scmp.eq.s32.totalorder %s19, 0
      %s22 = sadd.s32 %s21, 1
      %s23 = scalar_select %p20, %s21, %s22
      %p26 = pneg %p20
      %p27 = scmp.eq.s32.totalorder %s11, 1
      %p28 = por %p26, %p27
      %p29 = scmp.ne.s32.totalorder %s21, %s24
      %p30 = scmp.eq.s32.totalorder %s11, 0
      %p31 = por %p29, %p30
      %p32 = scmp.ne.s32.totalorder %s21, %s24
      %p33 = scmp.eq.s32.totalorder %s16, 1
      %p34 = por %p32, %p33
      %p35 = scmp.ne.s32.totalorder %s24, %s25
      %p36 = scmp.eq.s32.totalorder %s16, 0
      %p37 = por %p35, %p36
      %p38 = scmp.ne.s32.totalorder %s24, %s25
      %p39 = scmp.eq.s32.totalorder %s17, 1
      %p40 = por %p38, %p39
      %p42 = scmp.ne.s32.totalorder %s25, %s41
      %p43 = scmp.eq.s32.totalorder %s17, 0
      %p44 = por %p42, %p43
      %s46 = sadd.s32 %s45, 1
      %p49 = scmp.eq.s32.totalorder %s11, 1
      %p50 = scmp.ne.s32.totalorder %s45, %s47
      %p51 = scmp.eq.s32.totalorder %s11, 0
      %p52 = por %p50, %p51
      %p53 = scmp.ne.s32.totalorder %s45, %s47
      %p54 = scmp.eq.s32.totalorder %s16, 1
      %p55 = por %p53, %p54
      %p56 = scmp.ne.s32.totalorder %s47, %s48
      %p57 = scmp.eq.s32.totalorder %s16, 0
      %p58 = por %p56, %p57
      %p59 = scmp.ne.s32.totalorder %s47, %s48
      %p60 = scmp.eq.s32.totalorder %s17, 1
      %p61 = por %p59, %p60
      %p63 = scmp.ne.s32.totalorder %s48, %s62
      %p64 = scmp.eq.s32.totalorder %s17, 0
      %p65 = por %p63, %p64
      %s67 = sadd.s32 %s66, 1
      %p70 = scmp.eq.s32.totalorder %s11, 1
      %p71 = scmp.ne.s32.totalorder %s66, %s68
      %p72 = scmp.eq.s32.totalorder %s11, 0
      %p73 = por %p71, %p72
      %p74 = scmp.ne.s32.totalorder %s66, %s68
      %p75 = scmp.eq.s32.totalorder %s16, 1
      %p76 = por %p74, %p75
      %p77 = scmp.ne.s32.totalorder %s68, %s69
      %p78 = scmp.eq.s32.totalorder %s16, 0
      %p79 = por %p77, %p78
      %p80 = scmp.ne.s32.totalorder %s68, %s69
      %p81 = scmp.eq.s32.totalorder %s17, 1
      %p82 = por %p80, %p81
      %p84 = scmp.ne.s32.totalorder %s69, %s83
      %p85 = scmp.eq.s32.totalorder %s17, 0
      %p86 = por %p84, %p85
      %s87 = ssub.s32 %s11, %s18
      %p88 = scmp.eq.s32.totalorder %s87, 0
      %s90 = sadd.s32 %s89, 1
      %s91 = scalar_select %p88, %s89, %s90
      %p94 = pneg %p88
      %p95 = scmp.eq.s32.totalorder %s11, 1
      %p96 = por %p94, %p95
      %p97 = scmp.ne.s32.totalorder %s89, %s92
      %p98 = scmp.eq.s32.totalorder %s11, 0
      %p99 = por %p97, %p98
      %p100 = scmp.ne.s32.totalorder %s89, %s92
      %p101 = scmp.eq.s32.totalorder %s16, 1
      %p102 = por %p100, %p101
      %p103 = scmp.ne.s32.totalorder %s92, %s93
      %p104 = scmp.eq.s32.totalorder %s16, 0
      %p105 = por %p103, %p104
      %p106 = scmp.ne.s32.totalorder %s92, %s93
      %p107 = scmp.eq.s32.totalorder %s17, 1
      %p108 = por %p106, %p107
      %p110 = scmp.ne.s32.totalorder %s93, %s109
      %p111 = scmp.eq.s32.totalorder %s17, 0
      %p112 = por %p110, %p111
      %p113 = scmp.le.s32.totalorder 1, %s11
      %p114 = scmp.lt.s32.totalorder %s11, 3
      %p115 = pnand %p113, %p114
      %p116 = pneg %p115
      // Predicated region
      $region9: #{transformer_forward.1} parent=5 // pred_check
        _
      $region10: #{transformer_forward.1} parent=5 // pred_check_branch
        %118 = sbr.rel (%p115) target = $region12
      $region11: #{transformer_forward.1} parent=5 // pred_region
        %s119 = ssub.s32 %s11, 1
        // Predicated region
        $region13: #{transformer_forward.1} parent=11 // pred_check
          %p120 = pneg %p58
        $region14: #{transformer_forward.1} parent=11 // pred_check_branch
          %122 = sbr.rel (%p120) target = $region16
        $region15: #{transformer_forward.1} parent=11 // pred_region
          %s124 = ssub.s32 35328, 35328
          %125 = vsyncadd [#allocation3], %s124
          %s126 = sshll.u32 [#allocation2], 4
          %s127 = int_to_ptr.vmem [resolvable:$true] %s126
          %132 = dma.hbm_to_vmem [thread:$0]  %s1, 35328, %s127, [#allocation3], 192, 192, 12
        $region16: #{transformer_forward.1} parent=11 // pred_fallthru
          _
        // Predicated region
        $region17: #{transformer_forward.1} parent=11 // pred_check
          %p133 = pneg %p79
        $region18: #{transformer_forward.1} parent=11 // pred_check_branch
          %135 = sbr.rel (%p133) target = $region20
        $region19: #{transformer_forward.1} parent=11 // pred_region
          %s137 = ssub.s32 1152, 1152
          %138 = vsyncadd [#allocation5], %s137
          %s139 = sshll.u32 [#allocation4], 4
          %s140 = int_to_ptr.vmem [resolvable:$true] %s139
          %145 = dma.hbm_to_vmem [thread:$0]  %s2, 1152, %s140, [#allocation5], 384, 384, 24
        $region20: #{transformer_forward.1} parent=11 // pred_fallthru
          _
      $region12: #{transformer_forward.1} parent=5 // pred_fallthru
        _
      %p146 = scmp.lt.s32.totalorder %s11, 2
      // Predicated region
      $region21: #{transformer_forward.1} parent=5 // pred_check
        %p147 = pneg %p146
      $region22: #{transformer_forward.1} parent=5 // pred_check_branch
        %149 = sbr.rel (%p147) target = $region24
      $region23: #{transformer_forward.1} parent=5 // pred_region
        // Predicated region
        $region25: #{transformer_forward.1} parent=23 // pred_check
          %p150 = pneg %p31
        $region26: #{transformer_forward.1} parent=23 // pred_check_branch
          %152 = sbr.rel (%p150) target = $region28
        $region27: #{transformer_forward.1} parent=23 // pred_region
          %p153 = scmp.lt.s32.totalorder %s11, 1
          %s154 = scalar_select %p153, %s11, 1
          %s155 = smul.addr %s154, 4
          %s156 = scalar_lea.vmem %s0, %s155
        $region28: #{transformer_forward.1} parent=23 // pred_fallthru
          _
      $region24: #{transformer_forward.1} parent=5 // pred_fallthru
        _
      %p157 = scmp.le.s32.totalorder 1, %s11
      %p158 = scmp.lt.s32.totalorder %s11, 3
      %p159 = pnand %p157, %p158
      %p160 = pneg %p159
      // Predicated region
      $region29: #{transformer_forward.1} parent=5 // pred_check
        _
      $region30: #{transformer_forward.1} parent=5 // pred_check_branch
        %162 = sbr.rel (%p159) target = $region32
      $region31: #{transformer_forward.1} parent=5 // pred_region
        %s163 = ssub.s32 %s11, 1
        // Predicated region
        $region33: #{transformer_forward.1} parent=31 // pred_check
          %p164 = pneg %p58
        $region34: #{transformer_forward.1} parent=31 // pred_check_branch
          %166 = sbr.rel (%p164) target = $region36
        $region35: #{transformer_forward.1} parent=31 // pred_region
          %167 = dma.done [#allocation3], 35328
        $region36: #{transformer_forward.1} parent=31 // pred_fallthru
          _
        // Predicated region
        $region37: #{transformer_forward.1} parent=31 // pred_check
          %p168 = pneg %p79
        $region38: #{transformer_forward.1} parent=31 // pred_check_branch
          %170 = sbr.rel (%p168) target = $region40
        $region39: #{transformer_forward.1} parent=31 // pred_region
          %171 = dma.done [#allocation5], 1152
        $region40: #{transformer_forward.1} parent=31 // pred_fallthru
          _
        %p172 = scmp.lt.s32.totalorder %s16, 1
        %s173 = scalar_select %p172, %s16, 1
        %s174 = smul.addr %s173, 4
        %s175 = scalar_lea.vmem %s0, %s174
        %p176 = pneg %p37
        %p177 = pneg %p34
        %p178 = pneg %p58
        %p179 = pneg %p55
        %p180 = pneg %p79
        %p181 = pneg %p76
        %p182 = pneg %p105
        %p183 = pneg %p102
        %p184 = scmp.lt.s32.totalorder %s16, 1
        %s185 = scalar_select %p184, %s16, 1
        %s186 = smul.addr %s185, 8
        %s187 = scalar_lea.vmem %s3, %s186
        %p188 = scmp.lt.s32.totalorder %s16, 1
        %s189 = scalar_select %p188, %s16, 1
        %s190 = smul.addr %s189, 4
        %s191 = scalar_lea.vmem %s0, %s190
        %p192 = scmp.lt.s32.totalorder %s16, 1
        %s193 = scalar_select %p192, %s16, 1
        %s194 = smul.addr %s193, 8
        %s195 = scalar_lea.vmem %s3, %s194
        %v197 = vld [vmem:[%s191] sm:$0xf]
        %v198 = vld [vmem:[#allocation2] sm:$0xf]
        %v199 = vld [vmem:[#allocation2 + $0xc] sm:$0xf]
        %v200 = vld [vmem:[#allocation2 + $0x18] sm:$0xf]
        %v201 = vld [vmem:[#allocation2 + $0x24] sm:$0xf]
        %v202 = vld [vmem:[#allocation2 + $0x30] sm:$0xf]
        %v203 = vld [vmem:[#allocation2 + $0x3c] sm:$0xf]
        %v204 = vld [vmem:[#allocation2 + $0x48] sm:$0xf]
        %v205 = vld [vmem:[#allocation2 + $0x54] sm:$0xf]
        %v206 = vld [vmem:[#allocation4] ss:$0 sm:$0xff]
        %v215 = vunpack.c.l.b16 %v198
        %v216 = vunpack.c.l.b16 %v199
        %v217 = vunpack.c.l.b16 %v200
        %v218 = vunpack.c.l.b16 %v201
        %v219 = vunpack.c.l.b16 %v202
        %v220 = vunpack.c.l.b16 %v203
        %v221 = vunpack.c.l.b16 %v204
        %v222 = vunpack.c.l.b16 %v205
        %v223 = vpack.c.b16 %v216, %v215
        %v224 = vpack.c.b16 %v218, %v217
        %v225 = vpack.c.b16 %v220, %v219
        %v226 = vpack.c.b16 %v222, %v221
        %vm231 = vcmask 523264
        %v233 = vsel %vm231, %v197, 0
        %235 = vmatprep.subr.bf16.mxu0 0
        %236 = vmatpush1.bf16.msra.mxu0 0
        %237 = vmatprep.subr.bf16.mxu0 0
        %238 = vmatpush1.bf16.msra.mxu0 0
        %239 = vmatprep.subr.bf16.mxu0 0
        %240 = vmatpush1.bf16.msra.mxu0 0
        %241 = vmatprep.subr.bf16.mxu0 0
        %242 = vmatpush1.bf16.msra.mxu0 0
        %243 = vmatprep.subr.bf16.mxu0 0
        %244 = vmatpush1.bf16.msra.mxu0 %v226
        %245 = vmatprep.subr.bf16.mxu0 0
        %246 = vmatpush1.bf16.msra.mxu0 %v225
        %247 = vmatprep.subr.bf16.mxu0 0
        %248 = vmatpush1.bf16.msra.mxu0 %v224
        %249 = vmatprep.subr.bf16.mxu0 0
        %250 = vmatpush1.bf16.msra.mxu0 %v223
        %251 = vmatprep.subr.bf16.mxu0 0
        %252 = vmatpush2.bf16.msra.mxu0 0
        %253 = vmatprep.subr.bf16.mxu0 0
        %254 = vmatpush2.bf16.msra.mxu0 0
        %255 = vmatprep.subr.bf16.mxu0 0
        %256 = vmatpush2.bf16.msra.mxu0 0
        %257 = vmatprep.subr.bf16.mxu0 0
        %258 = vmatpush2.bf16.msra.mxu0 0
        %259 = vmatprep.subr.bf16.mxu0 0
        %260 = vmatpush2.bf16.msra.mxu0 0
        %261 = vmatprep.subr.bf16.mxu0 0
        %262 = vmatpush2.bf16.msra.mxu0 0
        %263 = vmatprep.subr.bf16.mxu0 0
        %264 = vmatpush2.bf16.msra.mxu0 0
        %265 = vmatprep.subr.bf16.mxu0 0
        %266 = vmatpush2.bf16.msra.mxu0 0
        %267 = vmatprep.mubr.bf16.mxu0 0
        %268 = vmatmul.mubr.bf16.gmra.mxu0 %v233
        %v269 = vpop.f32.mrf.mxu0
        %v270 = vadd.f32 %v206, %v269
        %v271 = vpop.f32.mrf.mxu0
        %v272 = vpop.f32.mrf.mxu0
        %v273 = vpop.f32.mrf.mxu0
        %274 = vdwg.mxu0
        %v275 = vpack.c.bf16 %v270, %v270
        %v276 = vld [vmem:[#allocation2 + $0x60] sm:$0xff]
        %v277 = vld [vmem:[#allocation2 + $0x68] sm:$0xf]
        %v278 = vld [vmem:[#allocation2 + $0x6c] sm:$0xff]
        %v279 = vld [vmem:[#allocation2 + $0x74] sm:$0xf]
        %v280 = vld [vmem:[#allocation2 + $0x78] sm:$0xff]
        %v281 = vld [vmem:[#allocation2 + $0x80] sm:$0xf]
        %v282 = vld [vmem:[#allocation2 + $0x84] sm:$0xff]
        %v283 = vld [vmem:[#allocation2 + $0x8c] sm:$0xf]
        %v284 = vld [vmem:[#allocation2 + $0x90] sm:$0xff]
        %v285 = vld [vmem:[#allocation2 + $0x98] sm:$0xf]
        %v286 = vld [vmem:[#allocation2 + $0x9c] sm:$0xff]
        %v287 = vld [vmem:[#allocation2 + $0xa4] sm:$0xf]
        %v288 = vld [vmem:[#allocation2 + $0xa8] sm:$0xff]
        %v289 = vld [vmem:[#allocation2 + $0xb0] sm:$0xf]
        %v290 = vld [vmem:[#allocation2 + $0xb4] sm:$0xff]
        %v291 = vld [vmem:[#allocation2 + $0xbc] sm:$0xf]
        %v292 = vld [vmem:[#allocation2 + $0xc0] sm:$0xff]
        %v293 = vld [vmem:[#allocation2 + $0xc8] sm:$0xf]
        %v294 = vld [vmem:[#allocation2 + $0xcc] sm:$0xff]
        %v295 = vld [vmem:[#allocation2 + $0xd4] sm:$0xf]
        %v296 = vld [vmem:[#allocation2 + $0xd8] sm:$0xff]
        %v297 = vld [vmem:[#allocation2 + $0xe0] sm:$0xf]
        %v298 = vld [vmem:[#allocation2 + $0xe4] sm:$0xff]
        %v299 = vld [vmem:[#allocation2 + $0xec] sm:$0xf]
        %v300 = vld [vmem:[#allocation2 + $0xf0] sm:$0xff]
        %v301 = vld [vmem:[#allocation2 + $0xf8] sm:$0xf]
        %v302 = vld [vmem:[#allocation2 + $0xfc] sm:$0xff]
        %v303 = vld [vmem:[#allocation2 + $0x104] sm:$0xf]
        %v304 = vld [vmem:[#allocation2 + $0x108] sm:$0xff]
        %v305 = vld [vmem:[#allocation2 + $0x110] sm:$0xf]
        %v306 = vld [vmem:[#allocation2 + $0x114] sm:$0xff]
        %v307 = vld [vmem:[#allocation2 + $0x11c] sm:$0xf]
        %s308 = scalar_lea.vmem [#allocation4], 1
        %v309 = vld [vmem:[%s308] ss:$8 sm:$0x7]
        %v311 = vlaneseq
        %v312 = vshrl.u32 %v311, 7
        %v313 = vsub.s32 0, %v312
        %v314 = vrot.slane %v309, %v313
        %v315 = vlaneseq
        %v316 = vshrl.u32 %v315, 7
        %v317 = vsub.s32 1, %v316
        %v318 = vrot.slane %v309, %v317
        %v319 = vlaneseq
        %v320 = vshrl.u32 %v319, 7
        %v321 = vsub.s32 2, %v320
        %v322 = vrot.slane %v309, %v321
        %v358 = vunpack.c.l.b16 %v276
        %v359 = vunpack.c.h.b16 %v276
        %v360 = vunpack.c.l.b16 %v277
        %v361 = vunpack.c.l.b16 %v278
        %v362 = vunpack.c.h.b16 %v278
        %v363 = vunpack.c.l.b16 %v279
        %v364 = vunpack.c.l.b16 %v280
        %v365 = vunpack.c.h.b16 %v280
        %v366 = vunpack.c.l.b16 %v281
        %v367 = vunpack.c.l.b16 %v282
        %v368 = vunpack.c.h.b16 %v282
        %v369 = vunpack.c.l.b16 %v283
        %v370 = vunpack.c.l.b16 %v284
        %v371 = vunpack.c.h.b16 %v284
        %v372 = vunpack.c.l.b16 %v285
        %v373 = vunpack.c.l.b16 %v286
        %v374 = vunpack.c.h.b16 %v286
        %v375 = vunpack.c.l.b16 %v287
        %v376 = vunpack.c.l.b16 %v288
        %v377 = vunpack.c.h.b16 %v288
        %v378 = vunpack.c.l.b16 %v289
        %v379 = vunpack.c.l.b16 %v290
        %v380 = vunpack.c.h.b16 %v290
        %v381 = vunpack.c.l.b16 %v291
        %v382 = vunpack.c.l.b16 %v292
        %v383 = vunpack.c.h.b16 %v292
        %v384 = vunpack.c.l.b16 %v293
        %v385 = vunpack.c.l.b16 %v294
        %v386 = vunpack.c.h.b16 %v294
        %v387 = vunpack.c.l.b16 %v295
        %v388 = vunpack.c.l.b16 %v296
        %v389 = vunpack.c.h.b16 %v296
        %v390 = vunpack.c.l.b16 %v297
        %v391 = vunpack.c.l.b16 %v298
        %v392 = vunpack.c.h.b16 %v298
        %v393 = vunpack.c.l.b16 %v299
        %v394 = vunpack.c.l.b16 %v300
        %v395 = vunpack.c.h.b16 %v300
        %v396 = vunpack.c.l.b16 %v301
        %v397 = vunpack.c.l.b16 %v302
        %v398 = vunpack.c.h.b16 %v302
        %v399 = vunpack.c.l.b16 %v303
        %v400 = vunpack.c.l.b16 %v304
        %v401 = vunpack.c.h.b16 %v304
        %v402 = vunpack.c.l.b16 %v305
        %v403 = vunpack.c.l.b16 %v306
        %v404 = vunpack.c.h.b16 %v306
        %v405 = vunpack.c.l.b16 %v307
        %v406 = vpack.c.b16 %v361, %v358
        %v407 = vpack.c.b16 %v362, %v359
        %v408 = vpack.c.b16 %v363, %v360
        %v409 = vpack.c.b16 %v367, %v364
        %v410 = vpack.c.b16 %v368, %v365
        %v411 = vpack.c.b16 %v369, %v366
        %v412 = vpack.c.b16 %v373, %v370
        %v413 = vpack.c.b16 %v374, %v371
        %v414 = vpack.c.b16 %v375, %v372
        %v415 = vpack.c.b16 %v379, %v376
        %v416 = vpack.c.b16 %v380, %v377
        %v417 = vpack.c.b16 %v381, %v378
        %v418 = vpack.c.b16 %v385, %v382
        %v419 = vpack.c.b16 %v386, %v383
        %v420 = vpack.c.b16 %v387, %v384
        %v421 = vpack.c.b16 %v391, %v388
        %v422 = vpack.c.b16 %v392, %v389
        %v423 = vpack.c.b16 %v393, %v390
        %v424 = vpack.c.b16 %v397, %v394
        %v425 = vpack.c.b16 %v398, %v395
        %v426 = vpack.c.b16 %v399, %v396
        %v427 = vpack.c.b16 %v403, %v400
        %v428 = vpack.c.b16 %v404, %v401
        %v429 = vpack.c.b16 %v405, %v402
        %454 = vmatprep.subr.bf16.mxu0 %v428
        %455 = vmatpush1.bf16.msra.mxu0 %v427
        %456 = vmatprep.subr.bf16.mxu0 %v425
        %457 = vmatpush1.bf16.msra.mxu0 %v424
        %458 = vmatprep.subr.bf16.mxu0 %v422
        %459 = vmatpush1.bf16.msra.mxu0 %v421
        %460 = vmatprep.subr.bf16.mxu0 %v419
        %461 = vmatpush1.bf16.msra.mxu0 %v418
        %462 = vmatprep.subr.bf16.mxu0 %v416
        %463 = vmatpush1.bf16.msra.mxu0 %v415
        %464 = vmatprep.subr.bf16.mxu0 %v413
        %465 = vmatpush1.bf16.msra.mxu0 %v412
        %466 = vmatprep.subr.bf16.mxu0 %v410
        %467 = vmatpush1.bf16.msra.mxu0 %v409
        %468 = vmatprep.subr.bf16.mxu0 %v407
        %469 = vmatpush1.bf16.msra.mxu0 %v406
        %470 = vmatprep.subr.bf16.mxu0 0
        %471 = vmatpush2.bf16.msra.mxu0 0
        %472 = vmatprep.subr.bf16.mxu0 0
        %473 = vmatpush2.bf16.msra.mxu0 0
        %474 = vmatprep.subr.bf16.mxu0 0
        %475 = vmatpush2.bf16.msra.mxu0 0
        %476 = vmatprep.subr.bf16.mxu0 0
        %477 = vmatpush2.bf16.msra.mxu0 0
        %478 = vmatprep.subr.bf16.mxu0 0
        %479 = vmatpush2.bf16.msra.mxu0 0
        %480 = vmatprep.subr.bf16.mxu0 0
        %481 = vmatpush2.bf16.msra.mxu0 0
        %482 = vmatprep.subr.bf16.mxu0 0
        %483 = vmatpush2.bf16.msra.mxu0 0
        %484 = vmatprep.subr.bf16.mxu0 0
        %485 = vmatpush2.bf16.msra.mxu0 0
        %486 = vmatprep.mubr.bf16.mxu0 0
        %487 = vmatmul.mubr.bf16.gmra.mxu0 %v275
        %v488 = vpop.f32.mrf.mxu0
        %v489 = vadd.f32 %v314, %v488
        %v490 = vpop.f32.mrf.mxu0
        %v491 = vadd.f32 %v318, %v490
        %v492 = vpop.f32.mrf.mxu0
        %v493 = vpop.f32.mrf.mxu0
        %494 = vdwg.mxu0
        %495 = vmatprep.subr.bf16.mxu0 0
        %496 = vmatpush1.bf16.msra.mxu0 %v429
        %497 = vmatprep.subr.bf16.mxu0 0
        %498 = vmatpush1.bf16.msra.mxu0 %v426
        %499 = vmatprep.subr.bf16.mxu0 0
        %500 = vmatpush1.bf16.msra.mxu0 %v423
        %501 = vmatprep.subr.bf16.mxu0 0
        %502 = vmatpush1.bf16.msra.mxu0 %v420
        %503 = vmatprep.subr.bf16.mxu0 0
        %504 = vmatpush1.bf16.msra.mxu0 %v417
        %505 = vmatprep.subr.bf16.mxu0 0
        %506 = vmatpush1.bf16.msra.mxu0 %v414
        %507 = vmatprep.subr.bf16.mxu0 0
        %508 = vmatpush1.bf16.msra.mxu0 %v411
        %509 = vmatprep.subr.bf16.mxu0 0
        %510 = vmatpush1.bf16.msra.mxu0 %v408
        %511 = vmatprep.subr.bf16.mxu0 0
        %512 = vmatpush2.bf16.msra.mxu0 0
        %513 = vmatprep.subr.bf16.mxu0 0
        %514 = vmatpush2.bf16.msra.mxu0 0
        %515 = vmatprep.subr.bf16.mxu0 0
        %516 = vmatpush2.bf16.msra.mxu0 0
        %517 = vmatprep.subr.bf16.mxu0 0
        %518 = vmatpush2.bf16.msra.mxu0 0
        %519 = vmatprep.subr.bf16.mxu0 0
        %520 = vmatpush2.bf16.msra.mxu0 0
        %521 = vmatprep.subr.bf16.mxu0 0
        %522 = vmatpush2.bf16.msra.mxu0 0
        %523 = vmatprep.subr.bf16.mxu0 0
        %524 = vmatpush2.bf16.msra.mxu0 0
        %525 = vmatprep.subr.bf16.mxu0 0
        %526 = vmatpush2.bf16.msra.mxu0 0
        %527 = vmatprep.mubr.bf16.mxu0 0
        %528 = vmatmul.mubr.bf16.gmra.mxu0 %v275
        %v529 = vpop.f32.mrf.mxu0
        %v530 = vadd.f32 %v322, %v529
        %v531 = vpop.f32.mrf.mxu0
        %v532 = vpop.f32.mrf.mxu0
        %v533 = vpop.f32.mrf.mxu0
        %534 = vdwg.mxu0
        %v535 = vmul.f32 %v489, 0.17677669
        %v536 = vpack.c.bf16 %v535, %v535
        %v537 = vpack.c.bf16 %v491, %v491
        %v538 = vpack.c.bf16 %v530, %v530
        %v539 = vld [vmem:[#allocation4 + $0x2] ss:$0 sm:$0xff]
        %vm540 = vcmask 261120
        %v542 = vsel %vm540, %v536, 0
        %v545 = vsel %vm540, %v537, 0
        %547 = vmatprep.subr.bf16.mxu0 0
        %548 = vmatpush1.bf16.xpose.msra.mxu0 0
        %549 = vmatprep.subr.bf16.mxu0 0
        %550 = vmatpush1.bf16.xpose.msra.mxu0 0
        %551 = vmatprep.subr.bf16.mxu0 0
        %552 = vmatpush1.bf16.xpose.msra.mxu0 0
        %553 = vmatprep.subr.bf16.mxu0 0
        %554 = vmatpush1.bf16.xpose.msra.mxu0 0
        %555 = vmatprep.subr.bf16.mxu0 0
        %556 = vmatpush1.bf16.xpose.msra.mxu0 0
        %557 = vmatprep.subr.bf16.mxu0 0
        %558 = vmatpush1.bf16.xpose.msra.mxu0 0
        %559 = vmatprep.subr.bf16.mxu0 0
        %560 = vmatpush1.bf16.xpose.msra.mxu0 0
        %561 = vmatprep.subr.bf16.mxu0 0
        %562 = vmatpush1.bf16.xpose.msra.mxu0 %v545
        %563 = vmatprep.subr.bf16.mxu0 0
        %564 = vmatpush2.bf16.xpose.msra.mxu0 0
        %565 = vmatprep.subr.bf16.mxu0 0
        %566 = vmatpush2.bf16.xpose.msra.mxu0 0
        %567 = vmatprep.subr.bf16.mxu0 0
        %568 = vmatpush2.bf16.xpose.msra.mxu0 0
        %569 = vmatprep.subr.bf16.mxu0 0
        %570 = vmatpush2.bf16.xpose.msra.mxu0 0
        %571 = vmatprep.subr.bf16.mxu0 0
        %572 = vmatpush2.bf16.xpose.msra.mxu0 0
        %573 = vmatprep.subr.bf16.mxu0 0
        %574 = vmatpush2.bf16.xpose.msra.mxu0 0
        %575 = vmatprep.subr.bf16.mxu0 0
        %576 = vmatpush2.bf16.xpose.msra.mxu0 0
        %577 = vmatprep.subr.bf16.mxu0 0
        %578 = vmatpush2.bf16.xpose.msra.mxu0 0
        %579 = vmatprep.mubr.bf16.mxu0 0
        %580 = vmatmul.mubr.bf16.gmra.mxu0 %v542
        %v581 = vpop.f32.mrf.mxu0
        %v582 = vadd.f32 0.0, %v581
        %v583 = vpop.f32.mrf.mxu0
        %v584 = vpop.f32.mrf.mxu0
        %v585 = vpop.f32.mrf.mxu0
        %586 = vdwg.mxu0
        %vm587 = vcmask 64512
        %v588 = vsel %vm587, %v582, -inf
        %589 = vmax.xlane.f32.xlu0 %v588
        %v590 = vpop.xlane.xlu0 %589
        %v591 = vsub.f32 %v582, %v590
        %v592 = vmul.f32 %v591, 1.442695
        %v593 = vpow.pop %v592
        %v594 = vsel %vm587, %v593, 0.0
        %595 = vadd.xlane.f32.xlu0 %v594
        %v596 = vpop.xlane.xlu0 %595
        %v597 = vrcp.pop %v596
        %v598 = vmul.f32 %v593, %v597
        %v599 = vpack.c.bf16 %v598, %v598
        %v601 = vsel %vm587, %v599, 0
        %vm603 = vcmask 1043456
        %v605 = vsel %vm603, %v538, 0
        %607 = vmatprep.subr.bf16.mxu0 0
        %608 = vmatpush1.bf16.msra.mxu0 0
        %609 = vmatprep.subr.bf16.mxu0 0
        %610 = vmatpush1.bf16.msra.mxu0 0
        %611 = vmatprep.subr.bf16.mxu0 0
        %612 = vmatpush1.bf16.msra.mxu0 0
        %613 = vmatprep.subr.bf16.mxu0 0
        %614 = vmatpush1.bf16.msra.mxu0 0
        %615 = vmatprep.subr.bf16.mxu0 0
        %616 = vmatpush1.bf16.msra.mxu0 0
        %617 = vmatprep.subr.bf16.mxu0 0
        %618 = vmatpush1.bf16.msra.mxu0 0
        %619 = vmatprep.subr.bf16.mxu0 0
        %620 = vmatpush1.bf16.msra.mxu0 0
        %621 = vmatprep.subr.bf16.mxu0 0
        %622 = vmatpush1.bf16.msra.mxu0 %v605
        %623 = vmatprep.subr.bf16.mxu0 0
        %624 = vmatpush2.bf16.msra.mxu0 0
        %625 = vmatprep.subr.bf16.mxu0 0
        %626 = vmatpush2.bf16.msra.mxu0 0
        %627 = vmatprep.subr.bf16.mxu0 0
        %628 = vmatpush2.bf16.msra.mxu0 0
        %629 = vmatprep.subr.bf16.mxu0 0
        %630 = vmatpush2.bf16.msra.mxu0 0
        %631 = vmatprep.subr.bf16.mxu0 0
        %632 = vmatpush2.bf16.msra.mxu0 0
        %633 = vmatprep.subr.bf16.mxu0 0
        %634 = vmatpush2.bf16.msra.mxu0 0
        %635 = vmatprep.subr.bf16.mxu0 0
        %636 = vmatpush2.bf16.msra.mxu0 0
        %637 = vmatprep.subr.bf16.mxu0 0
        %638 = vmatpush2.bf16.msra.mxu0 0
        %639 = vmatprep.mubr.bf16.mxu0 0
        %640 = vmatmul.mubr.bf16.gmra.mxu0 %v601
        %v641 = vpop.f32.mrf.mxu0
        %v642 = vadd.f32 0.0, %v641
        %v643 = vpop.f32.mrf.mxu0
        %v644 = vpop.f32.mrf.mxu0
        %v645 = vpop.f32.mrf.mxu0
        %646 = vdwg.mxu0
        %v647 = vld [vmem:[#allocation2 + $0x120] sm:$0xf]
        %v648 = vld [vmem:[#allocation2 + $0x12c] sm:$0xf]
        %v649 = vld [vmem:[#allocation2 + $0x138] sm:$0xf]
        %v650 = vld [vmem:[#allocation2 + $0x144] sm:$0xf]
        %v651 = vpack.c.bf16 %v642, %v642
        %v656 = vunpack.c.l.b16 %v647
        %v657 = vunpack.c.l.b16 %v648
        %v658 = vunpack.c.l.b16 %v649
        %v659 = vunpack.c.l.b16 %v650
        %v660 = vpack.c.b16 %v657, %v656
        %v661 = vpack.c.b16 %v659, %v658
        %v665 = vsel %vm540, %v651, 0
        %667 = vmatprep.subr.bf16.mxu0 0
        %668 = vmatpush1.bf16.msra.mxu0 0
        %669 = vmatprep.subr.bf16.mxu0 0
        %670 = vmatpush1.bf16.msra.mxu0 0
        %671 = vmatprep.subr.bf16.mxu0 0
        %672 = vmatpush1.bf16.msra.mxu0 0
        %673 = vmatprep.subr.bf16.mxu0 0
        %674 = vmatpush1.bf16.msra.mxu0 0
        %675 = vmatprep.subr.bf16.mxu0 0
        %676 = vmatpush1.bf16.msra.mxu0 0
        %677 = vmatprep.subr.bf16.mxu0 0
        %678 = vmatpush1.bf16.msra.mxu0 0
        %679 = vmatprep.subr.bf16.mxu0 0
        %680 = vmatpush1.bf16.msra.mxu0 %v661
        %681 = vmatprep.subr.bf16.mxu0 0
        %682 = vmatpush1.bf16.msra.mxu0 %v660
        %683 = vmatprep.subr.bf16.mxu0 0
        %684 = vmatpush2.bf16.msra.mxu0 0
        %685 = vmatprep.subr.bf16.mxu0 0
        %686 = vmatpush2.bf16.msra.mxu0 0
        %687 = vmatprep.subr.bf16.mxu0 0
        %688 = vmatpush2.bf16.msra.mxu0 0
        %689 = vmatprep.subr.bf16.mxu0 0
        %690 = vmatpush2.bf16.msra.mxu0 0
        %691 = vmatprep.subr.bf16.mxu0 0
        %692 = vmatpush2.bf16.msra.mxu0 0
        %693 = vmatprep.subr.bf16.mxu0 0
        %694 = vmatpush2.bf16.msra.mxu0 0
        %695 = vmatprep.subr.bf16.mxu0 0
        %696 = vmatpush2.bf16.msra.mxu0 0
        %697 = vmatprep.subr.bf16.mxu0 0
        %698 = vmatpush2.bf16.msra.mxu0 0
        %699 = vmatprep.mubr.bf16.mxu0 0
        %700 = vmatmul.mubr.bf16.gmra.mxu0 %v665
        %v701 = vpop.f32.mrf.mxu0
        %v702 = vadd.f32 0.0, %v701
        %v703 = vpop.f32.mrf.mxu0
        %v704 = vpop.f32.mrf.mxu0
        %v705 = vpop.f32.mrf.mxu0
        %706 = vdwg.mxu0
        %v707 = vadd.f32 %v539, %v702
        %709 = vrot.lane.b32.xlu0 %v536, 96
        %v710 = vpop.permute.xlu0 %709
        %712 = vrot.lane.b32.xlu0 %v537, 96
        %v713 = vpop.permute.xlu0 %712
        %v715 = vsel %vm540, %v710, 0
        %v718 = vsel %vm540, %v713, 0
        %720 = vmatprep.subr.bf16.mxu0 0
        %721 = vmatpush1.bf16.xpose.msra.mxu0 0
        %722 = vmatprep.subr.bf16.mxu0 0
        %723 = vmatpush1.bf16.xpose.msra.mxu0 0
        %724 = vmatprep.subr.bf16.mxu0 0
        %725 = vmatpush1.bf16.xpose.msra.mxu0 0
        %726 = vmatprep.subr.bf16.mxu0 0
        %727 = vmatpush1.bf16.xpose.msra.mxu0 0
        %728 = vmatprep.subr.bf16.mxu0 0
        %729 = vmatpush1.bf16.xpose.msra.mxu0 0
        %730 = vmatprep.subr.bf16.mxu0 0
        %731 = vmatpush1.bf16.xpose.msra.mxu0 0
        %732 = vmatprep.subr.bf16.mxu0 0
        %733 = vmatpush1.bf16.xpose.msra.mxu0 0
        %734 = vmatprep.subr.bf16.mxu0 0
        %735 = vmatpush1.bf16.xpose.msra.mxu0 %v718
        %736 = vmatprep.subr.bf16.mxu0 0
        %737 = vmatpush2.bf16.xpose.msra.mxu0 0
        %738 = vmatprep.subr.bf16.mxu0 0
        %739 = vmatpush2.bf16.xpose.msra.mxu0 0
        %740 = vmatprep.subr.bf16.mxu0 0
        %741 = vmatpush2.bf16.xpose.msra.mxu0 0
        %742 = vmatprep.subr.bf16.mxu0 0
        %743 = vmatpush2.bf16.xpose.msra.mxu0 0
        %744 = vmatprep.subr.bf16.mxu0 0
        %745 = vmatpush2.bf16.xpose.msra.mxu0 0
        %746 = vmatprep.subr.bf16.mxu0 0
        %747 = vmatpush2.bf16.xpose.msra.mxu0 0
        %748 = vmatprep.subr.bf16.mxu0 0
        %749 = vmatpush2.bf16.xpose.msra.mxu0 0
        %750 = vmatprep.subr.bf16.mxu0 0
        %751 = vmatpush2.bf16.xpose.msra.mxu0 0
        %752 = vmatprep.mubr.bf16.mxu0 0
        %753 = vmatmul.mubr.bf16.gmra.mxu0 %v715
        %v754 = vpop.f32.mrf.mxu0
        %v755 = vadd.f32 0.0, %v754
        %v756 = vpop.f32.mrf.mxu0
        %v757 = vpop.f32.mrf.mxu0
        %v758 = vpop.f32.mrf.mxu0
        %759 = vdwg.mxu0
        %v760 = vsel %vm587, %v755, -inf
        %761 = vmax.xlane.f32.xlu0 %v760
        %v762 = vpop.xlane.xlu0 %761
        %v763 = vsub.f32 %v755, %v762
        %v764 = vmul.f32 %v763, 1.442695
        %v765 = vpow.pop %v764
        %v766 = vsel %vm587, %v765, 0.0
        %767 = vadd.xlane.f32.xlu0 %v766
        %v768 = vpop.xlane.xlu0 %767
        %v769 = vrcp.pop %v768
        %v770 = vmul.f32 %v765, %v769
        %v771 = vpack.c.bf16 %v770, %v770
        %773 = vrot.lane.b32.xlu0 %v538, 96
        %v774 = vpop.permute.xlu0 %773
        %v776 = vsel %vm587, %v771, 0
        %v779 = vsel %vm603, %v774, 0
        %781 = vmatprep.subr.bf16.mxu0 0
        %782 = vmatpush1.bf16.msra.mxu0 0
        %783 = vmatprep.subr.bf16.mxu0 0
        %784 = vmatpush1.bf16.msra.mxu0 0
        %785 = vmatprep.subr.bf16.mxu0 0
        %786 = vmatpush1.bf16.msra.mxu0 0
        %787 = vmatprep.subr.bf16.mxu0 0
        %788 = vmatpush1.bf16.msra.mxu0 0
        %789 = vmatprep.subr.bf16.mxu0 0
        %790 = vmatpush1.bf16.msra.mxu0 0
        %791 = vmatprep.subr.bf16.mxu0 0
        %792 = vmatpush1.bf16.msra.mxu0 0
        %793 = vmatprep.subr.bf16.mxu0 0
        %794 = vmatpush1.bf16.msra.mxu0 0
        %795 = vmatprep.subr.bf16.mxu0 0
        %796 = vmatpush1.bf16.msra.mxu0 %v779
        %797 = vmatprep.subr.bf16.mxu0 0
        %798 = vmatpush2.bf16.msra.mxu0 0
        %799 = vmatprep.subr.bf16.mxu0 0
        %800 = vmatpush2.bf16.msra.mxu0 0
        %801 = vmatprep.subr.bf16.mxu0 0
        %802 = vmatpush2.bf16.msra.mxu0 0
        %803 = vmatprep.subr.bf16.mxu0 0
        %804 = vmatpush2.bf16.msra.mxu0 0
        %805 = vmatprep.subr.bf16.mxu0 0
        %806 = vmatpush2.bf16.msra.mxu0 0
        %807 = vmatprep.subr.bf16.mxu0 0
        %808 = vmatpush2.bf16.msra.mxu0 0
        %809 = vmatprep.subr.bf16.mxu0 0
        %810 = vmatpush2.bf16.msra.mxu0 0
        %811 = vmatprep.subr.bf16.mxu0 0
        %812 = vmatpush2.bf16.msra.mxu0 0
        %813 = vmatprep.mubr.bf16.mxu0 0
        %814 = vmatmul.mubr.bf16.gmra.mxu0 %v776
        %v815 = vpop.f32.mrf.mxu0
        %v816 = vadd.f32 0.0, %v815
        %v817 = vpop.f32.mrf.mxu0
        %v818 = vpop.f32.mrf.mxu0
        %v819 = vpop.f32.mrf.mxu0
        %820 = vdwg.mxu0
        %v821 = vld [vmem:[#allocation2 + $0x150] sm:$0xf]
        %v822 = vld [vmem:[#allocation2 + $0x15c] sm:$0xf]
        %v823 = vld [vmem:[#allocation2 + $0x168] sm:$0xf]
        %v824 = vld [vmem:[#allocation2 + $0x174] sm:$0xf]
        %v825 = vpack.c.bf16 %v816, %v816
        %v830 = vunpack.c.l.b16 %v821
        %v831 = vunpack.c.l.b16 %v822
        %v832 = vunpack.c.l.b16 %v823
        %v833 = vunpack.c.l.b16 %v824
        %v834 = vpack.c.b16 %v831, %v830
        %v835 = vpack.c.b16 %v833, %v832
        %v839 = vsel %vm540, %v825, 0
        %841 = vmatprep.subr.bf16.mxu0 0
        %842 = vmatpush1.bf16.msra.mxu0 0
        %843 = vmatprep.subr.bf16.mxu0 0
        %844 = vmatpush1.bf16.msra.mxu0 0
        %845 = vmatprep.subr.bf16.mxu0 0
        %846 = vmatpush1.bf16.msra.mxu0 0
        %847 = vmatprep.subr.bf16.mxu0 0
        %848 = vmatpush1.bf16.msra.mxu0 0
        %849 = vmatprep.subr.bf16.mxu0 0
        %850 = vmatpush1.bf16.msra.mxu0 0
        %851 = vmatprep.subr.bf16.mxu0 0
        %852 = vmatpush1.bf16.msra.mxu0 0
        %853 = vmatprep.subr.bf16.mxu0 0
        %854 = vmatpush1.bf16.msra.mxu0 %v835
        %855 = vmatprep.subr.bf16.mxu0 0
        %856 = vmatpush1.bf16.msra.mxu0 %v834
        %857 = vmatprep.subr.bf16.mxu0 0
        %858 = vmatpush2.bf16.msra.mxu0 0
        %859 = vmatprep.subr.bf16.mxu0 0
        %860 = vmatpush2.bf16.msra.mxu0 0
        %861 = vmatprep.subr.bf16.mxu0 0
        %862 = vmatpush2.bf16.msra.mxu0 0
        %863 = vmatprep.subr.bf16.mxu0 0
        %864 = vmatpush2.bf16.msra.mxu0 0
        %865 = vmatprep.subr.bf16.mxu0 0
        %866 = vmatpush2.bf16.msra.mxu0 0
        %867 = vmatprep.subr.bf16.mxu0 0
        %868 = vmatpush2.bf16.msra.mxu0 0
        %869 = vmatprep.subr.bf16.mxu0 0
        %870 = vmatpush2.bf16.msra.mxu0 0
        %871 = vmatprep.subr.bf16.mxu0 0
        %872 = vmatpush2.bf16.msra.mxu0 0
        %873 = vmatprep.mubr.bf16.mxu0 0
        %874 = vmatmul.mubr.bf16.gmra.mxu0 %v839
        %v875 = vpop.f32.mrf.mxu0
        %v876 = vadd.f32 0.0, %v875
        %v877 = vpop.f32.mrf.mxu0
        %v878 = vpop.f32.mrf.mxu0
        %v879 = vpop.f32.mrf.mxu0
        %880 = vdwg.mxu0
        %v881 = vadd.f32 %v707, %v876
        %882 = vrot.lane.b32.xlu0 %v536, 64
        %v883 = vpop.permute.xlu0 %882
        %884 = vrot.lane.b32.xlu0 %v537, 64
        %v885 = vpop.permute.xlu0 %884
        %v887 = vsel %vm540, %v883, 0
        %v890 = vsel %vm540, %v885, 0
        %892 = vmatprep.subr.bf16.mxu0 0
        %893 = vmatpush1.bf16.xpose.msra.mxu0 0
        %894 = vmatprep.subr.bf16.mxu0 0
        %895 = vmatpush1.bf16.xpose.msra.mxu0 0
        %896 = vmatprep.subr.bf16.mxu0 0
        %897 = vmatpush1.bf16.xpose.msra.mxu0 0
        %898 = vmatprep.subr.bf16.mxu0 0
        %899 = vmatpush1.bf16.xpose.msra.mxu0 0
        %900 = vmatprep.subr.bf16.mxu0 0
        %901 = vmatpush1.bf16.xpose.msra.mxu0 0
        %902 = vmatprep.subr.bf16.mxu0 0
        %903 = vmatpush1.bf16.xpose.msra.mxu0 0
        %904 = vmatprep.subr.bf16.mxu0 0
        %905 = vmatpush1.bf16.xpose.msra.mxu0 0
        %906 = vmatprep.subr.bf16.mxu0 0
        %907 = vmatpush1.bf16.xpose.msra.mxu0 %v890
        %908 = vmatprep.subr.bf16.mxu0 0
        %909 = vmatpush2.bf16.xpose.msra.mxu0 0
        %910 = vmatprep.subr.bf16.mxu0 0
        %911 = vmatpush2.bf16.xpose.msra.mxu0 0
        %912 = vmatprep.subr.bf16.mxu0 0
        %913 = vmatpush2.bf16.xpose.msra.mxu0 0
        %914 = vmatprep.subr.bf16.mxu0 0
        %915 = vmatpush2.bf16.xpose.msra.mxu0 0
        %916 = vmatprep.subr.bf16.mxu0 0
        %917 = vmatpush2.bf16.xpose.msra.mxu0 0
        %918 = vmatprep.subr.bf16.mxu0 0
        %919 = vmatpush2.bf16.xpose.msra.mxu0 0
        %920 = vmatprep.subr.bf16.mxu0 0
        %921 = vmatpush2.bf16.xpose.msra.mxu0 0
        %922 = vmatprep.subr.bf16.mxu0 0
        %923 = vmatpush2.bf16.xpose.msra.mxu0 0
        %924 = vmatprep.mubr.bf16.mxu0 0
        %925 = vmatmul.mubr.bf16.gmra.mxu0 %v887
        %v926 = vpop.f32.mrf.mxu0
        %v927 = vadd.f32 0.0, %v926
        %v928 = vpop.f32.mrf.mxu0
        %v929 = vpop.f32.mrf.mxu0
        %v930 = vpop.f32.mrf.mxu0
        %931 = vdwg.mxu0
        %v932 = vsel %vm587, %v927, -inf
        %933 = vmax.xlane.f32.xlu0 %v932
        %v934 = vpop.xlane.xlu0 %933
        %v935 = vsub.f32 %v927, %v934
        %v936 = vmul.f32 %v935, 1.442695
        %v937 = vpow.pop %v936
        %v938 = vsel %vm587, %v937, 0.0
        %939 = vadd.xlane.f32.xlu0 %v938
        %v940 = vpop.xlane.xlu0 %939
        %v941 = vrcp.pop %v940
        %v942 = vmul.f32 %v937, %v941
        %v943 = vpack.c.bf16 %v942, %v942
        %944 = vrot.lane.b32.xlu0 %v538, 64
        %v945 = vpop.permute.xlu0 %944
        %v947 = vsel %vm587, %v943, 0
        %v950 = vsel %vm603, %v945, 0
        %952 = vmatprep.subr.bf16.mxu0 0
        %953 = vmatpush1.bf16.msra.mxu0 0
        %954 = vmatprep.subr.bf16.mxu0 0
        %955 = vmatpush1.bf16.msra.mxu0 0
        %956 = vmatprep.subr.bf16.mxu0 0
        %957 = vmatpush1.bf16.msra.mxu0 0
        %958 = vmatprep.subr.bf16.mxu0 0
        %959 = vmatpush1.bf16.msra.mxu0 0
        %960 = vmatprep.subr.bf16.mxu0 0
        %961 = vmatpush1.bf16.msra.mxu0 0
        %962 = vmatprep.subr.bf16.mxu0 0
        %963 = vmatpush1.bf16.msra.mxu0 0
        %964 = vmatprep.subr.bf16.mxu0 0
        %965 = vmatpush1.bf16.msra.mxu0 0
        %966 = vmatprep.subr.bf16.mxu0 0
        %967 = vmatpush1.bf16.msra.mxu0 %v950
        %968 = vmatprep.subr.bf16.mxu0 0
        %969 = vmatpush2.bf16.msra.mxu0 0
        %970 = vmatprep.subr.bf16.mxu0 0
        %971 = vmatpush2.bf16.msra.mxu0 0
        %972 = vmatprep.subr.bf16.mxu0 0
        %973 = vmatpush2.bf16.msra.mxu0 0
        %974 = vmatprep.subr.bf16.mxu0 0
        %975 = vmatpush2.bf16.msra.mxu0 0
        %976 = vmatprep.subr.bf16.mxu0 0
        %977 = vmatpush2.bf16.msra.mxu0 0
        %978 = vmatprep.subr.bf16.mxu0 0
        %979 = vmatpush2.bf16.msra.mxu0 0
        %980 = vmatprep.subr.bf16.mxu0 0
        %981 = vmatpush2.bf16.msra.mxu0 0
        %982 = vmatprep.subr.bf16.mxu0 0
        %983 = vmatpush2.bf16.msra.mxu0 0
        %984 = vmatprep.mubr.bf16.mxu0 0
        %985 = vmatmul.mubr.bf16.gmra.mxu0 %v947
        %v986 = vpop.f32.mrf.mxu0
        %v987 = vadd.f32 0.0, %v986
        %v988 = vpop.f32.mrf.mxu0
        %v989 = vpop.f32.mrf.mxu0
        %v990 = vpop.f32.mrf.mxu0
        %991 = vdwg.mxu0
        %v992 = vld [vmem:[#allocation2 + $0x180] sm:$0xf]
        %v993 = vld [vmem:[#allocation2 + $0x18c] sm:$0xf]
        %v994 = vld [vmem:[#allocation2 + $0x198] sm:$0xf]
        %v995 = vld [vmem:[#allocation2 + $0x1a4] sm:$0xf]
        %v996 = vpack.c.bf16 %v987, %v987
        %v1001 = vunpack.c.l.b16 %v992
        %v1002 = vunpack.c.l.b16 %v993
        %v1003 = vunpack.c.l.b16 %v994
        %v1004 = vunpack.c.l.b16 %v995
        %v1005 = vpack.c.b16 %v1002, %v1001
        %v1006 = vpack.c.b16 %v1004, %v1003
        %v1010 = vsel %vm540, %v996, 0
        %1012 = vmatprep.subr.bf16.mxu0 0
        %1013 = vmatpush1.bf16.msra.mxu0 0
        %1014 = vmatprep.subr.bf16.mxu0 0
        %1015 = vmatpush1.bf16.msra.mxu0 0
        %1016 = vmatprep.subr.bf16.mxu0 0
        %1017 = vmatpush1.bf16.msra.mxu0 0
        %1018 = vmatprep.subr.bf16.mxu0 0
        %1019 = vmatpush1.bf16.msra.mxu0 0
        %1020 = vmatprep.subr.bf16.mxu0 0
        %1021 = vmatpush1.bf16.msra.mxu0 0
        %1022 = vmatprep.subr.bf16.mxu0 0
        %1023 = vmatpush1.bf16.msra.mxu0 0
        %1024 = vmatprep.subr.bf16.mxu0 0
        %1025 = vmatpush1.bf16.msra.mxu0 %v1006
        %1026 = vmatprep.subr.bf16.mxu0 0
        %1027 = vmatpush1.bf16.msra.mxu0 %v1005
        %1028 = vmatprep.subr.bf16.mxu0 0
        %1029 = vmatpush2.bf16.msra.mxu0 0
        %1030 = vmatprep.subr.bf16.mxu0 0
        %1031 = vmatpush2.bf16.msra.mxu0 0
        %1032 = vmatprep.subr.bf16.mxu0 0
        %1033 = vmatpush2.bf16.msra.mxu0 0
        %1034 = vmatprep.subr.bf16.mxu0 0
        %1035 = vmatpush2.bf16.msra.mxu0 0
        %1036 = vmatprep.subr.bf16.mxu0 0
        %1037 = vmatpush2.bf16.msra.mxu0 0
        %1038 = vmatprep.subr.bf16.mxu0 0
        %1039 = vmatpush2.bf16.msra.mxu0 0
        %1040 = vmatprep.subr.bf16.mxu0 0
        %1041 = vmatpush2.bf16.msra.mxu0 0
        %1042 = vmatprep.subr.bf16.mxu0 0
        %1043 = vmatpush2.bf16.msra.mxu0 0
        %1044 = vmatprep.mubr.bf16.mxu0 0
        %1045 = vmatmul.mubr.bf16.gmra.mxu0 %v1010
        %v1046 = vpop.f32.mrf.mxu0
        %v1047 = vadd.f32 0.0, %v1046
        %v1048 = vpop.f32.mrf.mxu0
        %v1049 = vpop.f32.mrf.mxu0
        %v1050 = vpop.f32.mrf.mxu0
        %1051 = vdwg.mxu0
        %v1052 = vadd.f32 %v881, %v1047
        %1053 = vrot.lane.b32.xlu0 %v536, 32
        %v1054 = vpop.permute.xlu0 %1053
        %1055 = vrot.lane.b32.xlu0 %v537, 32
        %v1056 = vpop.permute.xlu0 %1055
        %v1058 = vsel %vm540, %v1054, 0
        %v1061 = vsel %vm540, %v1056, 0
        %1063 = vmatprep.subr.bf16.mxu0 0
        %1064 = vmatpush1.bf16.xpose.msra.mxu0 0
        %1065 = vmatprep.subr.bf16.mxu0 0
        %1066 = vmatpush1.bf16.xpose.msra.mxu0 0
        %1067 = vmatprep.subr.bf16.mxu0 0
        %1068 = vmatpush1.bf16.xpose.msra.mxu0 0
        %1069 = vmatprep.subr.bf16.mxu0 0
        %1070 = vmatpush1.bf16.xpose.msra.mxu0 0
        %1071 = vmatprep.subr.bf16.mxu0 0
        %1072 = vmatpush1.bf16.xpose.msra.mxu0 0
        %1073 = vmatprep.subr.bf16.mxu0 0
        %1074 = vmatpush1.bf16.xpose.msra.mxu0 0
        %1075 = vmatprep.subr.bf16.mxu0 0
        %1076 = vmatpush1.bf16.xpose.msra.mxu0 0
        %1077 = vmatprep.subr.bf16.mxu0 0
        %1078 = vmatpush1.bf16.xpose.msra.mxu0 %v1061
        %1079 = vmatprep.subr.bf16.mxu0 0
        %1080 = vmatpush2.bf16.xpose.msra.mxu0 0
        %1081 = vmatprep.subr.bf16.mxu0 0
        %1082 = vmatpush2.bf16.xpose.msra.mxu0 0
        %1083 = vmatprep.subr.bf16.mxu0 0
        %1084 = vmatpush2.bf16.xpose.msra.mxu0 0
        %1085 = vmatprep.subr.bf16.mxu0 0
        %1086 = vmatpush2.bf16.xpose.msra.mxu0 0
        %1087 = vmatprep.subr.bf16.mxu0 0
        %1088 = vmatpush2.bf16.xpose.msra.mxu0 0
        %1089 = vmatprep.subr.bf16.mxu0 0
        %1090 = vmatpush2.bf16.xpose.msra.mxu0 0
        %1091 = vmatprep.subr.bf16.mxu0 0
        %1092 = vmatpush2.bf16.xpose.msra.mxu0 0
        %1093 = vmatprep.subr.bf16.mxu0 0
        %1094 = vmatpush2.bf16.xpose.msra.mxu0 0
        %1095 = vmatprep.mubr.bf16.mxu0 0
        %1096 = vmatmul.mubr.bf16.gmra.mxu0 %v1058
        %v1097 = vpop.f32.mrf.mxu0
        %v1098 = vadd.f32 0.0, %v1097
        %v1099 = vpop.f32.mrf.mxu0
        %v1100 = vpop.f32.mrf.mxu0
        %v1101 = vpop.f32.mrf.mxu0
        %1102 = vdwg.mxu0
        %v1103 = vsel %vm587, %v1098, -inf
        %1104 = vmax.xlane.f32.xlu0 %v1103
        %v1105 = vpop.xlane.xlu0 %1104
        %v1106 = vsub.f32 %v1098, %v1105
        %v1107 = vmul.f32 %v1106, 1.442695
        %v1108 = vpow.pop %v1107
        %v1109 = vsel %vm587, %v1108, 0.0
        %1110 = vadd.xlane.f32.xlu0 %v1109
        %v1111 = vpop.xlane.xlu0 %1110
        %v1112 = vrcp.pop %v1111
        %v1113 = vmul.f32 %v1108, %v1112
        %v1114 = vpack.c.bf16 %v1113, %v1113
        %1115 = vrot.lane.b32.xlu0 %v538, 32
        %v1116 = vpop.permute.xlu0 %1115
        %v1118 = vsel %vm587, %v1114, 0
        %v1121 = vsel %vm603, %v1116, 0
        %1123 = vmatprep.subr.bf16.mxu0 0
        %1124 = vmatpush1.bf16.msra.mxu0 0
        %1125 = vmatprep.subr.bf16.mxu0 0
        %1126 = vmatpush1.bf16.msra.mxu0 0
        %1127 = vmatprep.subr.bf16.mxu0 0
        %1128 = vmatpush1.bf16.msra.mxu0 0
        %1129 = vmatprep.subr.bf16.mxu0 0
        %1130 = vmatpush1.bf16.msra.mxu0 0
        %1131 = vmatprep.subr.bf16.mxu0 0
        %1132 = vmatpush1.bf16.msra.mxu0 0
        %1133 = vmatprep.subr.bf16.mxu0 0
        %1134 = vmatpush1.bf16.msra.mxu0 0
        %1135 = vmatprep.subr.bf16.mxu0 0
        %1136 = vmatpush1.bf16.msra.mxu0 0
        %1137 = vmatprep.subr.bf16.mxu0 0
        %1138 = vmatpush1.bf16.msra.mxu0 %v1121
        %1139 = vmatprep.subr.bf16.mxu0 0
        %1140 = vmatpush2.bf16.msra.mxu0 0
        %1141 = vmatprep.subr.bf16.mxu0 0
        %1142 = vmatpush2.bf16.msra.mxu0 0
        %1143 = vmatprep.subr.bf16.mxu0 0
        %1144 = vmatpush2.bf16.msra.mxu0 0
        %1145 = vmatprep.subr.bf16.mxu0 0
        %1146 = vmatpush2.bf16.msra.mxu0 0
        %1147 = vmatprep.subr.bf16.mxu0 0
        %1148 = vmatpush2.bf16.msra.mxu0 0
        %1149 = vmatprep.subr.bf16.mxu0 0
        %1150 = vmatpush2.bf16.msra.mxu0 0
        %1151 = vmatprep.subr.bf16.mxu0 0
        %1152 = vmatpush2.bf16.msra.mxu0 0
        %1153 = vmatprep.subr.bf16.mxu0 0
        %1154 = vmatpush2.bf16.msra.mxu0 0
        %1155 = vmatprep.mubr.bf16.mxu0 0
        %1156 = vmatmul.mubr.bf16.gmra.mxu0 %v1118
        %v1157 = vpop.f32.mrf.mxu0
        %v1158 = vadd.f32 0.0, %v1157
        %v1159 = vpop.f32.mrf.mxu0
        %v1160 = vpop.f32.mrf.mxu0
        %v1161 = vpop.f32.mrf.mxu0
        %1162 = vdwg.mxu0
        %v1163 = vld [vmem:[#allocation2 + $0x1b0] sm:$0xf]
        %v1164 = vld [vmem:[#allocation2 + $0x1bc] sm:$0xf]
        %v1165 = vld [vmem:[#allocation2 + $0x1c8] sm:$0xf]
        %v1166 = vld [vmem:[#allocation2 + $0x1d4] sm:$0xf]
        %v1167 = vpack.c.bf16 %v1158, %v1158
        %v1172 = vunpack.c.l.b16 %v1163
        %v1173 = vunpack.c.l.b16 %v1164
        %v1174 = vunpack.c.l.b16 %v1165
        %v1175 = vunpack.c.l.b16 %v1166
        %v1176 = vpack.c.b16 %v1173, %v1172
        %v1177 = vpack.c.b16 %v1175, %v1174
        %v1181 = vsel %vm540, %v1167, 0
        %1183 = vmatprep.subr.bf16.mxu0 0
        %1184 = vmatpush1.bf16.msra.mxu0 0
        %1185 = vmatprep.subr.bf16.mxu0 0
        %1186 = vmatpush1.bf16.msra.mxu0 0
        %1187 = vmatprep.subr.bf16.mxu0 0
        %1188 = vmatpush1.bf16.msra.mxu0 0
        %1189 = vmatprep.subr.bf16.mxu0 0
        %1190 = vmatpush1.bf16.msra.mxu0 0
        %1191 = vmatprep.subr.bf16.mxu0 0
        %1192 = vmatpush1.bf16.msra.mxu0 0
        %1193 = vmatprep.subr.bf16.mxu0 0
        %1194 = vmatpush1.bf16.msra.mxu0 0
        %1195 = vmatprep.subr.bf16.mxu0 0
        %1196 = vmatpush1.bf16.msra.mxu0 %v1177
        %1197 = vmatprep.subr.bf16.mxu0 0
        %1198 = vmatpush1.bf16.msra.mxu0 %v1176
        %1199 = vmatprep.subr.bf16.mxu0 0
        %1200 = vmatpush2.bf16.msra.mxu0 0
        %1201 = vmatprep.subr.bf16.mxu0 0
        %1202 = vmatpush2.bf16.msra.mxu0 0
        %1203 = vmatprep.subr.bf16.mxu0 0
        %1204 = vmatpush2.bf16.msra.mxu0 0
        %1205 = vmatprep.subr.bf16.mxu0 0
        %1206 = vmatpush2.bf16.msra.mxu0 0
        %1207 = vmatprep.subr.bf16.mxu0 0
        %1208 = vmatpush2.bf16.msra.mxu0 0
        %1209 = vmatprep.subr.bf16.mxu0 0
        %1210 = vmatpush2.bf16.msra.mxu0 0
        %1211 = vmatprep.subr.bf16.mxu0 0
        %1212 = vmatpush2.bf16.msra.mxu0 0
        %1213 = vmatprep.subr.bf16.mxu0 0
        %1214 = vmatpush2.bf16.msra.mxu0 0
        %1215 = vmatprep.mubr.bf16.mxu0 0
        %1216 = vmatmul.mubr.bf16.gmra.mxu0 %v1181
        %v1217 = vpop.f32.mrf.mxu0
        %v1218 = vadd.f32 0.0, %v1217
        %v1219 = vpop.f32.mrf.mxu0
        %v1220 = vpop.f32.mrf.mxu0
        %v1221 = vpop.f32.mrf.mxu0
        %1222 = vdwg.mxu0
        %v1223 = vadd.f32 %v1052, %v1218
        %v1224 = vadd.f32 %v270, %v1223
        %v1225 = vld [vmem:[#allocation4 + $0x3] ss:$0 sm:$0xff]
        %v1226 = vld [vmem:[#allocation4 + $0x4] ss:$0 sm:$0xff]
        %1227 = vadd.xlane.f32.xlu0 %v1224
        %v1228 = vpop.xlane.xlu0 %1227
        %v1229 = vrcp.pop 128.0
        %v1230 = vmul.f32 %v1228, %v1229
        %v1231 = vsub.f32 %v1224, %v1230
        %v1232 = vmul.f32 %v1231, %v1231
        %1233 = vadd.xlane.f32.xlu0 %v1232
        %v1234 = vpop.xlane.xlu0 %1233
        %v1235 = vmul.f32 %v1234, %v1229
        %v1236 = vadd.f32 %v1235, 1e-05
        %v1237 = vrsqrt.pop %v1236
        %v1238 = vmul.f32 %v1231, %v1237
        %v1239 = vmul.f32 %v1238, %v1225
        %v1240 = vadd.f32 %v1239, %v1226
        %v1241 = vpack.c.bf16 %v1240, %v1240
        %v1242 = vld [vmem:[#allocation2 + $0x1e0] sm:$0xff]
        %v1243 = vld [vmem:[#allocation2 + $0x1ec] sm:$0xff]
        %v1244 = vld [vmem:[#allocation2 + $0x1f8] sm:$0xff]
        %v1245 = vld [vmem:[#allocation2 + $0x204] sm:$0xff]
        %v1246 = vld [vmem:[#allocation2 + $0x210] sm:$0xff]
        %v1247 = vld [vmem:[#allocation2 + $0x21c] sm:$0xff]
        %v1248 = vld [vmem:[#allocation2 + $0x228] sm:$0xff]
        %v1249 = vld [vmem:[#allocation2 + $0x234] sm:$0xff]
        %v1250 = vld [vmem:[#allocation2 + $0x240] sm:$0xff]
        %v1251 = vld [vmem:[#allocation2 + $0x24c] sm:$0xff]
        %v1252 = vld [vmem:[#allocation2 + $0x258] sm:$0xff]
        %v1253 = vld [vmem:[#allocation2 + $0x264] sm:$0xff]
        %v1254 = vld [vmem:[#allocation2 + $0x270] sm:$0xff]
        %v1255 = vld [vmem:[#allocation2 + $0x27c] sm:$0xff]
        %v1256 = vld [vmem:[#allocation2 + $0x288] sm:$0xff]
        %v1257 = vld [vmem:[#allocation2 + $0x294] sm:$0xff]
        %s1258 = scalar_lea.vmem [#allocation4], 5
        %v1259 = vld [vmem:[%s1258] ss:$8 sm:$0x3]
        %v1261 = vlaneseq
        %v1262 = vshrl.u32 %v1261, 7
        %v1263 = vsub.s32 0, %v1262
        %v1264 = vrot.slane %v1259, %v1263
        %v1265 = vlaneseq
        %v1266 = vshrl.u32 %v1265, 7
        %v1267 = vsub.s32 1, %v1266
        %v1268 = vrot.slane %v1259, %v1267
        %v1287 = vunpack.c.l.b16 %v1242
        %v1288 = vunpack.c.h.b16 %v1242
        %v1289 = vunpack.c.l.b16 %v1243
        %v1290 = vunpack.c.h.b16 %v1243
        %v1291 = vunpack.c.l.b16 %v1244
        %v1292 = vunpack.c.h.b16 %v1244
        %v1293 = vunpack.c.l.b16 %v1245
        %v1294 = vunpack.c.h.b16 %v1245
        %v1295 = vunpack.c.l.b16 %v1246
        %v1296 = vunpack.c.h.b16 %v1246
        %v1297 = vunpack.c.l.b16 %v1247
        %v1298 = vunpack.c.h.b16 %v1247
        %v1299 = vunpack.c.l.b16 %v1248
        %v1300 = vunpack.c.h.b16 %v1248
        %v1301 = vunpack.c.l.b16 %v1249
        %v1302 = vunpack.c.h.b16 %v1249
        %v1303 = vunpack.c.l.b16 %v1250
        %v1304 = vunpack.c.h.b16 %v1250
        %v1305 = vunpack.c.l.b16 %v1251
        %v1306 = vunpack.c.h.b16 %v1251
        %v1307 = vunpack.c.l.b16 %v1252
        %v1308 = vunpack.c.h.b16 %v1252
        %v1309 = vunpack.c.l.b16 %v1253
        %v1310 = vunpack.c.h.b16 %v1253
        %v1311 = vunpack.c.l.b16 %v1254
        %v1312 = vunpack.c.h.b16 %v1254
        %v1313 = vunpack.c.l.b16 %v1255
        %v1314 = vunpack.c.h.b16 %v1255
        %v1315 = vunpack.c.l.b16 %v1256
        %v1316 = vunpack.c.h.b16 %v1256
        %v1317 = vunpack.c.l.b16 %v1257
        %v1318 = vunpack.c.h.b16 %v1257
        %v1319 = vpack.c.b16 %v1289, %v1287
        %v1320 = vpack.c.b16 %v1290, %v1288
        %v1321 = vpack.c.b16 %v1293, %v1291
        %v1322 = vpack.c.b16 %v1294, %v1292
        %v1323 = vpack.c.b16 %v1297, %v1295
        %v1324 = vpack.c.b16 %v1298, %v1296
        %v1325 = vpack.c.b16 %v1301, %v1299
        %v1326 = vpack.c.b16 %v1302, %v1300
        %v1327 = vpack.c.b16 %v1305, %v1303
        %v1328 = vpack.c.b16 %v1306, %v1304
        %v1329 = vpack.c.b16 %v1309, %v1307
        %v1330 = vpack.c.b16 %v1310, %v1308
        %v1331 = vpack.c.b16 %v1313, %v1311
        %v1332 = vpack.c.b16 %v1314, %v1312
        %v1333 = vpack.c.b16 %v1317, %v1315
        %v1334 = vpack.c.b16 %v1318, %v1316
        %1351 = vmatprep.subr.bf16.mxu0 %v1334
        %1352 = vmatpush1.bf16.msra.mxu0 %v1333
        %1353 = vmatprep.subr.bf16.mxu0 %v1332
        %1354 = vmatpush1.bf16.msra.mxu0 %v1331
        %1355 = vmatprep.subr.bf16.mxu0 %v1330
        %1356 = vmatpush1.bf16.msra.mxu0 %v1329
        %1357 = vmatprep.subr.bf16.mxu0 %v1328
        %1358 = vmatpush1.bf16.msra.mxu0 %v1327
        %1359 = vmatprep.subr.bf16.mxu0 %v1326
        %1360 = vmatpush1.bf16.msra.mxu0 %v1325
        %1361 = vmatprep.subr.bf16.mxu0 %v1324
        %1362 = vmatpush1.bf16.msra.mxu0 %v1323
        %1363 = vmatprep.subr.bf16.mxu0 %v1322
        %1364 = vmatpush1.bf16.msra.mxu0 %v1321
        %1365 = vmatprep.subr.bf16.mxu0 %v1320
        %1366 = vmatpush1.bf16.msra.mxu0 %v1319
        %1367 = vmatprep.subr.bf16.mxu0 0
        %1368 = vmatpush2.bf16.msra.mxu0 0
        %1369 = vmatprep.subr.bf16.mxu0 0
        %1370 = vmatpush2.bf16.msra.mxu0 0
        %1371 = vmatprep.subr.bf16.mxu0 0
        %1372 = vmatpush2.bf16.msra.mxu0 0
        %1373 = vmatprep.subr.bf16.mxu0 0
        %1374 = vmatpush2.bf16.msra.mxu0 0
        %1375 = vmatprep.subr.bf16.mxu0 0
        %1376 = vmatpush2.bf16.msra.mxu0 0
        %1377 = vmatprep.subr.bf16.mxu0 0
        %1378 = vmatpush2.bf16.msra.mxu0 0
        %1379 = vmatprep.subr.bf16.mxu0 0
        %1380 = vmatpush2.bf16.msra.mxu0 0
        %1381 = vmatprep.subr.bf16.mxu0 0
        %1382 = vmatpush2.bf16.msra.mxu0 0
        %1383 = vmatprep.mubr.bf16.mxu0 0
        %1384 = vmatmul.mubr.bf16.gmra.mxu0 %v1241
        %v1385 = vpop.f32.mrf.mxu0
        %v1386 = vadd.f32 %v1264, %v1385
        %v1387 = vpop.f32.mrf.mxu0
        %v1388 = vadd.f32 %v1268, %v1387
        %v1389 = vpop.f32.mrf.mxu0
        %v1390 = vpop.f32.mrf.mxu0
        %1391 = vdwg.mxu0
        %v1392 = vmul.f32 %v1386, 0.5
        %v1393 = vmul.f32 %v1388, 0.5
        %v1394 = vmul.f32 %v1386, 0.044715
        %v1395 = vmul.f32 %v1388, 0.044715
        %v1396 = vmul.f32 %v1394, %v1386
        %v1397 = vmul.f32 %v1395, %v1388
        %v1398 = vmul.f32 %v1396, %v1386
        %v1399 = vmul.f32 %v1397, %v1388
        %v1400 = vadd.f32 %v1386, %v1398
        %v1401 = vadd.f32 %v1388, %v1399
        %v1402 = vmul.f32 %v1400, 0.7978846
        %v1403 = vmul.f32 %v1401, 0.7978846
        %v1404 = vtanh.pop %v1402
        %v1405 = vtanh.pop %v1403
        %v1406 = vadd.f32 %v1404, 1.0
        %v1407 = vadd.f32 %v1405, 1.0
        %v1408 = vmul.f32 %v1392, %v1406
        %v1409 = vmul.f32 %v1393, %v1407
        %v1410 = vpack.c.bf16 %v1408, %v1408
        %v1411 = vpack.c.bf16 %v1409, %v1409
        %v1412 = vld [vmem:[#allocation2 + $0x2a0] sm:$0xf]
        %v1413 = vld [vmem:[#allocation2 + $0x2ac] sm:$0xf]
        %v1414 = vld [vmem:[#allocation2 + $0x2b8] sm:$0xf]
        %v1415 = vld [vmem:[#allocation2 + $0x2c4] sm:$0xf]
        %v1416 = vld [vmem:[#allocation2 + $0x2d0] sm:$0xf]
        %v1417 = vld [vmem:[#allocation2 + $0x2dc] sm:$0xf]
        %v1418 = vld [vmem:[#allocation2 + $0x2e8] sm:$0xf]
        %v1419 = vld [vmem:[#allocation2 + $0x2f4] sm:$0xf]
        %v1420 = vld [vmem:[#allocation2 + $0x300] sm:$0xf]
        %v1421 = vld [vmem:[#allocation2 + $0x30c] sm:$0xf]
        %v1422 = vld [vmem:[#allocation2 + $0x318] sm:$0xf]
        %v1423 = vld [vmem:[#allocation2 + $0x324] sm:$0xf]
        %v1424 = vld [vmem:[#allocation2 + $0x330] sm:$0xf]
        %v1425 = vld [vmem:[#allocation2 + $0x33c] sm:$0xf]
        %v1426 = vld [vmem:[#allocation2 + $0x348] sm:$0xf]
        %v1427 = vld [vmem:[#allocation2 + $0x354] sm:$0xf]
        %v1428 = vld [vmem:[#allocation2 + $0x360] sm:$0xf]
        %v1429 = vld [vmem:[#allocation2 + $0x36c] sm:$0xf]
        %v1430 = vld [vmem:[#allocation2 + $0x378] sm:$0xf]
        %v1431 = vld [vmem:[#allocation2 + $0x384] sm:$0xf]
        %v1432 = vld [vmem:[#allocation2 + $0x390] sm:$0xf]
        %v1433 = vld [vmem:[#allocation2 + $0x39c] sm:$0xf]
        %v1434 = vld [vmem:[#allocation2 + $0x3a8] sm:$0xf]
        %v1435 = vld [vmem:[#allocation2 + $0x3b4] sm:$0xf]
        %v1436 = vld [vmem:[#allocation2 + $0x3c0] sm:$0xf]
        %v1437 = vld [vmem:[#allocation2 + $0x3cc] sm:$0xf]
        %v1438 = vld [vmem:[#allocation2 + $0x3d8] sm:$0xf]
        %v1439 = vld [vmem:[#allocation2 + $0x3e4] sm:$0xf]
        %v1440 = vld [vmem:[#allocation2 + $0x3f0] sm:$0xf]
        %v1441 = vld [vmem:[#allocation2 + $0x3fc] sm:$0xf]
        %v1442 = vld [vmem:[#allocation2 + $0x408] sm:$0xf]
        %v1443 = vld [vmem:[#allocation2 + $0x414] sm:$0xf]
        %v1444 = vld [vmem:[#allocation4 + $0x6] ss:$0 sm:$0xff]
        %v1477 = vunpack.c.l.b16 %v1412
        %v1478 = vunpack.c.l.b16 %v1413
        %v1479 = vunpack.c.l.b16 %v1414
        %v1480 = vunpack.c.l.b16 %v1415
        %v1481 = vunpack.c.l.b16 %v1416
        %v1482 = vunpack.c.l.b16 %v1417
        %v1483 = vunpack.c.l.b16 %v1418
        %v1484 = vunpack.c.l.b16 %v1419
        %v1485 = vunpack.c.l.b16 %v1420
        %v1486 = vunpack.c.l.b16 %v1421
        %v1487 = vunpack.c.l.b16 %v1422
        %v1488 = vunpack.c.l.b16 %v1423
        %v1489 = vunpack.c.l.b16 %v1424
        %v1490 = vunpack.c.l.b16 %v1425
        %v1491 = vunpack.c.l.b16 %v1426
        %v1492 = vunpack.c.l.b16 %v1427
        %v1493 = vunpack.c.l.b16 %v1428
        %v1494 = vunpack.c.l.b16 %v1429
        %v1495 = vunpack.c.l.b16 %v1430
        %v1496 = vunpack.c.l.b16 %v1431
        %v1497 = vunpack.c.l.b16 %v1432
        %v1498 = vunpack.c.l.b16 %v1433
        %v1499 = vunpack.c.l.b16 %v1434
        %v1500 = vunpack.c.l.b16 %v1435
        %v1501 = vunpack.c.l.b16 %v1436
        %v1502 = vunpack.c.l.b16 %v1437
        %v1503 = vunpack.c.l.b16 %v1438
        %v1504 = vunpack.c.l.b16 %v1439
        %v1505 = vunpack.c.l.b16 %v1440
        %v1506 = vunpack.c.l.b16 %v1441
        %v1507 = vunpack.c.l.b16 %v1442
        %v1508 = vunpack.c.l.b16 %v1443
        %v1509 = vpack.c.b16 %v1478, %v1477
        %v1510 = vpack.c.b16 %v1480, %v1479
        %v1511 = vpack.c.b16 %v1482, %v1481
        %v1512 = vpack.c.b16 %v1484, %v1483
        %v1513 = vpack.c.b16 %v1486, %v1485
        %v1514 = vpack.c.b16 %v1488, %v1487
        %v1515 = vpack.c.b16 %v1490, %v1489
        %v1516 = vpack.c.b16 %v1492, %v1491
        %v1517 = vpack.c.b16 %v1494, %v1493
        %v1518 = vpack.c.b16 %v1496, %v1495
        %v1519 = vpack.c.b16 %v1498, %v1497
        %v1520 = vpack.c.b16 %v1500, %v1499
        %v1521 = vpack.c.b16 %v1502, %v1501
        %v1522 = vpack.c.b16 %v1504, %v1503
        %v1523 = vpack.c.b16 %v1506, %v1505
        %v1524 = vpack.c.b16 %v1508, %v1507
        %1541 = vmatprep.subr.bf16.mxu0 0
        %1542 = vmatpush1.bf16.msra.mxu0 %v1516
        %1543 = vmatprep.subr.bf16.mxu0 0
        %1544 = vmatpush1.bf16.msra.mxu0 %v1515
        %1545 = vmatprep.subr.bf16.mxu0 0
        %1546 = vmatpush1.bf16.msra.mxu0 %v1514
        %1547 = vmatprep.subr.bf16.mxu0 0
        %1548 = vmatpush1.bf16.msra.mxu0 %v1513
        %1549 = vmatprep.subr.bf16.mxu0 0
        %1550 = vmatpush1.bf16.msra.mxu0 %v1512
        %1551 = vmatprep.subr.bf16.mxu0 0
        %1552 = vmatpush1.bf16.msra.mxu0 %v1511
        %1553 = vmatprep.subr.bf16.mxu0 0
        %1554 = vmatpush1.bf16.msra.mxu0 %v1510
        %1555 = vmatprep.subr.bf16.mxu0 0
        %1556 = vmatpush1.bf16.msra.mxu0 %v1509
        %1557 = vmatprep.subr.bf16.mxu0 0
        %1558 = vmatpush2.bf16.msra.mxu0 %v1524
        %1559 = vmatprep.subr.bf16.mxu0 0
        %1560 = vmatpush2.bf16.msra.mxu0 %v1523
        %1561 = vmatprep.subr.bf16.mxu0 0
        %1562 = vmatpush2.bf16.msra.mxu0 %v1522
        %1563 = vmatprep.subr.bf16.mxu0 0
        %1564 = vmatpush2.bf16.msra.mxu0 %v1521
        %1565 = vmatprep.subr.bf16.mxu0 0
        %1566 = vmatpush2.bf16.msra.mxu0 %v1520
        %1567 = vmatprep.subr.bf16.mxu0 0
        %1568 = vmatpush2.bf16.msra.mxu0 %v1519
        %1569 = vmatprep.subr.bf16.mxu0 0
        %1570 = vmatpush2.bf16.msra.mxu0 %v1518
        %1571 = vmatprep.subr.bf16.mxu0 0
        %1572 = vmatpush2.bf16.msra.mxu0 %v1517
        %1573 = vmatprep.mubr.bf16.mxu0 %v1411
        %1574 = vmatmul.mubr.bf16.gmra.mxu0 %v1410
        %v1575 = vpop.f32.mrf.mxu0
        %v1576 = vadd.f32 %v1444, %v1575
        %v1577 = vpop.f32.mrf.mxu0
        %v1578 = vpop.f32.mrf.mxu0
        %v1579 = vpop.f32.mrf.mxu0
        %1580 = vdwg.mxu0
        %v1581 = vadd.f32 %v1240, %v1576
        %v1582 = vld [vmem:[#allocation4 + $0x7] ss:$0 sm:$0xff]
        %v1583 = vld [vmem:[#allocation4 + $0x18] ss:$0 sm:$0xff]
        %1584 = vadd.xlane.f32.xlu0 %v1581
        %v1585 = vpop.xlane.xlu0 %1584
        %v1586 = vmul.f32 %v1585, %v1229
        %v1587 = vsub.f32 %v1581, %v1586
        %v1588 = vmul.f32 %v1587, %v1587
        %1589 = vadd.xlane.f32.xlu0 %v1588
        %v1590 = vpop.xlane.xlu0 %1589
        %v1591 = vmul.f32 %v1590, %v1229
        %v1592 = vadd.f32 %v1591, 1e-05
        %v1593 = vrsqrt.pop %v1592
        %v1594 = vmul.f32 %v1587, %v1593
        %v1595 = vmul.f32 %v1594, %v1582
        %v1596 = vadd.f32 %v1595, %v1583
        %v1597 = vpack.c.bf16 %v1596, %v1596
        %v1598 = vld [vmem:[#allocation2 + $0x420] sm:$0xff]
        %v1599 = vld [vmem:[#allocation2 + $0x428] sm:$0xf]
        %v1600 = vld [vmem:[#allocation2 + $0x42c] sm:$0xff]
        %v1601 = vld [vmem:[#allocation2 + $0x434] sm:$0xf]
        %v1602 = vld [vmem:[#allocation2 + $0x438] sm:$0xff]
        %v1603 = vld [vmem:[#allocation2 + $0x440] sm:$0xf]
        %v1604 = vld [vmem:[#allocation2 + $0x444] sm:$0xff]
        %v1605 = vld [vmem:[#allocation2 + $0x44c] sm:$0xf]
        %v1606 = vld [vmem:[#allocation2 + $0x450] sm:$0xff]
        %v1607 = vld [vmem:[#allocation2 + $0x458] sm:$0xf]
        %v1608 = vld [vmem:[#allocation2 + $0x45c] sm:$0xff]
        %v1609 = vld [vmem:[#allocation2 + $0x464] sm:$0xf]
        %v1610 = vld [vmem:[#allocation2 + $0x468] sm:$0xff]
        %v1611 = vld [vmem:[#allocation2 + $0x470] sm:$0xf]
        %v1612 = vld [vmem:[#allocation2 + $0x474] sm:$0xff]
        %v1613 = vld [vmem:[#allocation2 + $0x47c] sm:$0xf]
        %v1614 = vld [vmem:[#allocation2 + $0x480] sm:$0xff]
        %v1615 = vld [vmem:[#allocation2 + $0x488] sm:$0xf]
        %v1616 = vld [vmem:[#allocation2 + $0x48c] sm:$0xff]
        %v1617 = vld [vmem:[#allocation2 + $0x494] sm:$0xf]
        %v1618 = vld [vmem:[#allocation2 + $0x498] sm:$0xff]
        %v1619 = vld [vmem:[#allocation2 + $0x4a0] sm:$0xf]
        %v1620 = vld [vmem:[#allocation2 + $0x4a4] sm:$0xff]
        %v1621 = vld [vmem:[#allocation2 + $0x4ac] sm:$0xf]
        %v1622 = vld [vmem:[#allocation2 + $0x4b0] sm:$0xff]
        %v1623 = vld [vmem:[#allocation2 + $0x4b8] sm:$0xf]
        %v1624 = vld [vmem:[#allocation2 + $0x4bc] sm:$0xff]
        %v1625 = vld [vmem:[#allocation2 + $0x4c4] sm:$0xf]
        %v1626 = vld [vmem:[#allocation2 + $0x4c8] sm:$0xff]
        %v1627 = vld [vmem:[#allocation2 + $0x4d0] sm:$0xf]
        %v1628 = vld [vmem:[#allocation2 + $0x4d4] sm:$0xff]
        %v1629 = vld [vmem:[#allocation2 + $0x4dc] sm:$0xf]
        %s1630 = scalar_lea.vmem [#allocation4], 25
        %v1631 = vld [vmem:[%s1630] ss:$8 sm:$0x7]
        %v1633 = vlaneseq
        %v1634 = vshrl.u32 %v1633, 7
        %v1635 = vsub.s32 0, %v1634
        %v1636 = vrot.slane %v1631, %v1635
        %v1637 = vlaneseq
        %v1638 = vshrl.u32 %v1637, 7
        %v1639 = vsub.s32 1, %v1638
        %v1640 = vrot.slane %v1631, %v1639
        %v1641 = vlaneseq
        %v1642 = vshrl.u32 %v1641, 7
        %v1643 = vsub.s32 2, %v1642
        %v1644 = vrot.slane %v1631, %v1643
        %v1680 = vunpack.c.l.b16 %v1598
        %v1681 = vunpack.c.h.b16 %v1598
        %v1682 = vunpack.c.l.b16 %v1599
        %v1683 = vunpack.c.l.b16 %v1600
        %v1684 = vunpack.c.h.b16 %v1600
        %v1685 = vunpack.c.l.b16 %v1601
        %v1686 = vunpack.c.l.b16 %v1602
        %v1687 = vunpack.c.h.b16 %v1602
        %v1688 = vunpack.c.l.b16 %v1603
        %v1689 = vunpack.c.l.b16 %v1604
        %v1690 = vunpack.c.h.b16 %v1604
        %v1691 = vunpack.c.l.b16 %v1605
        %v1692 = vunpack.c.l.b16 %v1606
        %v1693 = vunpack.c.h.b16 %v1606
        %v1694 = vunpack.c.l.b16 %v1607
        %v1695 = vunpack.c.l.b16 %v1608
        %v1696 = vunpack.c.h.b16 %v1608
        %v1697 = vunpack.c.l.b16 %v1609
        %v1698 = vunpack.c.l.b16 %v1610
        %v1699 = vunpack.c.h.b16 %v1610
        %v1700 = vunpack.c.l.b16 %v1611
        %v1701 = vunpack.c.l.b16 %v1612
        %v1702 = vunpack.c.h.b16 %v1612
        %v1703 = vunpack.c.l.b16 %v1613
        %v1704 = vunpack.c.l.b16 %v1614
        %v1705 = vunpack.c.h.b16 %v1614
        %v1706 = vunpack.c.l.b16 %v1615
        %v1707 = vunpack.c.l.b16 %v1616
        %v1708 = vunpack.c.h.b16 %v1616
        %v1709 = vunpack.c.l.b16 %v1617
        %v1710 = vunpack.c.l.b16 %v1618
        %v1711 = vunpack.c.h.b16 %v1618
        %v1712 = vunpack.c.l.b16 %v1619
        %v1713 = vunpack.c.l.b16 %v1620
        %v1714 = vunpack.c.h.b16 %v1620
        %v1715 = vunpack.c.l.b16 %v1621
        %v1716 = vunpack.c.l.b16 %v1622
        %v1717 = vunpack.c.h.b16 %v1622
        %v1718 = vunpack.c.l.b16 %v1623
        %v1719 = vunpack.c.l.b16 %v1624
        %v1720 = vunpack.c.h.b16 %v1624
        %v1721 = vunpack.c.l.b16 %v1625
        %v1722 = vunpack.c.l.b16 %v1626
        %v1723 = vunpack.c.h.b16 %v1626
        %v1724 = vunpack.c.l.b16 %v1627
        %v1725 = vunpack.c.l.b16 %v1628
        %v1726 = vunpack.c.h.b16 %v1628
        %v1727 = vunpack.c.l.b16 %v1629
        %v1728 = vpack.c.b16 %v1683, %v1680
        %v1729 = vpack.c.b16 %v1684, %v1681
        %v1730 = vpack.c.b16 %v1685, %v1682
        %v1731 = vpack.c.b16 %v1689, %v1686
        %v1732 = vpack.c.b16 %v1690, %v1687
        %v1733 = vpack.c.b16 %v1691, %v1688
        %v1734 = vpack.c.b16 %v1695, %v1692
        %v1735 = vpack.c.b16 %v1696, %v1693
        %v1736 = vpack.c.b16 %v1697, %v1694
        %v1737 = vpack.c.b16 %v1701, %v1698
        %v1738 = vpack.c.b16 %v1702, %v1699
        %v1739 = vpack.c.b16 %v1703, %v1700
        %v1740 = vpack.c.b16 %v1707, %v1704
        %v1741 = vpack.c.b16 %v1708, %v1705
        %v1742 = vpack.c.b16 %v1709, %v1706
        %v1743 = vpack.c.b16 %v1713, %v1710
        %v1744 = vpack.c.b16 %v1714, %v1711
        %v1745 = vpack.c.b16 %v1715, %v1712
        %v1746 = vpack.c.b16 %v1719, %v1716
        %v1747 = vpack.c.b16 %v1720, %v1717
        %v1748 = vpack.c.b16 %v1721, %v1718
        %v1749 = vpack.c.b16 %v1725, %v1722
        %v1750 = vpack.c.b16 %v1726, %v1723
        %v1751 = vpack.c.b16 %v1727, %v1724
        %1776 = vmatprep.subr.bf16.mxu0 %v1750
        %1777 = vmatpush1.bf16.msra.mxu0 %v1749
        %1778 = vmatprep.subr.bf16.mxu0 %v1747
        %1779 = vmatpush1.bf16.msra.mxu0 %v1746
        %1780 = vmatprep.subr.bf16.mxu0 %v1744
        %1781 = vmatpush1.bf16.msra.mxu0 %v1743
        %1782 = vmatprep.subr.bf16.mxu0 %v1741
        %1783 = vmatpush1.bf16.msra.mxu0 %v1740
        %1784 = vmatprep.subr.bf16.mxu0 %v1738
        %1785 = vmatpush1.bf16.msra.mxu0 %v1737
        %1786 = vmatprep.subr.bf16.mxu0 %v1735
        %1787 = vmatpush1.bf16.msra.mxu0 %v1734
        %1788 = vmatprep.subr.bf16.mxu0 %v1732
        %1789 = vmatpush1.bf16.msra.mxu0 %v1731
        %1790 = vmatprep.subr.bf16.mxu0 %v1729
        %1791 = vmatpush1.bf16.msra.mxu0 %v1728
        %1792 = vmatprep.subr.bf16.mxu0 0
        %1793 = vmatpush2.bf16.msra.mxu0 0
        %1794 = vmatprep.subr.bf16.mxu0 0
        %1795 = vmatpush2.bf16.msra.mxu0 0
        %1796 = vmatprep.subr.bf16.mxu0 0
        %1797 = vmatpush2.bf16.msra.mxu0 0
        %1798 = vmatprep.subr.bf16.mxu0 0
        %1799 = vmatpush2.bf16.msra.mxu0 0
        %1800 = vmatprep.subr.bf16.mxu0 0
        %1801 = vmatpush2.bf16.msra.mxu0 0
        %1802 = vmatprep.subr.bf16.mxu0 0
        %1803 = vmatpush2.bf16.msra.mxu0 0
        %1804 = vmatprep.subr.bf16.mxu0 0
        %1805 = vmatpush2.bf16.msra.mxu0 0
        %1806 = vmatprep.subr.bf16.mxu0 0
        %1807 = vmatpush2.bf16.msra.mxu0 0
        %1808 = vmatprep.mubr.bf16.mxu0 0
        %1809 = vmatmul.mubr.bf16.gmra.mxu0 %v1597
        %v1810 = vpop.f32.mrf.mxu0
        %v1811 = vadd.f32 %v1636, %v1810
        %v1812 = vpop.f32.mrf.mxu0
        %v1813 = vadd.f32 %v1640, %v1812
        %v1814 = vpop.f32.mrf.mxu0
        %v1815 = vpop.f32.mrf.mxu0
        %1816 = vdwg.mxu0
        %1817 = vmatprep.subr.bf16.mxu0 0
        %1818 = vmatpush1.bf16.msra.mxu0 %v1751
        %1819 = vmatprep.subr.bf16.mxu0 0
        %1820 = vmatpush1.bf16.msra.mxu0 %v1748
        %1821 = vmatprep.subr.bf16.mxu0 0
        %1822 = vmatpush1.bf16.msra.mxu0 %v1745
        %1823 = vmatprep.subr.bf16.mxu0 0
        %1824 = vmatpush1.bf16.msra.mxu0 %v1742
        %1825 = vmatprep.subr.bf16.mxu0 0
        %1826 = vmatpush1.bf16.msra.mxu0 %v1739
        %1827 = vmatprep.subr.bf16.mxu0 0
        %1828 = vmatpush1.bf16.msra.mxu0 %v1736
        %1829 = vmatprep.subr.bf16.mxu0 0
        %1830 = vmatpush1.bf16.msra.mxu0 %v1733
        %1831 = vmatprep.subr.bf16.mxu0 0
        %1832 = vmatpush1.bf16.msra.mxu0 %v1730
        %1833 = vmatprep.subr.bf16.mxu0 0
        %1834 = vmatpush2.bf16.msra.mxu0 0
        %1835 = vmatprep.subr.bf16.mxu0 0
        %1836 = vmatpush2.bf16.msra.mxu0 0
        %1837 = vmatprep.subr.bf16.mxu0 0
        %1838 = vmatpush2.bf16.msra.mxu0 0
        %1839 = vmatprep.subr.bf16.mxu0 0
        %1840 = vmatpush2.bf16.msra.mxu0 0
        %1841 = vmatprep.subr.bf16.mxu0 0
        %1842 = vmatpush2.bf16.msra.mxu0 0
        %1843 = vmatprep.subr.bf16.mxu0 0
        %1844 = vmatpush2.bf16.msra.mxu0 0
        %1845 = vmatprep.subr.bf16.mxu0 0
        %1846 = vmatpush2.bf16.msra.mxu0 0
        %1847 = vmatprep.subr.bf16.mxu0 0
        %1848 = vmatpush2.bf16.msra.mxu0 0
        %1849 = vmatprep.mubr.bf16.mxu0 0
        %1850 = vmatmul.mubr.bf16.gmra.mxu0 %v1597
        %v1851 = vpop.f32.mrf.mxu0
        %v1852 = vadd.f32 %v1644, %v1851
        %v1853 = vpop.f32.mrf.mxu0
        %v1854 = vpop.f32.mrf.mxu0
        %v1855 = vpop.f32.mrf.mxu0
        %1856 = vdwg.mxu0
        %v1857 = vmul.f32 %v1811, 0.17677669
        %v1858 = vpack.c.bf16 %v1857, %v1857
        %v1859 = vpack.c.bf16 %v1813, %v1813
        %v1860 = vpack.c.bf16 %v1852, %v1852
        %v1861 = vld [vmem:[#allocation4 + $0x1a] ss:$0 sm:$0xff]
        %v1863 = vsel %vm540, %v1858, 0
        %v1866 = vsel %vm540, %v1859, 0
        %1868 = vmatprep.subr.bf16.mxu0 0
        %1869 = vmatpush1.bf16.xpose.msra.mxu0 0
        %1870 = vmatprep.subr.bf16.mxu0 0
        %1871 = vmatpush1.bf16.xpose.msra.mxu0 0
        %1872 = vmatprep.subr.bf16.mxu0 0
        %1873 = vmatpush1.bf16.xpose.msra.mxu0 0
        %1874 = vmatprep.subr.bf16.mxu0 0
        %1875 = vmatpush1.bf16.xpose.msra.mxu0 0
        %1876 = vmatprep.subr.bf16.mxu0 0
        %1877 = vmatpush1.bf16.xpose.msra.mxu0 0
        %1878 = vmatprep.subr.bf16.mxu0 0
        %1879 = vmatpush1.bf16.xpose.msra.mxu0 0
        %1880 = vmatprep.subr.bf16.mxu0 0
        %1881 = vmatpush1.bf16.xpose.msra.mxu0 0
        %1882 = vmatprep.subr.bf16.mxu0 0
        %1883 = vmatpush1.bf16.xpose.msra.mxu0 %v1866
        %1884 = vmatprep.subr.bf16.mxu0 0
        %1885 = vmatpush2.bf16.xpose.msra.mxu0 0
        %1886 = vmatprep.subr.bf16.mxu0 0
        %1887 = vmatpush2.bf16.xpose.msra.mxu0 0
        %1888 = vmatprep.subr.bf16.mxu0 0
        %1889 = vmatpush2.bf16.xpose.msra.mxu0 0
        %1890 = vmatprep.subr.bf16.mxu0 0
        %1891 = vmatpush2.bf16.xpose.msra.mxu0 0
        %1892 = vmatprep.subr.bf16.mxu0 0
        %1893 = vmatpush2.bf16.xpose.msra.mxu0 0
        %1894 = vmatprep.subr.bf16.mxu0 0
        %1895 = vmatpush2.bf16.xpose.msra.mxu0 0
        %1896 = vmatprep.subr.bf16.mxu0 0
        %1897 = vmatpush2.bf16.xpose.msra.mxu0 0
        %1898 = vmatprep.subr.bf16.mxu0 0
        %1899 = vmatpush2.bf16.xpose.msra.mxu0 0
        %1900 = vmatprep.mubr.bf16.mxu0 0
        %1901 = vmatmul.mubr.bf16.gmra.mxu0 %v1863
        %v1902 = vpop.f32.mrf.mxu0
        %v1903 = vadd.f32 0.0, %v1902
        %v1904 = vpop.f32.mrf.mxu0
        %v1905 = vpop.f32.mrf.mxu0
        %v1906 = vpop.f32.mrf.mxu0
        %1907 = vdwg.mxu0
        %v1908 = vsel %vm587, %v1903, -inf
        %1909 = vmax.xlane.f32.xlu0 %v1908
        %v1910 = vpop.xlane.xlu0 %1909
        %v1911 = vsub.f32 %v1903, %v1910
        %v1912 = vmul.f32 %v1911, 1.442695
        %v1913 = vpow.pop %v1912
        %v1914 = vsel %vm587, %v1913, 0.0
        %1915 = vadd.xlane.f32.xlu0 %v1914
        %v1916 = vpop.xlane.xlu0 %1915
        %v1917 = vrcp.pop %v1916
        %v1918 = vmul.f32 %v1913, %v1917
        %v1919 = vpack.c.bf16 %v1918, %v1918
        %v1921 = vsel %vm587, %v1919, 0
        %v1924 = vsel %vm603, %v1860, 0
        %1926 = vmatprep.subr.bf16.mxu0 0
        %1927 = vmatpush1.bf16.msra.mxu0 0
        %1928 = vmatprep.subr.bf16.mxu0 0
        %1929 = vmatpush1.bf16.msra.mxu0 0
        %1930 = vmatprep.subr.bf16.mxu0 0
        %1931 = vmatpush1.bf16.msra.mxu0 0
        %1932 = vmatprep.subr.bf16.mxu0 0
        %1933 = vmatpush1.bf16.msra.mxu0 0
        %1934 = vmatprep.subr.bf16.mxu0 0
        %1935 = vmatpush1.bf16.msra.mxu0 0
        %1936 = vmatprep.subr.bf16.mxu0 0
        %1937 = vmatpush1.bf16.msra.mxu0 0
        %1938 = vmatprep.subr.bf16.mxu0 0
        %1939 = vmatpush1.bf16.msra.mxu0 0
        %1940 = vmatprep.subr.bf16.mxu0 0
        %1941 = vmatpush1.bf16.msra.mxu0 %v1924
        %1942 = vmatprep.subr.bf16.mxu0 0
        %1943 = vmatpush2.bf16.msra.mxu0 0
        %1944 = vmatprep.subr.bf16.mxu0 0
        %1945 = vmatpush2.bf16.msra.mxu0 0
        %1946 = vmatprep.subr.bf16.mxu0 0
        %1947 = vmatpush2.bf16.msra.mxu0 0
        %1948 = vmatprep.subr.bf16.mxu0 0
        %1949 = vmatpush2.bf16.msra.mxu0 0
        %1950 = vmatprep.subr.bf16.mxu0 0
        %1951 = vmatpush2.bf16.msra.mxu0 0
        %1952 = vmatprep.subr.bf16.mxu0 0
        %1953 = vmatpush2.bf16.msra.mxu0 0
        %1954 = vmatprep.subr.bf16.mxu0 0
        %1955 = vmatpush2.bf16.msra.mxu0 0
        %1956 = vmatprep.subr.bf16.mxu0 0
        %1957 = vmatpush2.bf16.msra.mxu0 0
        %1958 = vmatprep.mubr.bf16.mxu0 0
        %1959 = vmatmul.mubr.bf16.gmra.mxu0 %v1921
        %v1960 = vpop.f32.mrf.mxu0
        %v1961 = vadd.f32 0.0, %v1960
        %v1962 = vpop.f32.mrf.mxu0
        %v1963 = vpop.f32.mrf.mxu0
        %v1964 = vpop.f32.mrf.mxu0
        %1965 = vdwg.mxu0
        %v1966 = vld [vmem:[#allocation2 + $0x4e0] sm:$0xf]
        %v1967 = vld [vmem:[#allocation2 + $0x4ec] sm:$0xf]
        %v1968 = vld [vmem:[#allocation2 + $0x4f8] sm:$0xf]
        %v1969 = vld [vmem:[#allocation2 + $0x504] sm:$0xf]
        %v1970 = vpack.c.bf16 %v1961, %v1961
        %v1975 = vunpack.c.l.b16 %v1966
        %v1976 = vunpack.c.l.b16 %v1967
        %v1977 = vunpack.c.l.b16 %v1968
        %v1978 = vunpack.c.l.b16 %v1969
        %v1979 = vpack.c.b16 %v1976, %v1975
        %v1980 = vpack.c.b16 %v1978, %v1977
        %v1984 = vsel %vm540, %v1970, 0
        %1986 = vmatprep.subr.bf16.mxu0 0
        %1987 = vmatpush1.bf16.msra.mxu0 0
        %1988 = vmatprep.subr.bf16.mxu0 0
        %1989 = vmatpush1.bf16.msra.mxu0 0
        %1990 = vmatprep.subr.bf16.mxu0 0
        %1991 = vmatpush1.bf16.msra.mxu0 0
        %1992 = vmatprep.subr.bf16.mxu0 0
        %1993 = vmatpush1.bf16.msra.mxu0 0
        %1994 = vmatprep.subr.bf16.mxu0 0
        %1995 = vmatpush1.bf16.msra.mxu0 0
        %1996 = vmatprep.subr.bf16.mxu0 0
        %1997 = vmatpush1.bf16.msra.mxu0 0
        %1998 = vmatprep.subr.bf16.mxu0 0
        %1999 = vmatpush1.bf16.msra.mxu0 %v1980
        %2000 = vmatprep.subr.bf16.mxu0 0
        %2001 = vmatpush1.bf16.msra.mxu0 %v1979
        %2002 = vmatprep.subr.bf16.mxu0 0
        %2003 = vmatpush2.bf16.msra.mxu0 0
        %2004 = vmatprep.subr.bf16.mxu0 0
        %2005 = vmatpush2.bf16.msra.mxu0 0
        %2006 = vmatprep.subr.bf16.mxu0 0
        %2007 = vmatpush2.bf16.msra.mxu0 0
        %2008 = vmatprep.subr.bf16.mxu0 0
        %2009 = vmatpush2.bf16.msra.mxu0 0
        %2010 = vmatprep.subr.bf16.mxu0 0
        %2011 = vmatpush2.bf16.msra.mxu0 0
        %2012 = vmatprep.subr.bf16.mxu0 0
        %2013 = vmatpush2.bf16.msra.mxu0 0
        %2014 = vmatprep.subr.bf16.mxu0 0
        %2015 = vmatpush2.bf16.msra.mxu0 0
        %2016 = vmatprep.subr.bf16.mxu0 0
        %2017 = vmatpush2.bf16.msra.mxu0 0
        %2018 = vmatprep.mubr.bf16.mxu0 0
        %2019 = vmatmul.mubr.bf16.gmra.mxu0 %v1984
        %v2020 = vpop.f32.mrf.mxu0
        %v2021 = vadd.f32 0.0, %v2020
        %v2022 = vpop.f32.mrf.mxu0
        %v2023 = vpop.f32.mrf.mxu0
        %v2024 = vpop.f32.mrf.mxu0
        %2025 = vdwg.mxu0
        %v2026 = vadd.f32 %v1861, %v2021
        %2028 = vrot.lane.b32.xlu0 %v1858, 96
        %v2029 = vpop.permute.xlu0 %2028
        %2031 = vrot.lane.b32.xlu0 %v1859, 96
        %v2032 = vpop.permute.xlu0 %2031
        %v2034 = vsel %vm540, %v2029, 0
        %v2037 = vsel %vm540, %v2032, 0
        %2039 = vmatprep.subr.bf16.mxu0 0
        %2040 = vmatpush1.bf16.xpose.msra.mxu0 0
        %2041 = vmatprep.subr.bf16.mxu0 0
        %2042 = vmatpush1.bf16.xpose.msra.mxu0 0
        %2043 = vmatprep.subr.bf16.mxu0 0
        %2044 = vmatpush1.bf16.xpose.msra.mxu0 0
        %2045 = vmatprep.subr.bf16.mxu0 0
        %2046 = vmatpush1.bf16.xpose.msra.mxu0 0
        %2047 = vmatprep.subr.bf16.mxu0 0
        %2048 = vmatpush1.bf16.xpose.msra.mxu0 0
        %2049 = vmatprep.subr.bf16.mxu0 0
        %2050 = vmatpush1.bf16.xpose.msra.mxu0 0
        %2051 = vmatprep.subr.bf16.mxu0 0
        %2052 = vmatpush1.bf16.xpose.msra.mxu0 0
        %2053 = vmatprep.subr.bf16.mxu0 0
        %2054 = vmatpush1.bf16.xpose.msra.mxu0 %v2037
        %2055 = vmatprep.subr.bf16.mxu0 0
        %2056 = vmatpush2.bf16.xpose.msra.mxu0 0
        %2057 = vmatprep.subr.bf16.mxu0 0
        %2058 = vmatpush2.bf16.xpose.msra.mxu0 0
        %2059 = vmatprep.subr.bf16.mxu0 0
        %2060 = vmatpush2.bf16.xpose.msra.mxu0 0
        %2061 = vmatprep.subr.bf16.mxu0 0
        %2062 = vmatpush2.bf16.xpose.msra.mxu0 0
        %2063 = vmatprep.subr.bf16.mxu0 0
        %2064 = vmatpush2.bf16.xpose.msra.mxu0 0
        %2065 = vmatprep.subr.bf16.mxu0 0
        %2066 = vmatpush2.bf16.xpose.msra.mxu0 0
        %2067 = vmatprep.subr.bf16.mxu0 0
        %2068 = vmatpush2.bf16.xpose.msra.mxu0 0
        %2069 = vmatprep.subr.bf16.mxu0 0
        %2070 = vmatpush2.bf16.xpose.msra.mxu0 0
        %2071 = vmatprep.mubr.bf16.mxu0 0
        %2072 = vmatmul.mubr.bf16.gmra.mxu0 %v2034
        %v2073 = vpop.f32.mrf.mxu0
        %v2074 = vadd.f32 0.0, %v2073
        %v2075 = vpop.f32.mrf.mxu0
        %v2076 = vpop.f32.mrf.mxu0
        %v2077 = vpop.f32.mrf.mxu0
        %2078 = vdwg.mxu0
        %v2079 = vsel %vm587, %v2074, -inf
        %2080 = vmax.xlane.f32.xlu0 %v2079
        %v2081 = vpop.xlane.xlu0 %2080
        %v2082 = vsub.f32 %v2074, %v2081
        %v2083 = vmul.f32 %v2082, 1.442695
        %v2084 = vpow.pop %v2083
        %v2085 = vsel %vm587, %v2084, 0.0
        %2086 = vadd.xlane.f32.xlu0 %v2085
        %v2087 = vpop.xlane.xlu0 %2086
        %v2088 = vrcp.pop %v2087
        %v2089 = vmul.f32 %v2084, %v2088
        %v2090 = vpack.c.bf16 %v2089, %v2089
        %2092 = vrot.lane.b32.xlu0 %v1860, 96
        %v2093 = vpop.permute.xlu0 %2092
        %v2095 = vsel %vm587, %v2090, 0
        %v2098 = vsel %vm603, %v2093, 0
        %2100 = vmatprep.subr.bf16.mxu0 0
        %2101 = vmatpush1.bf16.msra.mxu0 0
        %2102 = vmatprep.subr.bf16.mxu0 0
        %2103 = vmatpush1.bf16.msra.mxu0 0
        %2104 = vmatprep.subr.bf16.mxu0 0
        %2105 = vmatpush1.bf16.msra.mxu0 0
        %2106 = vmatprep.subr.bf16.mxu0 0
        %2107 = vmatpush1.bf16.msra.mxu0 0
        %2108 = vmatprep.subr.bf16.mxu0 0
        %2109 = vmatpush1.bf16.msra.mxu0 0
        %2110 = vmatprep.subr.bf16.mxu0 0
        %2111 = vmatpush1.bf16.msra.mxu0 0
        %2112 = vmatprep.subr.bf16.mxu0 0
        %2113 = vmatpush1.bf16.msra.mxu0 0
        %2114 = vmatprep.subr.bf16.mxu0 0
        %2115 = vmatpush1.bf16.msra.mxu0 %v2098
        %2116 = vmatprep.subr.bf16.mxu0 0
        %2117 = vmatpush2.bf16.msra.mxu0 0
        %2118 = vmatprep.subr.bf16.mxu0 0
        %2119 = vmatpush2.bf16.msra.mxu0 0
        %2120 = vmatprep.subr.bf16.mxu0 0
        %2121 = vmatpush2.bf16.msra.mxu0 0
        %2122 = vmatprep.subr.bf16.mxu0 0
        %2123 = vmatpush2.bf16.msra.mxu0 0
        %2124 = vmatprep.subr.bf16.mxu0 0
        %2125 = vmatpush2.bf16.msra.mxu0 0
        %2126 = vmatprep.subr.bf16.mxu0 0
        %2127 = vmatpush2.bf16.msra.mxu0 0
        %2128 = vmatprep.subr.bf16.mxu0 0
        %2129 = vmatpush2.bf16.msra.mxu0 0
        %2130 = vmatprep.subr.bf16.mxu0 0
        %2131 = vmatpush2.bf16.msra.mxu0 0
        %2132 = vmatprep.mubr.bf16.mxu0 0
        %2133 = vmatmul.mubr.bf16.gmra.mxu0 %v2095
        %v2134 = vpop.f32.mrf.mxu0
        %v2135 = vadd.f32 0.0, %v2134
        %v2136 = vpop.f32.mrf.mxu0
        %v2137 = vpop.f32.mrf.mxu0
        %v2138 = vpop.f32.mrf.mxu0
        %2139 = vdwg.mxu0
        %v2140 = vld [vmem:[#allocation2 + $0x510] sm:$0xf]
        %v2141 = vld [vmem:[#allocation2 + $0x51c] sm:$0xf]
        %v2142 = vld [vmem:[#allocation2 + $0x528] sm:$0xf]
        %v2143 = vld [vmem:[#allocation2 + $0x534] sm:$0xf]
        %v2144 = vpack.c.bf16 %v2135, %v2135
        %v2149 = vunpack.c.l.b16 %v2140
        %v2150 = vunpack.c.l.b16 %v2141
        %v2151 = vunpack.c.l.b16 %v2142
        %v2152 = vunpack.c.l.b16 %v2143
        %v2153 = vpack.c.b16 %v2150, %v2149
        %v2154 = vpack.c.b16 %v2152, %v2151
        %v2158 = vsel %vm540, %v2144, 0
        %2160 = vmatprep.subr.bf16.mxu0 0
        %2161 = vmatpush1.bf16.msra.mxu0 0
        %2162 = vmatprep.subr.bf16.mxu0 0
        %2163 = vmatpush1.bf16.msra.mxu0 0
        %2164 = vmatprep.subr.bf16.mxu0 0
        %2165 = vmatpush1.bf16.msra.mxu0 0
        %2166 = vmatprep.subr.bf16.mxu0 0
        %2167 = vmatpush1.bf16.msra.mxu0 0
        %2168 = vmatprep.subr.bf16.mxu0 0
        %2169 = vmatpush1.bf16.msra.mxu0 0
        %2170 = vmatprep.subr.bf16.mxu0 0
        %2171 = vmatpush1.bf16.msra.mxu0 0
        %2172 = vmatprep.subr.bf16.mxu0 0
        %2173 = vmatpush1.bf16.msra.mxu0 %v2154
        %2174 = vmatprep.subr.bf16.mxu0 0
        %2175 = vmatpush1.bf16.msra.mxu0 %v2153
        %2176 = vmatprep.subr.bf16.mxu0 0
        %2177 = vmatpush2.bf16.msra.mxu0 0
        %2178 = vmatprep.subr.bf16.mxu0 0
        %2179 = vmatpush2.bf16.msra.mxu0 0
        %2180 = vmatprep.subr.bf16.mxu0 0
        %2181 = vmatpush2.bf16.msra.mxu0 0
        %2182 = vmatprep.subr.bf16.mxu0 0
        %2183 = vmatpush2.bf16.msra.mxu0 0
        %2184 = vmatprep.subr.bf16.mxu0 0
        %2185 = vmatpush2.bf16.msra.mxu0 0
        %2186 = vmatprep.subr.bf16.mxu0 0
        %2187 = vmatpush2.bf16.msra.mxu0 0
        %2188 = vmatprep.subr.bf16.mxu0 0
        %2189 = vmatpush2.bf16.msra.mxu0 0
        %2190 = vmatprep.subr.bf16.mxu0 0
        %2191 = vmatpush2.bf16.msra.mxu0 0
        %2192 = vmatprep.mubr.bf16.mxu0 0
        %2193 = vmatmul.mubr.bf16.gmra.mxu0 %v2158
        %v2194 = vpop.f32.mrf.mxu0
        %v2195 = vadd.f32 0.0, %v2194
        %v2196 = vpop.f32.mrf.mxu0
        %v2197 = vpop.f32.mrf.mxu0
        %v2198 = vpop.f32.mrf.mxu0
        %2199 = vdwg.mxu0
        %v2200 = vadd.f32 %v2026, %v2195
        %2201 = vrot.lane.b32.xlu0 %v1858, 64
        %v2202 = vpop.permute.xlu0 %2201
        %2203 = vrot.lane.b32.xlu0 %v1859, 64
        %v2204 = vpop.permute.xlu0 %2203
        %v2206 = vsel %vm540, %v2202, 0
        %v2209 = vsel %vm540, %v2204, 0
        %2211 = vmatprep.subr.bf16.mxu0 0
        %2212 = vmatpush1.bf16.xpose.msra.mxu0 0
        %2213 = vmatprep.subr.bf16.mxu0 0
        %2214 = vmatpush1.bf16.xpose.msra.mxu0 0
        %2215 = vmatprep.subr.bf16.mxu0 0
        %2216 = vmatpush1.bf16.xpose.msra.mxu0 0
        %2217 = vmatprep.subr.bf16.mxu0 0
        %2218 = vmatpush1.bf16.xpose.msra.mxu0 0
        %2219 = vmatprep.subr.bf16.mxu0 0
        %2220 = vmatpush1.bf16.xpose.msra.mxu0 0
        %2221 = vmatprep.subr.bf16.mxu0 0
        %2222 = vmatpush1.bf16.xpose.msra.mxu0 0
        %2223 = vmatprep.subr.bf16.mxu0 0
        %2224 = vmatpush1.bf16.xpose.msra.mxu0 0
        %2225 = vmatprep.subr.bf16.mxu0 0
        %2226 = vmatpush1.bf16.xpose.msra.mxu0 %v2209
        %2227 = vmatprep.subr.bf16.mxu0 0
        %2228 = vmatpush2.bf16.xpose.msra.mxu0 0
        %2229 = vmatprep.subr.bf16.mxu0 0
        %2230 = vmatpush2.bf16.xpose.msra.mxu0 0
        %2231 = vmatprep.subr.bf16.mxu0 0
        %2232 = vmatpush2.bf16.xpose.msra.mxu0 0
        %2233 = vmatprep.subr.bf16.mxu0 0
        %2234 = vmatpush2.bf16.xpose.msra.mxu0 0
        %2235 = vmatprep.subr.bf16.mxu0 0
        %2236 = vmatpush2.bf16.xpose.msra.mxu0 0
        %2237 = vmatprep.subr.bf16.mxu0 0
        %2238 = vmatpush2.bf16.xpose.msra.mxu0 0
        %2239 = vmatprep.subr.bf16.mxu0 0
        %2240 = vmatpush2.bf16.xpose.msra.mxu0 0
        %2241 = vmatprep.subr.bf16.mxu0 0
        %2242 = vmatpush2.bf16.xpose.msra.mxu0 0
        %2243 = vmatprep.mubr.bf16.mxu0 0
        %2244 = vmatmul.mubr.bf16.gmra.mxu0 %v2206
        %v2245 = vpop.f32.mrf.mxu0
        %v2246 = vadd.f32 0.0, %v2245
        %v2247 = vpop.f32.mrf.mxu0
        %v2248 = vpop.f32.mrf.mxu0
        %v2249 = vpop.f32.mrf.mxu0
        %2250 = vdwg.mxu0
        %v2251 = vsel %vm587, %v2246, -inf
        %2252 = vmax.xlane.f32.xlu0 %v2251
        %v2253 = vpop.xlane.xlu0 %2252
        %v2254 = vsub.f32 %v2246, %v2253
        %v2255 = vmul.f32 %v2254, 1.442695
        %v2256 = vpow.pop %v2255
        %v2257 = vsel %vm587, %v2256, 0.0
        %2258 = vadd.xlane.f32.xlu0 %v2257
        %v2259 = vpop.xlane.xlu0 %2258
        %v2260 = vrcp.pop %v2259
        %v2261 = vmul.f32 %v2256, %v2260
        %v2262 = vpack.c.bf16 %v2261, %v2261
        %2263 = vrot.lane.b32.xlu0 %v1860, 64
        %v2264 = vpop.permute.xlu0 %2263
        %v2266 = vsel %vm587, %v2262, 0
        %v2269 = vsel %vm603, %v2264, 0
        %2271 = vmatprep.subr.bf16.mxu0 0
        %2272 = vmatpush1.bf16.msra.mxu0 0
        %2273 = vmatprep.subr.bf16.mxu0 0
        %2274 = vmatpush1.bf16.msra.mxu0 0
        %2275 = vmatprep.subr.bf16.mxu0 0
        %2276 = vmatpush1.bf16.msra.mxu0 0
        %2277 = vmatprep.subr.bf16.mxu0 0
        %2278 = vmatpush1.bf16.msra.mxu0 0
        %2279 = vmatprep.subr.bf16.mxu0 0
        %2280 = vmatpush1.bf16.msra.mxu0 0
        %2281 = vmatprep.subr.bf16.mxu0 0
        %2282 = vmatpush1.bf16.msra.mxu0 0
        %2283 = vmatprep.subr.bf16.mxu0 0
        %2284 = vmatpush1.bf16.msra.mxu0 0
        %2285 = vmatprep.subr.bf16.mxu0 0
        %2286 = vmatpush1.bf16.msra.mxu0 %v2269
        %2287 = vmatprep.subr.bf16.mxu0 0
        %2288 = vmatpush2.bf16.msra.mxu0 0
        %2289 = vmatprep.subr.bf16.mxu0 0
        %2290 = vmatpush2.bf16.msra.mxu0 0
        %2291 = vmatprep.subr.bf16.mxu0 0
        %2292 = vmatpush2.bf16.msra.mxu0 0
        %2293 = vmatprep.subr.bf16.mxu0 0
        %2294 = vmatpush2.bf16.msra.mxu0 0
        %2295 = vmatprep.subr.bf16.mxu0 0
        %2296 = vmatpush2.bf16.msra.mxu0 0
        %2297 = vmatprep.subr.bf16.mxu0 0
        %2298 = vmatpush2.bf16.msra.mxu0 0
        %2299 = vmatprep.subr.bf16.mxu0 0
        %2300 = vmatpush2.bf16.msra.mxu0 0
        %2301 = vmatprep.subr.bf16.mxu0 0
        %2302 = vmatpush2.bf16.msra.mxu0 0
        %2303 = vmatprep.mubr.bf16.mxu0 0
        %2304 = vmatmul.mubr.bf16.gmra.mxu0 %v2266
        %v2305 = vpop.f32.mrf.mxu0
        %v2306 = vadd.f32 0.0, %v2305
        %v2307 = vpop.f32.mrf.mxu0
        %v2308 = vpop.f32.mrf.mxu0
        %v2309 = vpop.f32.mrf.mxu0
        %2310 = vdwg.mxu0
        %v2311 = vld [vmem:[#allocation2 + $0x540] sm:$0xf]
        %v2312 = vld [vmem:[#allocation2 + $0x54c] sm:$0xf]
        %v2313 = vld [vmem:[#allocation2 + $0x558] sm:$0xf]
        %v2314 = vld [vmem:[#allocation2 + $0x564] sm:$0xf]
        %v2315 = vpack.c.bf16 %v2306, %v2306
        %v2320 = vunpack.c.l.b16 %v2311
        %v2321 = vunpack.c.l.b16 %v2312
        %v2322 = vunpack.c.l.b16 %v2313
        %v2323 = vunpack.c.l.b16 %v2314
        %v2324 = vpack.c.b16 %v2321, %v2320
        %v2325 = vpack.c.b16 %v2323, %v2322
        %v2329 = vsel %vm540, %v2315, 0
        %2331 = vmatprep.subr.bf16.mxu0 0
        %2332 = vmatpush1.bf16.msra.mxu0 0
        %2333 = vmatprep.subr.bf16.mxu0 0
        %2334 = vmatpush1.bf16.msra.mxu0 0
        %2335 = vmatprep.subr.bf16.mxu0 0
        %2336 = vmatpush1.bf16.msra.mxu0 0
        %2337 = vmatprep.subr.bf16.mxu0 0
        %2338 = vmatpush1.bf16.msra.mxu0 0
        %2339 = vmatprep.subr.bf16.mxu0 0
        %2340 = vmatpush1.bf16.msra.mxu0 0
        %2341 = vmatprep.subr.bf16.mxu0 0
        %2342 = vmatpush1.bf16.msra.mxu0 0
        %2343 = vmatprep.subr.bf16.mxu0 0
        %2344 = vmatpush1.bf16.msra.mxu0 %v2325
        %2345 = vmatprep.subr.bf16.mxu0 0
        %2346 = vmatpush1.bf16.msra.mxu0 %v2324
        %2347 = vmatprep.subr.bf16.mxu0 0
        %2348 = vmatpush2.bf16.msra.mxu0 0
        %2349 = vmatprep.subr.bf16.mxu0 0
        %2350 = vmatpush2.bf16.msra.mxu0 0
        %2351 = vmatprep.subr.bf16.mxu0 0
        %2352 = vmatpush2.bf16.msra.mxu0 0
        %2353 = vmatprep.subr.bf16.mxu0 0
        %2354 = vmatpush2.bf16.msra.mxu0 0
        %2355 = vmatprep.subr.bf16.mxu0 0
        %2356 = vmatpush2.bf16.msra.mxu0 0
        %2357 = vmatprep.subr.bf16.mxu0 0
        %2358 = vmatpush2.bf16.msra.mxu0 0
        %2359 = vmatprep.subr.bf16.mxu0 0
        %2360 = vmatpush2.bf16.msra.mxu0 0
        %2361 = vmatprep.subr.bf16.mxu0 0
        %2362 = vmatpush2.bf16.msra.mxu0 0
        %2363 = vmatprep.mubr.bf16.mxu0 0
        %2364 = vmatmul.mubr.bf16.gmra.mxu0 %v2329
        %v2365 = vpop.f32.mrf.mxu0
        %v2366 = vadd.f32 0.0, %v2365
        %v2367 = vpop.f32.mrf.mxu0
        %v2368 = vpop.f32.mrf.mxu0
        %v2369 = vpop.f32.mrf.mxu0
        %2370 = vdwg.mxu0
        %v2371 = vadd.f32 %v2200, %v2366
        %2372 = vrot.lane.b32.xlu0 %v1858, 32
        %v2373 = vpop.permute.xlu0 %2372
        %2374 = vrot.lane.b32.xlu0 %v1859, 32
        %v2375 = vpop.permute.xlu0 %2374
        %v2377 = vsel %vm540, %v2373, 0
        %v2380 = vsel %vm540, %v2375, 0
        %2382 = vmatprep.subr.bf16.mxu0 0
        %2383 = vmatpush1.bf16.xpose.msra.mxu0 0
        %2384 = vmatprep.subr.bf16.mxu0 0
        %2385 = vmatpush1.bf16.xpose.msra.mxu0 0
        %2386 = vmatprep.subr.bf16.mxu0 0
        %2387 = vmatpush1.bf16.xpose.msra.mxu0 0
        %2388 = vmatprep.subr.bf16.mxu0 0
        %2389 = vmatpush1.bf16.xpose.msra.mxu0 0
        %2390 = vmatprep.subr.bf16.mxu0 0
        %2391 = vmatpush1.bf16.xpose.msra.mxu0 0
        %2392 = vmatprep.subr.bf16.mxu0 0
        %2393 = vmatpush1.bf16.xpose.msra.mxu0 0
        %2394 = vmatprep.subr.bf16.mxu0 0
        %2395 = vmatpush1.bf16.xpose.msra.mxu0 0
        %2396 = vmatprep.subr.bf16.mxu0 0
        %2397 = vmatpush1.bf16.xpose.msra.mxu0 %v2380
        %2398 = vmatprep.subr.bf16.mxu0 0
        %2399 = vmatpush2.bf16.xpose.msra.mxu0 0
        %2400 = vmatprep.subr.bf16.mxu0 0
        %2401 = vmatpush2.bf16.xpose.msra.mxu0 0
        %2402 = vmatprep.subr.bf16.mxu0 0
        %2403 = vmatpush2.bf16.xpose.msra.mxu0 0
        %2404 = vmatprep.subr.bf16.mxu0 0
        %2405 = vmatpush2.bf16.xpose.msra.mxu0 0
        %2406 = vmatprep.subr.bf16.mxu0 0
        %2407 = vmatpush2.bf16.xpose.msra.mxu0 0
        %2408 = vmatprep.subr.bf16.mxu0 0
        %2409 = vmatpush2.bf16.xpose.msra.mxu0 0
        %2410 = vmatprep.subr.bf16.mxu0 0
        %2411 = vmatpush2.bf16.xpose.msra.mxu0 0
        %2412 = vmatprep.subr.bf16.mxu0 0
        %2413 = vmatpush2.bf16.xpose.msra.mxu0 0
        %2414 = vmatprep.mubr.bf16.mxu0 0
        %2415 = vmatmul.mubr.bf16.gmra.mxu0 %v2377
        %v2416 = vpop.f32.mrf.mxu0
        %v2417 = vadd.f32 0.0, %v2416
        %v2418 = vpop.f32.mrf.mxu0
        %v2419 = vpop.f32.mrf.mxu0
        %v2420 = vpop.f32.mrf.mxu0
        %2421 = vdwg.mxu0
        %v2422 = vsel %vm587, %v2417, -inf
        %2423 = vmax.xlane.f32.xlu0 %v2422
        %v2424 = vpop.xlane.xlu0 %2423
        %v2425 = vsub.f32 %v2417, %v2424
        %v2426 = vmul.f32 %v2425, 1.442695
        %v2427 = vpow.pop %v2426
        %v2428 = vsel %vm587, %v2427, 0.0
        %2429 = vadd.xlane.f32.xlu0 %v2428
        %v2430 = vpop.xlane.xlu0 %2429
        %v2431 = vrcp.pop %v2430
        %v2432 = vmul.f32 %v2427, %v2431
        %v2433 = vpack.c.bf16 %v2432, %v2432
        %2434 = vrot.lane.b32.xlu0 %v1860, 32
        %v2435 = vpop.permute.xlu0 %2434
        %v2437 = vsel %vm587, %v2433, 0
        %v2440 = vsel %vm603, %v2435, 0
        %2442 = vmatprep.subr.bf16.mxu0 0
        %2443 = vmatpush1.bf16.msra.mxu0 0
        %2444 = vmatprep.subr.bf16.mxu0 0
        %2445 = vmatpush1.bf16.msra.mxu0 0
        %2446 = vmatprep.subr.bf16.mxu0 0
        %2447 = vmatpush1.bf16.msra.mxu0 0
        %2448 = vmatprep.subr.bf16.mxu0 0
        %2449 = vmatpush1.bf16.msra.mxu0 0
        %2450 = vmatprep.subr.bf16.mxu0 0
        %2451 = vmatpush1.bf16.msra.mxu0 0
        %2452 = vmatprep.subr.bf16.mxu0 0
        %2453 = vmatpush1.bf16.msra.mxu0 0
        %2454 = vmatprep.subr.bf16.mxu0 0
        %2455 = vmatpush1.bf16.msra.mxu0 0
        %2456 = vmatprep.subr.bf16.mxu0 0
        %2457 = vmatpush1.bf16.msra.mxu0 %v2440
        %2458 = vmatprep.subr.bf16.mxu0 0
        %2459 = vmatpush2.bf16.msra.mxu0 0
        %2460 = vmatprep.subr.bf16.mxu0 0
        %2461 = vmatpush2.bf16.msra.mxu0 0
        %2462 = vmatprep.subr.bf16.mxu0 0
        %2463 = vmatpush2.bf16.msra.mxu0 0
        %2464 = vmatprep.subr.bf16.mxu0 0
        %2465 = vmatpush2.bf16.msra.mxu0 0
        %2466 = vmatprep.subr.bf16.mxu0 0
        %2467 = vmatpush2.bf16.msra.mxu0 0
        %2468 = vmatprep.subr.bf16.mxu0 0
        %2469 = vmatpush2.bf16.msra.mxu0 0
        %2470 = vmatprep.subr.bf16.mxu0 0
        %2471 = vmatpush2.bf16.msra.mxu0 0
        %2472 = vmatprep.subr.bf16.mxu0 0
        %2473 = vmatpush2.bf16.msra.mxu0 0
        %2474 = vmatprep.mubr.bf16.mxu0 0
        %2475 = vmatmul.mubr.bf16.gmra.mxu0 %v2437
        %v2476 = vpop.f32.mrf.mxu0
        %v2477 = vadd.f32 0.0, %v2476
        %v2478 = vpop.f32.mrf.mxu0
        %v2479 = vpop.f32.mrf.mxu0
        %v2480 = vpop.f32.mrf.mxu0
        %2481 = vdwg.mxu0
        %v2482 = vld [vmem:[#allocation2 + $0x570] sm:$0xf]
        %v2483 = vld [vmem:[#allocation2 + $0x57c] sm:$0xf]
        %v2484 = vld [vmem:[#allocation2 + $0x588] sm:$0xf]
        %v2485 = vld [vmem:[#allocation2 + $0x594] sm:$0xf]
        %v2486 = vpack.c.bf16 %v2477, %v2477
        %v2491 = vunpack.c.l.b16 %v2482
        %v2492 = vunpack.c.l.b16 %v2483
        %v2493 = vunpack.c.l.b16 %v2484
        %v2494 = vunpack.c.l.b16 %v2485
        %v2495 = vpack.c.b16 %v2492, %v2491
        %v2496 = vpack.c.b16 %v2494, %v2493
        %v2500 = vsel %vm540, %v2486, 0
        %2502 = vmatprep.subr.bf16.mxu0 0
        %2503 = vmatpush1.bf16.msra.mxu0 0
        %2504 = vmatprep.subr.bf16.mxu0 0
        %2505 = vmatpush1.bf16.msra.mxu0 0
        %2506 = vmatprep.subr.bf16.mxu0 0
        %2507 = vmatpush1.bf16.msra.mxu0 0
        %2508 = vmatprep.subr.bf16.mxu0 0
        %2509 = vmatpush1.bf16.msra.mxu0 0
        %2510 = vmatprep.subr.bf16.mxu0 0
        %2511 = vmatpush1.bf16.msra.mxu0 0
        %2512 = vmatprep.subr.bf16.mxu0 0
        %2513 = vmatpush1.bf16.msra.mxu0 0
        %2514 = vmatprep.subr.bf16.mxu0 0
        %2515 = vmatpush1.bf16.msra.mxu0 %v2496
        %2516 = vmatprep.subr.bf16.mxu0 0
        %2517 = vmatpush1.bf16.msra.mxu0 %v2495
        %2518 = vmatprep.subr.bf16.mxu0 0
        %2519 = vmatpush2.bf16.msra.mxu0 0
        %2520 = vmatprep.subr.bf16.mxu0 0
        %2521 = vmatpush2.bf16.msra.mxu0 0
        %2522 = vmatprep.subr.bf16.mxu0 0
        %2523 = vmatpush2.bf16.msra.mxu0 0
        %2524 = vmatprep.subr.bf16.mxu0 0
        %2525 = vmatpush2.bf16.msra.mxu0 0
        %2526 = vmatprep.subr.bf16.mxu0 0
        %2527 = vmatpush2.bf16.msra.mxu0 0
        %2528 = vmatprep.subr.bf16.mxu0 0
        %2529 = vmatpush2.bf16.msra.mxu0 0
        %2530 = vmatprep.subr.bf16.mxu0 0
        %2531 = vmatpush2.bf16.msra.mxu0 0
        %2532 = vmatprep.subr.bf16.mxu0 0
        %2533 = vmatpush2.bf16.msra.mxu0 0
        %2534 = vmatprep.mubr.bf16.mxu0 0
        %2535 = vmatmul.mubr.bf16.gmra.mxu0 %v2500
        %v2536 = vpop.f32.mrf.mxu0
        %v2537 = vadd.f32 0.0, %v2536
        %v2538 = vpop.f32.mrf.mxu0
        %v2539 = vpop.f32.mrf.mxu0
        %v2540 = vpop.f32.mrf.mxu0
        %2541 = vdwg.mxu0
        %v2542 = vadd.f32 %v2371, %v2537
        %v2543 = vadd.f32 %v1596, %v2542
        %v2544 = vld [vmem:[#allocation4 + $0x1b] ss:$0 sm:$0xff]
        %v2545 = vld [vmem:[#allocation4 + $0x1c] ss:$0 sm:$0xff]
        %2546 = vadd.xlane.f32.xlu0 %v2543
        %v2547 = vpop.xlane.xlu0 %2546
        %v2548 = vmul.f32 %v2547, %v1229
        %v2549 = vsub.f32 %v2543, %v2548
        %v2550 = vmul.f32 %v2549, %v2549
        %2551 = vadd.xlane.f32.xlu0 %v2550
        %v2552 = vpop.xlane.xlu0 %2551
        %v2553 = vmul.f32 %v2552, %v1229
        %v2554 = vadd.f32 %v2553, 1e-05
        %v2555 = vrsqrt.pop %v2554
        %v2556 = vmul.f32 %v2549, %v2555
        %v2557 = vmul.f32 %v2556, %v2544
        %v2558 = vadd.f32 %v2557, %v2545
        %v2559 = vpack.c.bf16 %v2558, %v2558
        %v2560 = vld [vmem:[#allocation2 + $0x5a0] sm:$0xff]
        %v2561 = vld [vmem:[#allocation2 + $0x5ac] sm:$0xff]
        %v2562 = vld [vmem:[#allocation2 + $0x5b8] sm:$0xff]
        %v2563 = vld [vmem:[#allocation2 + $0x5c4] sm:$0xff]
        %v2564 = vld [vmem:[#allocation2 + $0x5d0] sm:$0xff]
        %v2565 = vld [vmem:[#allocation2 + $0x5dc] sm:$0xff]
        %v2566 = vld [vmem:[#allocation2 + $0x5e8] sm:$0xff]
        %v2567 = vld [vmem:[#allocation2 + $0x5f4] sm:$0xff]
        %v2568 = vld [vmem:[#allocation2 + $0x600] sm:$0xff]
        %v2569 = vld [vmem:[#allocation2 + $0x60c] sm:$0xff]
        %v2570 = vld [vmem:[#allocation2 + $0x618] sm:$0xff]
        %v2571 = vld [vmem:[#allocation2 + $0x624] sm:$0xff]
        %v2572 = vld [vmem:[#allocation2 + $0x630] sm:$0xff]
        %v2573 = vld [vmem:[#allocation2 + $0x63c] sm:$0xff]
        %v2574 = vld [vmem:[#allocation2 + $0x648] sm:$0xff]
        %v2575 = vld [vmem:[#allocation2 + $0x654] sm:$0xff]
        %s2576 = scalar_lea.vmem [#allocation4], 29
        %v2577 = vld [vmem:[%s2576] ss:$8 sm:$0x3]
        %v2579 = vlaneseq
        %v2580 = vshrl.u32 %v2579, 7
        %v2581 = vsub.s32 0, %v2580
        %v2582 = vrot.slane %v2577, %v2581
        %v2583 = vlaneseq
        %v2584 = vshrl.u32 %v2583, 7
        %v2585 = vsub.s32 1, %v2584
        %v2586 = vrot.slane %v2577, %v2585
        %v2605 = vunpack.c.l.b16 %v2560
        %v2606 = vunpack.c.h.b16 %v2560
        %v2607 = vunpack.c.l.b16 %v2561
        %v2608 = vunpack.c.h.b16 %v2561
        %v2609 = vunpack.c.l.b16 %v2562
        %v2610 = vunpack.c.h.b16 %v2562
        %v2611 = vunpack.c.l.b16 %v2563
        %v2612 = vunpack.c.h.b16 %v2563
        %v2613 = vunpack.c.l.b16 %v2564
        %v2614 = vunpack.c.h.b16 %v2564
        %v2615 = vunpack.c.l.b16 %v2565
        %v2616 = vunpack.c.h.b16 %v2565
        %v2617 = vunpack.c.l.b16 %v2566
        %v2618 = vunpack.c.h.b16 %v2566
        %v2619 = vunpack.c.l.b16 %v2567
        %v2620 = vunpack.c.h.b16 %v2567
        %v2621 = vunpack.c.l.b16 %v2568
        %v2622 = vunpack.c.h.b16 %v2568
        %v2623 = vunpack.c.l.b16 %v2569
        %v2624 = vunpack.c.h.b16 %v2569
        %v2625 = vunpack.c.l.b16 %v2570
        %v2626 = vunpack.c.h.b16 %v2570
        %v2627 = vunpack.c.l.b16 %v2571
        %v2628 = vunpack.c.h.b16 %v2571
        %v2629 = vunpack.c.l.b16 %v2572
        %v2630 = vunpack.c.h.b16 %v2572
        %v2631 = vunpack.c.l.b16 %v2573
        %v2632 = vunpack.c.h.b16 %v2573
        %v2633 = vunpack.c.l.b16 %v2574
        %v2634 = vunpack.c.h.b16 %v2574
        %v2635 = vunpack.c.l.b16 %v2575
        %v2636 = vunpack.c.h.b16 %v2575
        %v2637 = vpack.c.b16 %v2607, %v2605
        %v2638 = vpack.c.b16 %v2608, %v2606
        %v2639 = vpack.c.b16 %v2611, %v2609
        %v2640 = vpack.c.b16 %v2612, %v2610
        %v2641 = vpack.c.b16 %v2615, %v2613
        %v2642 = vpack.c.b16 %v2616, %v2614
        %v2643 = vpack.c.b16 %v2619, %v2617
        %v2644 = vpack.c.b16 %v2620, %v2618
        %v2645 = vpack.c.b16 %v2623, %v2621
        %v2646 = vpack.c.b16 %v2624, %v2622
        %v2647 = vpack.c.b16 %v2627, %v2625
        %v2648 = vpack.c.b16 %v2628, %v2626
        %v2649 = vpack.c.b16 %v2631, %v2629
        %v2650 = vpack.c.b16 %v2632, %v2630
        %v2651 = vpack.c.b16 %v2635, %v2633
        %v2652 = vpack.c.b16 %v2636, %v2634
        %2669 = vmatprep.subr.bf16.mxu0 %v2652
        %2670 = vmatpush1.bf16.msra.mxu0 %v2651
        %2671 = vmatprep.subr.bf16.mxu0 %v2650
        %2672 = vmatpush1.bf16.msra.mxu0 %v2649
        %2673 = vmatprep.subr.bf16.mxu0 %v2648
        %2674 = vmatpush1.bf16.msra.mxu0 %v2647
        %2675 = vmatprep.subr.bf16.mxu0 %v2646
        %2676 = vmatpush1.bf16.msra.mxu0 %v2645
        %2677 = vmatprep.subr.bf16.mxu0 %v2644
        %2678 = vmatpush1.bf16.msra.mxu0 %v2643
        %2679 = vmatprep.subr.bf16.mxu0 %v2642
        %2680 = vmatpush1.bf16.msra.mxu0 %v2641
        %2681 = vmatprep.subr.bf16.mxu0 %v2640
        %2682 = vmatpush1.bf16.msra.mxu0 %v2639
        %2683 = vmatprep.subr.bf16.mxu0 %v2638
        %2684 = vmatpush1.bf16.msra.mxu0 %v2637
        %2685 = vmatprep.subr.bf16.mxu0 0
        %2686 = vmatpush2.bf16.msra.mxu0 0
        %2687 = vmatprep.subr.bf16.mxu0 0
        %2688 = vmatpush2.bf16.msra.mxu0 0
        %2689 = vmatprep.subr.bf16.mxu0 0
        %2690 = vmatpush2.bf16.msra.mxu0 0
        %2691 = vmatprep.subr.bf16.mxu0 0
        %2692 = vmatpush2.bf16.msra.mxu0 0
        %2693 = vmatprep.subr.bf16.mxu0 0
        %2694 = vmatpush2.bf16.msra.mxu0 0
        %2695 = vmatprep.subr.bf16.mxu0 0
        %2696 = vmatpush2.bf16.msra.mxu0 0
        %2697 = vmatprep.subr.bf16.mxu0 0
        %2698 = vmatpush2.bf16.msra.mxu0 0
        %2699 = vmatprep.subr.bf16.mxu0 0
        %2700 = vmatpush2.bf16.msra.mxu0 0
        %2701 = vmatprep.mubr.bf16.mxu0 0
        %2702 = vmatmul.mubr.bf16.gmra.mxu0 %v2559
        %v2703 = vpop.f32.mrf.mxu0
        %v2704 = vadd.f32 %v2582, %v2703
        %v2705 = vpop.f32.mrf.mxu0
        %v2706 = vadd.f32 %v2586, %v2705
        %v2707 = vpop.f32.mrf.mxu0
        %v2708 = vpop.f32.mrf.mxu0
        %2709 = vdwg.mxu0
        %v2710 = vmul.f32 %v2704, 0.5
        %v2711 = vmul.f32 %v2706, 0.5
        %v2712 = vmul.f32 %v2704, 0.044715
        %v2713 = vmul.f32 %v2706, 0.044715
        %v2714 = vmul.f32 %v2712, %v2704
        %v2715 = vmul.f32 %v2713, %v2706
        %v2716 = vmul.f32 %v2714, %v2704
        %v2717 = vmul.f32 %v2715, %v2706
        %v2718 = vadd.f32 %v2704, %v2716
        %v2719 = vadd.f32 %v2706, %v2717
        %v2720 = vmul.f32 %v2718, 0.7978846
        %v2721 = vmul.f32 %v2719, 0.7978846
        %v2722 = vtanh.pop %v2720
        %v2723 = vtanh.pop %v2721
        %v2724 = vadd.f32 %v2722, 1.0
        %v2725 = vadd.f32 %v2723, 1.0
        %v2726 = vmul.f32 %v2710, %v2724
        %v2727 = vmul.f32 %v2711, %v2725
        %v2728 = vpack.c.bf16 %v2726, %v2726
        %v2729 = vpack.c.bf16 %v2727, %v2727
        %v2730 = vld [vmem:[#allocation2 + $0x660] sm:$0xf]
        %v2731 = vld [vmem:[#allocation2 + $0x66c] sm:$0xf]
        %v2732 = vld [vmem:[#allocation2 + $0x678] sm:$0xf]
        %v2733 = vld [vmem:[#allocation2 + $0x684] sm:$0xf]
        %v2734 = vld [vmem:[#allocation2 + $0x690] sm:$0xf]
        %v2735 = vld [vmem:[#allocation2 + $0x69c] sm:$0xf]
        %v2736 = vld [vmem:[#allocation2 + $0x6a8] sm:$0xf]
        %v2737 = vld [vmem:[#allocation2 + $0x6b4] sm:$0xf]
        %v2738 = vld [vmem:[#allocation2 + $0x6c0] sm:$0xf]
        %v2739 = vld [vmem:[#allocation2 + $0x6cc] sm:$0xf]
        %v2740 = vld [vmem:[#allocation2 + $0x6d8] sm:$0xf]
        %v2741 = vld [vmem:[#allocation2 + $0x6e4] sm:$0xf]
        %v2742 = vld [vmem:[#allocation2 + $0x6f0] sm:$0xf]
        %v2743 = vld [vmem:[#allocation2 + $0x6fc] sm:$0xf]
        %v2744 = vld [vmem:[#allocation2 + $0x708] sm:$0xf]
        %v2745 = vld [vmem:[#allocation2 + $0x714] sm:$0xf]
        %v2746 = vld [vmem:[#allocation2 + $0x720] sm:$0xf]
        %v2747 = vld [vmem:[#allocation2 + $0x72c] sm:$0xf]
        %v2748 = vld [vmem:[#allocation2 + $0x738] sm:$0xf]
        %v2749 = vld [vmem:[#allocation2 + $0x744] sm:$0xf]
        %v2750 = vld [vmem:[#allocation2 + $0x750] sm:$0xf]
        %v2751 = vld [vmem:[#allocation2 + $0x75c] sm:$0xf]
        %v2752 = vld [vmem:[#allocation2 + $0x768] sm:$0xf]
        %v2753 = vld [vmem:[#allocation2 + $0x774] sm:$0xf]
        %v2754 = vld [vmem:[#allocation2 + $0x780] sm:$0xf]
        %v2755 = vld [vmem:[#allocation2 + $0x78c] sm:$0xf]
        %v2756 = vld [vmem:[#allocation2 + $0x798] sm:$0xf]
        %v2757 = vld [vmem:[#allocation2 + $0x7a4] sm:$0xf]
        %v2758 = vld [vmem:[#allocation2 + $0x7b0] sm:$0xf]
        %v2759 = vld [vmem:[#allocation2 + $0x7bc] sm:$0xf]
        %v2760 = vld [vmem:[#allocation2 + $0x7c8] sm:$0xf]
        %v2761 = vld [vmem:[#allocation2 + $0x7d4] sm:$0xf]
        %v2762 = vld [vmem:[#allocation4 + $0x1e] ss:$0 sm:$0xff]
        %v2795 = vunpack.c.l.b16 %v2730
        %v2796 = vunpack.c.l.b16 %v2731
        %v2797 = vunpack.c.l.b16 %v2732
        %v2798 = vunpack.c.l.b16 %v2733
        %v2799 = vunpack.c.l.b16 %v2734
        %v2800 = vunpack.c.l.b16 %v2735
        %v2801 = vunpack.c.l.b16 %v2736
        %v2802 = vunpack.c.l.b16 %v2737
        %v2803 = vunpack.c.l.b16 %v2738
        %v2804 = vunpack.c.l.b16 %v2739
        %v2805 = vunpack.c.l.b16 %v2740
        %v2806 = vunpack.c.l.b16 %v2741
        %v2807 = vunpack.c.l.b16 %v2742
        %v2808 = vunpack.c.l.b16 %v2743
        %v2809 = vunpack.c.l.b16 %v2744
        %v2810 = vunpack.c.l.b16 %v2745
        %v2811 = vunpack.c.l.b16 %v2746
        %v2812 = vunpack.c.l.b16 %v2747
        %v2813 = vunpack.c.l.b16 %v2748
        %v2814 = vunpack.c.l.b16 %v2749
        %v2815 = vunpack.c.l.b16 %v2750
        %v2816 = vunpack.c.l.b16 %v2751
        %v2817 = vunpack.c.l.b16 %v2752
        %v2818 = vunpack.c.l.b16 %v2753
        %v2819 = vunpack.c.l.b16 %v2754
        %v2820 = vunpack.c.l.b16 %v2755
        %v2821 = vunpack.c.l.b16 %v2756
        %v2822 = vunpack.c.l.b16 %v2757
        %v2823 = vunpack.c.l.b16 %v2758
        %v2824 = vunpack.c.l.b16 %v2759
        %v2825 = vunpack.c.l.b16 %v2760
        %v2826 = vunpack.c.l.b16 %v2761
        %v2827 = vpack.c.b16 %v2796, %v2795
        %v2828 = vpack.c.b16 %v2798, %v2797
        %v2829 = vpack.c.b16 %v2800, %v2799
        %v2830 = vpack.c.b16 %v2802, %v2801
        %v2831 = vpack.c.b16 %v2804, %v2803
        %v2832 = vpack.c.b16 %v2806, %v2805
        %v2833 = vpack.c.b16 %v2808, %v2807
        %v2834 = vpack.c.b16 %v2810, %v2809
        %v2835 = vpack.c.b16 %v2812, %v2811
        %v2836 = vpack.c.b16 %v2814, %v2813
        %v2837 = vpack.c.b16 %v2816, %v2815
        %v2838 = vpack.c.b16 %v2818, %v2817
        %v2839 = vpack.c.b16 %v2820, %v2819
        %v2840 = vpack.c.b16 %v2822, %v2821
        %v2841 = vpack.c.b16 %v2824, %v2823
        %v2842 = vpack.c.b16 %v2826, %v2825
        %2859 = vmatprep.subr.bf16.mxu0 0
        %2860 = vmatpush1.bf16.msra.mxu0 %v2834
        %2861 = vmatprep.subr.bf16.mxu0 0
        %2862 = vmatpush1.bf16.msra.mxu0 %v2833
        %2863 = vmatprep.subr.bf16.mxu0 0
        %2864 = vmatpush1.bf16.msra.mxu0 %v2832
        %2865 = vmatprep.subr.bf16.mxu0 0
        %2866 = vmatpush1.bf16.msra.mxu0 %v2831
        %2867 = vmatprep.subr.bf16.mxu0 0
        %2868 = vmatpush1.bf16.msra.mxu0 %v2830
        %2869 = vmatprep.subr.bf16.mxu0 0
        %2870 = vmatpush1.bf16.msra.mxu0 %v2829
        %2871 = vmatprep.subr.bf16.mxu0 0
        %2872 = vmatpush1.bf16.msra.mxu0 %v2828
        %2873 = vmatprep.subr.bf16.mxu0 0
        %2874 = vmatpush1.bf16.msra.mxu0 %v2827
        %2875 = vmatprep.subr.bf16.mxu0 0
        %2876 = vmatpush2.bf16.msra.mxu0 %v2842
        %2877 = vmatprep.subr.bf16.mxu0 0
        %2878 = vmatpush2.bf16.msra.mxu0 %v2841
        %2879 = vmatprep.subr.bf16.mxu0 0
        %2880 = vmatpush2.bf16.msra.mxu0 %v2840
        %2881 = vmatprep.subr.bf16.mxu0 0
        %2882 = vmatpush2.bf16.msra.mxu0 %v2839
        %2883 = vmatprep.subr.bf16.mxu0 0
        %2884 = vmatpush2.bf16.msra.mxu0 %v2838
        %2885 = vmatprep.subr.bf16.mxu0 0
        %2886 = vmatpush2.bf16.msra.mxu0 %v2837
        %2887 = vmatprep.subr.bf16.mxu0 0
        %2888 = vmatpush2.bf16.msra.mxu0 %v2836
        %2889 = vmatprep.subr.bf16.mxu0 0
        %2890 = vmatpush2.bf16.msra.mxu0 %v2835
        %2891 = vmatprep.mubr.bf16.mxu0 %v2729
        %2892 = vmatmul.mubr.bf16.gmra.mxu0 %v2728
        %v2893 = vpop.f32.mrf.mxu0
        %v2894 = vadd.f32 %v2762, %v2893
        %v2895 = vpop.f32.mrf.mxu0
        %v2896 = vpop.f32.mrf.mxu0
        %v2897 = vpop.f32.mrf.mxu0
        %2898 = vdwg.mxu0
        %v2899 = vadd.f32 %v2558, %v2894
        %v2900 = vld [vmem:[#allocation4 + $0x1f] ss:$0 sm:$0xff]
        %v2901 = vld [vmem:[#allocation4 + $0x30] ss:$0 sm:$0xff]
        %2902 = vadd.xlane.f32.xlu0 %v2899
        %v2903 = vpop.xlane.xlu0 %2902
        %v2904 = vmul.f32 %v2903, %v1229
        %v2905 = vsub.f32 %v2899, %v2904
        %v2906 = vmul.f32 %v2905, %v2905
        %2907 = vadd.xlane.f32.xlu0 %v2906
        %v2908 = vpop.xlane.xlu0 %2907
        %v2909 = vmul.f32 %v2908, %v1229
        %v2910 = vadd.f32 %v2909, 1e-05
        %v2911 = vrsqrt.pop %v2910
        %v2912 = vmul.f32 %v2905, %v2911
        %v2913 = vmul.f32 %v2912, %v2900
        %v2914 = vadd.f32 %v2913, %v2901
        %v2915 = vpack.c.bf16 %v2914, %v2914
        %v2916 = vld [vmem:[#allocation2 + $0x7e0] sm:$0xf]
        %v2917 = vld [vmem:[#allocation2 + $0x7ec] sm:$0xf]
        %v2918 = vld [vmem:[#allocation2 + $0x7f8] sm:$0xf]
        %v2919 = vld [vmem:[#allocation2 + $0x804] sm:$0xf]
        %v2920 = vld [vmem:[#allocation2 + $0x810] sm:$0xf]
        %v2921 = vld [vmem:[#allocation2 + $0x81c] sm:$0xf]
        %v2922 = vld [vmem:[#allocation2 + $0x828] sm:$0xf]
        %v2923 = vld [vmem:[#allocation2 + $0x834] sm:$0xf]
        %v2924 = vld [vmem:[#allocation2 + $0x840] sm:$0xf]
        %v2925 = vld [vmem:[#allocation2 + $0x84c] sm:$0xf]
        %v2926 = vld [vmem:[#allocation2 + $0x858] sm:$0xf]
        %v2927 = vld [vmem:[#allocation2 + $0x864] sm:$0xf]
        %v2928 = vld [vmem:[#allocation2 + $0x870] sm:$0xf]
        %v2929 = vld [vmem:[#allocation2 + $0x87c] sm:$0xf]
        %v2930 = vld [vmem:[#allocation2 + $0x888] sm:$0xf]
        %v2931 = vld [vmem:[#allocation2 + $0x894] sm:$0xf]
        %v2932 = vld [vmem:[#allocation4 + $0x31] ss:$0 sm:$0xff]
        %v2949 = vunpack.c.l.b16 %v2916
        %v2950 = vunpack.c.l.b16 %v2917
        %v2951 = vunpack.c.l.b16 %v2918
        %v2952 = vunpack.c.l.b16 %v2919
        %v2953 = vunpack.c.l.b16 %v2920
        %v2954 = vunpack.c.l.b16 %v2921
        %v2955 = vunpack.c.l.b16 %v2922
        %v2956 = vunpack.c.l.b16 %v2923
        %v2957 = vunpack.c.l.b16 %v2924
        %v2958 = vunpack.c.l.b16 %v2925
        %v2959 = vunpack.c.l.b16 %v2926
        %v2960 = vunpack.c.l.b16 %v2927
        %v2961 = vunpack.c.l.b16 %v2928
        %v2962 = vunpack.c.l.b16 %v2929
        %v2963 = vunpack.c.l.b16 %v2930
        %v2964 = vunpack.c.l.b16 %v2931
        %v2965 = vpack.c.b16 %v2950, %v2949
        %v2966 = vpack.c.b16 %v2952, %v2951
        %v2967 = vpack.c.b16 %v2954, %v2953
        %v2968 = vpack.c.b16 %v2956, %v2955
        %v2969 = vpack.c.b16 %v2958, %v2957
        %v2970 = vpack.c.b16 %v2960, %v2959
        %v2971 = vpack.c.b16 %v2962, %v2961
        %v2972 = vpack.c.b16 %v2964, %v2963
        %2981 = vmatprep.subr.bf16.mxu0 0
        %2982 = vmatpush1.bf16.msra.mxu0 %v2972
        %2983 = vmatprep.subr.bf16.mxu0 0
        %2984 = vmatpush1.bf16.msra.mxu0 %v2971
        %2985 = vmatprep.subr.bf16.mxu0 0
        %2986 = vmatpush1.bf16.msra.mxu0 %v2970
        %2987 = vmatprep.subr.bf16.mxu0 0
        %2988 = vmatpush1.bf16.msra.mxu0 %v2969
        %2989 = vmatprep.subr.bf16.mxu0 0
        %2990 = vmatpush1.bf16.msra.mxu0 %v2968
        %2991 = vmatprep.subr.bf16.mxu0 0
        %2992 = vmatpush1.bf16.msra.mxu0 %v2967
        %2993 = vmatprep.subr.bf16.mxu0 0
        %2994 = vmatpush1.bf16.msra.mxu0 %v2966
        %2995 = vmatprep.subr.bf16.mxu0 0
        %2996 = vmatpush1.bf16.msra.mxu0 %v2965
        %2997 = vmatprep.subr.bf16.mxu0 0
        %2998 = vmatpush2.bf16.msra.mxu0 0
        %2999 = vmatprep.subr.bf16.mxu0 0
        %3000 = vmatpush2.bf16.msra.mxu0 0
        %3001 = vmatprep.subr.bf16.mxu0 0
        %3002 = vmatpush2.bf16.msra.mxu0 0
        %3003 = vmatprep.subr.bf16.mxu0 0
        %3004 = vmatpush2.bf16.msra.mxu0 0
        %3005 = vmatprep.subr.bf16.mxu0 0
        %3006 = vmatpush2.bf16.msra.mxu0 0
        %3007 = vmatprep.subr.bf16.mxu0 0
        %3008 = vmatpush2.bf16.msra.mxu0 0
        %3009 = vmatprep.subr.bf16.mxu0 0
        %3010 = vmatpush2.bf16.msra.mxu0 0
        %3011 = vmatprep.subr.bf16.mxu0 0
        %3012 = vmatpush2.bf16.msra.mxu0 0
        %3013 = vmatprep.mubr.bf16.mxu0 0
        %3014 = vmatmul.mubr.bf16.gmra.mxu0 %v2915
        %v3015 = vpop.f32.mrf.mxu0
        %v3016 = vadd.f32 %v2932, %v3015
        %v3017 = vpop.f32.mrf.mxu0
        %v3018 = vpop.f32.mrf.mxu0
        %v3019 = vpop.f32.mrf.mxu0
        %3020 = vdwg.mxu0
        %3021 = vst [vmem:[%s195] sm:$0xff] %v3016
        %p3022 = scmp.lt.s32.totalorder %s16, 1
        %s3023 = scalar_select %p3022, %s16, 1
        %s3024 = smul.addr %s3023, 8
        %s3025 = scalar_lea.vmem %s3, %s3024
        // Predicated region
        $region41: #{transformer_forward.1} parent=31 // pred_check
          %p3026 = pneg %p102
        $region42: #{transformer_forward.1} parent=31 // pred_check_branch
          %3028 = sbr.rel (%p3026) target = $region44
        $region43: #{transformer_forward.1} parent=31 // pred_region
          _
        $region44: #{transformer_forward.1} parent=31 // pred_fallthru
          _
      $region32: #{transformer_forward.1} parent=5 // pred_fallthru
        _
      %p3029 = scmp.le.s32.totalorder 2, %s11
      // Predicated region
      $region45: #{transformer_forward.1} parent=5 // pred_check
        %p3030 = pneg %p3029
      $region46: #{transformer_forward.1} parent=5 // pred_check_branch
        %3032 = sbr.rel (%p3030) target = $region48
      $region47: #{transformer_forward.1} parent=5 // pred_region
        %s3033 = ssub.s32 %s11, 2
        // Predicated region
        $region49: #{transformer_forward.1} parent=47 // pred_check
          %p3034 = pneg %p108
        $region50: #{transformer_forward.1} parent=47 // pred_check_branch
          %3036 = sbr.rel (%p3034) target = $region52
        $region51: #{transformer_forward.1} parent=47 // pred_region
          %p3037 = scmp.lt.s32.totalorder %s17, 1
          %s3038 = scalar_select %p3037, %s17, 1
          %s3039 = smul.addr %s3038, 8
          %s3040 = scalar_lea.vmem %s3, %s3039
        $region52: #{transformer_forward.1} parent=47 // pred_fallthru
          _
      $region48: #{transformer_forward.1} parent=5 // pred_fallthru
        _
    $region6: #{transformer_forward.1} parent=1 // loop_footer
      %s15 = sadd.s32 1, %s11
    $region7: #{transformer_forward.1} parent=1 // loop_footer_branch
      %10 = sbr.rel target = $region3
    $region8: #{transformer_forward.1} parent=1 // loop_exit
      _
    %3041 = vsyncpa [#allocation3], 1
    %s3042 = scalar_lea.sflag [#allocation3], 1
    %3043 = vsyncpa %s3042, 1
    %3044 = vsyncpa [#allocation5], 1

</llo_original>
